<compile_context>
chip_gen: v6e
topology: v6e:2x2x1
jax: 0.10.0
libtpu: 0.0.40
codegen_flags: <defaults>
</compile_context>

<pallas_src>
import functools

import jax
import jax.numpy as jnp
from jax import lax
from jax.experimental import pallas as pl
from jax.experimental.pallas import tpu as pltpu


_EPS = 1e-5
_EXPANSION = 4
_LANE = 128


def _round_up(x, m):
    return (x + m - 1) // m * m


def _vmem_limit_bytes():
    """Generation-aware scoped-VMEM limit (~60% of per-core physical VMEM)."""
    cap = 64 * 1024 * 1024
    try:
        info = pltpu.get_tpu_info()
        cap = int(getattr(info, "vmem_capacity_bytes", cap) or cap)
    except Exception:
        pass
    return int(min(100 * 1024 * 1024, max(32 * 1024 * 1024, 0.6 * cap)))


# ---------------------------------------------------------------------------
# Fused BottleNeck kernel (one image per grid step)
# ---------------------------------------------------------------------------
def _bottleneck_kernel(x_ref, w1_ref, b1_ref, w2_ref, b2_ref, w3_ref, *rest,
                       stride, ch1, tb, downsample):
    if downsample:
        ws_ref, b3_ref, o_ref, y1_ref = rest
    else:
        b3_ref, o_ref, y1_ref = rest

    h, w, cin = x_ref.shape[1], x_ref.shape[2], x_ref.shape[3]
    c1 = w1_ref.shape[1]
    ho, wo, cexp = o_ref.shape[1], o_ref.shape[2], o_ref.shape[3]
    wp = y1_ref.shape[1]                     # padded width (>= w + 2, multiple of 8)
    s = stride
    f32 = jnp.float32

    # Zero the halo-padded y1 scratch (trivial vs. the matmuls; keeps the conv halo logic
    # correct regardless of which TensorCore executes which grid step).
    y1_ref[...] = jnp.zeros_like(y1_ref)

    # ---- stage 1: 1x1 conv (+folded BN) + ReLU, written into the padded VMEM scratch ----
    w1 = w1_ref[...]
    b1 = b1_ref[...]
    for m0 in range(0, h, ch1):
        m1 = min(m0 + ch1, h)
        rows = m1 - m0
        xs = x_ref[0, m0:m1, :, :].reshape(rows * w, cin)
        a = jnp.dot(xs, w1, preferred_element_type=f32) + b1
        a = jnp.maximum(a, 0.0).astype(y1_ref.dtype)
        y1_ref[1 + m0:1 + m1, 1:1 + w, :] = a.reshape(rows, w, c1)

    # ---- stages 2 + 3 (+shortcut) per output row band ------------------------------------
    w2 = w2_ref[...]
    b2 = b2_ref[...]
    w3 = w3_ref[...]
    b3 = b3_ref[...]
    ws = ws_ref[...] if downsample else None

    for r0 in range(0, ho, tb):
        r1 = min(r0 + tb, ho)
        nb = r1 - r0

        # 3x3 conv as ONE MXU dot with K = 9*c1: per kh read a full-width slab of the
        # padded y1 scratch, express the kw shift as a +-1 roll of the flattened slab
        # (wrap-around only lands in the discarded pad columns), and concatenate the nine
        # tap views along K.  No per-tap window slicing, no per-tap accumulator round trip.
        taps = []
        for kh in range(3):
            if s == 1:
                slab = y1_ref[r0 + kh:r0 + kh + nb, :, :]
            else:
                slab = y1_ref[s * r0 + kh:s * r0 + kh + s * nb, :, :]
                slab = slab.reshape(nb, s, wp, c1)[:, 0, :, :]       # H-stride subsample
            slab = slab.reshape(nb * wp, c1)
            taps.append(jnp.roll(slab, 1, axis=0))    # kw = 0
            taps.append(slab)                         # kw = 1
            taps.append(jnp.roll(slab, -1, axis=0))   # kw = 2
        patches = jnp.concatenate(taps, axis=-1)      # (nb*wp, 9*c1)
        y2 = jnp.dot(patches, w2, preferred_element_type=f32) + b2
        y2 = jnp.maximum(y2, 0.0).astype(jnp.bfloat16).reshape(nb, wp, c1)
        # Discard the pad columns / apply the W stride before stage 3.
        if s == 1:
            y2 = y2[:, 1:1 + wo, :]
        else:
            y2 = y2[:, 1:1 + s * wo, :].reshape(nb, wo, s, c1)[:, :, 0, :]
        y2 = y2.reshape(nb * wo, c1)

        acc = jnp.dot(y2, w3, preferred_element_type=f32) + b3
        if downsample:
            if s == 1:
                xb = x_ref[0, r0:r1, :, :]
            else:
                xb = x_ref[0, s * r0:s * r0 + s * nb, :, :]
                xb = xb.reshape(nb, s, w, cin)[:, 0, :, :]
                xb = xb[:, 0:s * wo, :].reshape(nb, wo, s, cin)[:, :, 0, :]
            xb = xb.reshape(nb * wo, cin)
            acc = acc + jnp.dot(xb, ws, preferred_element_type=f32)
        else:
            # identity shortcut (stride == 1 and cin == cexp)
            # TODO(synk): residual is the bf16 copy of x (as a real bf16 network would feed);
            #             pass an f32 residual operand if tighter accuracy is required.
            res = x_ref[0, r0:r1, :, :].reshape(nb * wo, cexp)
            acc = acc + res.astype(f32)

        out = jnp.maximum(acc, 0.0).astype(o_ref.dtype)
        o_ref[0, r0:r1, :, :] = out.reshape(nb, wo, cexp)


# ---------------------------------------------------------------------------
# BN folding (into weights / per-channel bias)
# ---------------------------------------------------------------------------
def _fold_scale_bias(bn):
    gamma, beta, mean, var = bn
    scale = gamma * lax.rsqrt(var + _EPS)
    bias = beta - mean * scale
    return scale, bias


def _fold_w_1x1(wconv, bn, ci_p, co_p):
    scale, bias = _fold_scale_bias(bn)
    w2d = jnp.transpose(wconv[:, :, 0, 0], (1, 0)) * scale[None, :]        # (Cin, Cout)
    w2d = jnp.pad(w2d, ((0, ci_p - w2d.shape[0]), (0, co_p - w2d.shape[1])))
    bias = jnp.pad(bias, (0, co_p - bias.shape[0]))
    return w2d.astype(jnp.bfloat16), bias.reshape(1, co_p).astype(jnp.float32)


def _fold_w_3x3(wconv, bn, ci_p, co_p):
    scale, bias = _fold_scale_bias(bn)
    wt = jnp.transpose(wconv, (2, 3, 1, 0)) * scale[None, None, None, :]   # (3,3,Cin,Cout)
    wt = jnp.pad(wt, ((0, 0), (0, 0),
                      (0, ci_p - wt.shape[2]), (0, co_p - wt.shape[3])))
    wt = wt.reshape(9 * ci_p, co_p)          # K-concatenated taps, tap-major (kh*3 + kw)
    bias = jnp.pad(bias, (0, co_p - bias.shape[0]))
    return wt.astype(jnp.bfloat16), bias.reshape(1, co_p).astype(jnp.float32)


# ---------------------------------------------------------------------------
# Forward
# ---------------------------------------------------------------------------
def bottleneck_forward(params, x_nchw, stride):
    n, cin, h, w = x_nchw.shape
    c1 = params["w1"].shape[0]
    cexp = params["w3"].shape[0]
    downsample = "ws" in params
    if stride != 1 and (h % stride or w % stride):
        # TODO(synk): odd spatial extents with stride>1 are not supported by the in-kernel
        #             strided path (never occurs in ResNet-50).
        raise ValueError("stride>1 requires spatial dims divisible by the stride")

    cin_p = _round_up(cin, _LANE)
    c1_p = _round_up(c1, _LANE)
    cexp_p = _round_up(cexp, _LANE)
    ho = (h - 1) // stride + 1
    wo = (w - 1) // stride + 1
    wp = _round_up(w + 2, 8)                 # padded scratch width (halo + 8-alignment)

    # NCHW -> NHWC, channel-pad to lane multiples, bf16.  In a full network these
    # transposes/pads live outside the hot path (blocks consume NHWC bf16 end-to-end).
    x = jnp.transpose(x_nchw, (0, 2, 3, 1))
    xp = jnp.pad(x, ((0, 0), (0, 0), (0, 0), (0, cin_p - cin))).astype(jnp.bfloat16)

    w1, b1 = _fold_w_1x1(params["w1"], params["bn1"], cin_p, c1_p)
    w2, b2 = _fold_w_3x3(params["w2"], params["bn2"], c1_p, c1_p)
    w3, b3 = _fold_w_1x1(params["w3"], params["bn3"], c1_p, cexp_p)

    inputs = [xp, w1, b1, w2, b2, w3]
    in_specs = [
        pl.BlockSpec((1, h, w, cin_p), lambda i: (i, 0, 0, 0)),
        pl.BlockSpec((cin_p, c1_p), lambda i: (0, 0)),
        pl.BlockSpec((1, c1_p), lambda i: (0, 0)),
        pl.BlockSpec((9 * c1_p, c1_p), lambda i: (0, 0)),
        pl.BlockSpec((1, c1_p), lambda i: (0, 0)),
        pl.BlockSpec((c1_p, cexp_p), lambda i: (0, 0)),
    ]
    if downsample:
        ws, bs = _fold_w_1x1(params["ws"], params["bns"], cin_p, cexp_p)
        b3 = b3 + bs                         # biases of stage-3 and the projection combine
        inputs.append(ws)
        in_specs.append(pl.BlockSpec((cin_p, cexp_p), lambda i: (0, 0)))
    inputs.append(b3)
    in_specs.append(pl.BlockSpec((1, cexp_p), lambda i: (0, 0)))

    ch1 = max(1, 512 // w)                   # stage-1 row chunk  (M ~ 512)
    tb = max(1, min(ho, 512 // wp))          # stage-2/3 row band (M ~ 512)

    kernel = functools.partial(
        _bottleneck_kernel, stride=stride, ch1=ch1, tb=tb, downsample=downsample)

    out = pl.pallas_call(
        kernel,
        out_shape=jax.ShapeDtypeStruct((n, ho, wo, cexp_p), jnp.bfloat16),
        grid=(n,),
        in_specs=in_specs,
        out_specs=pl.BlockSpec((1, ho, wo, cexp_p), lambda i: (i, 0, 0, 0)),
        scratch_shapes=[pltpu.VMEM((h + 2, wp, c1_p), jnp.bfloat16)],
        compiler_params=pltpu.CompilerParams(
            dimension_semantics=("parallel",),
            vmem_limit_bytes=_vmem_limit_bytes()),
    )(*inputs)

    out = out[:, :, :, :cexp]
    return jnp.transpose(out, (0, 3, 1, 2)).astype(jnp.float32)   # back to NCHW for the API


# ---------------------------------------------------------------------------
# Parameter init + pure-JAX reference (lax.conv, f32) for correctness checking
# ---------------------------------------------------------------------------
def init_bottleneck_params(key, in_ch, out_ch, stride):
    keys = jax.random.split(key, 8)

    def conv_w(k, co, ci, kh, kw):
        bound = 1.0 / jnp.sqrt(ci * kh * kw)
        return jax.random.uniform(k, (co, ci, kh, kw), jnp.float32, -bound, bound)

    def bn_p(k, c):
        k1, k2, k3, k4 = jax.random.split(k, 4)
        gamma = jax.random.uniform(k1, (c,), jnp.float32, 0.5, 1.5)
        beta = jax.random.uniform(k2, (c,), jnp.float32, -0.5, 0.5)
        mean = 0.1 * jax.random.normal(k3, (c,), jnp.float32)
        var = 0.5 + 0.5 * jnp.abs(jax.random.normal(k4, (c,), jnp.float32))
        return gamma, beta, mean, var

    params = {
        "w1": conv_w(keys[0], out_ch, in_ch, 1, 1),
        "bn1": bn_p(keys[1], out_ch),
        "w2": conv_w(keys[2], out_ch, out_ch, 3, 3),
        "bn2": bn_p(keys[3], out_ch),
        "w3": conv_w(keys[4], out_ch * _EXPANSION, out_ch, 1, 1),
        "bn3": bn_p(keys[5], out_ch * _EXPANSION),
    }
    if stride != 1 or in_ch != out_ch * _EXPANSION:
        params["ws"] = conv_w(keys[6], out_ch * _EXPANSION, in_ch, 1, 1)
        params["bns"] = bn_p(keys[7], out_ch * _EXPANSION)
    return params


def reference_forward(params, x_nchw, stride):
    def conv(x, w, s, padding):
        return lax.conv_general_dilated(
            x, w, (s, s), padding, dimension_numbers=("NCHW", "OIHW", "NCHW"))

    def bn(x, p):
        g, b, m, v = p
        g, b, m, v = (t[None, :, None, None] for t in (g, b, m, v))
        return (x - m) / jnp.sqrt(v + _EPS) * g + b

    y = jax.nn.relu(bn(conv(x_nchw, params["w1"], 1, "VALID"), params["bn1"]))
    y = jax.nn.relu(bn(conv(y, params["w2"], stride, [(1, 1), (1, 1)]), params["bn2"]))
    y = bn(conv(y, params["w3"], 1, "VALID"), params["bn3"])
    if "ws" in params:
        sc = bn(conv(x_nchw, params["ws"], stride, "VALID"), params["bns"])
    else:
        sc = x_nchw
    return jax.nn.relu(y + sc)


# ---------------------------------------------------------------------------
if __name__ == "__main__":
    key = jax.random.PRNGKey(0)
    fwd = jax.jit(bottleneck_forward, static_argnums=2)

    configs = [
        # (batch, in_channels, out_channels, spatial, stride)
        (2, 4, 4, 16, 1),    # projection shortcut (in != out*4), stride 1
        (2, 16, 4, 16, 1),   # identity shortcut
        (2, 8, 4, 16, 2),    # projection shortcut with in-kernel spatial downsampling
    ]
    for idx, (batch, in_ch, out_ch, hw, stride) in enumerate(configs):
        kx, kp, key = jax.random.split(key, 3)
        x = jax.random.normal(kx, (batch, in_ch, hw, hw), jnp.float32)
        params = init_bottleneck_params(kp, in_ch, out_ch, stride)

        out = jax.block_until_ready(fwd(params, x, stride))
        ref = jax.block_until_ready(reference_forward(params, x, stride))

        if out.shape != ref.shape:
            raise AssertionError("config %d: shape mismatch %s vs %s"
                                 % (idx, out.shape, ref.shape))
        # bf16 matmul inputs / activations (f32 accumulation) vs an f32 reference.
        if not jnp.allclose(out, ref, atol=5e-2, rtol=5e-2):
            err = float(jnp.max(jnp.abs(out - ref)))
            raise AssertionError("config %d: output mismatch (max |err|=%g)" % (idx, err))

    print("KERNEL_OK")
</pallas_src>

<mosaic_0001>
module attributes {stable_mosaic.version = 11 : i64} {
  func.func @_bottleneck_kernel(%arg0: i32, %arg1: memref<1x16x16x128xbf16, #tpu.memory_space<vmem>>, %arg2: memref<128x128xbf16, #tpu.memory_space<vmem>>, %arg3: memref<1x128xf32, #tpu.memory_space<vmem>>, %arg4: memref<1152x128xbf16, #tpu.memory_space<vmem>>, %arg5: memref<1x128xf32, #tpu.memory_space<vmem>>, %arg6: memref<128x128xbf16, #tpu.memory_space<vmem>>, %arg7: memref<128x128xbf16, #tpu.memory_space<vmem>>, %arg8: memref<1x128xf32, #tpu.memory_space<vmem>>, %arg9: memref<1x16x16x128xbf16, #tpu.memory_space<vmem>>, %arg10: memref<18x24x128xbf16, #tpu.memory_space<vmem>>) attributes {dimension_semantics = [#tpu.dimension_semantics<parallel>], iteration_bounds = array<i64: 2>, scalar_prefetch = 0 : i64, scratch_operands = 1 : i64, tpu.core_type = #tpu.core_type<tc>, window_params = [{transform_indices = @transform_0, window_bounds = array<i64: 1, 16, 16, 128>}, {pipeline_mode = #tpu.pipeline_mode<synchronous>, transform_indices = @transform_1, window_bounds = array<i64: 128, 128>}, {pipeline_mode = #tpu.pipeline_mode<synchronous>, transform_indices = @transform_2, window_bounds = array<i64: 1, 128>}, {pipeline_mode = #tpu.pipeline_mode<synchronous>, transform_indices = @transform_3, window_bounds = array<i64: 1152, 128>}, {pipeline_mode = #tpu.pipeline_mode<synchronous>, transform_indices = @transform_4, window_bounds = array<i64: 1, 128>}, {pipeline_mode = #tpu.pipeline_mode<synchronous>, transform_indices = @transform_5, window_bounds = array<i64: 128, 128>}, {pipeline_mode = #tpu.pipeline_mode<synchronous>, transform_indices = @transform_6, window_bounds = array<i64: 128, 128>}, {pipeline_mode = #tpu.pipeline_mode<synchronous>, transform_indices = @transform_7, window_bounds = array<i64: 1, 128>}, {transform_indices = @transform_8, window_bounds = array<i64: 1, 16, 16, 128>}]} {
    %cst = arith.constant 0.000000e+00 : bf16
    %0 = vector.broadcast %cst : bf16 to vector<18x24x128xbf16>
    %c0 = arith.constant 0 : index
    %c0_0 = arith.constant 0 : index
    %c0_1 = arith.constant 0 : index
    %1 = vector.load %arg10[%c0, %c0_0, %c0_1] : memref<18x24x128xbf16, #tpu.memory_space<vmem>>, vector<18x24x128xbf16>
    tpu.vector_store %arg10[%c0, %c0_0, %c0_1], %0 {strides = array<i32>} : memref<18x24x128xbf16, #tpu.memory_space<vmem>>, vector<18x24x128xbf16>,
    %c0_2 = arith.constant 0 : index
    %c0_3 = arith.constant 0 : index
    %2 = vector.load %arg2[%c0_2, %c0_3] : memref<128x128xbf16, #tpu.memory_space<vmem>>, vector<128x128xbf16>
    %c0_4 = arith.constant 0 : index
    %c0_5 = arith.constant 0 : index
    %3 = vector.load %arg3[%c0_4, %c0_5] : memref<1x128xf32, #tpu.memory_space<vmem>>, vector<1x128xf32>
    %c0_6 = arith.constant 0 : index
    %c0_7 = arith.constant 0 : index
    %c0_8 = arith.constant 0 : index
    %c0_9 = arith.constant 0 : index
    %4 = vector.load %arg1[%c0_6, %c0_7, %c0_8, %c0_9] : memref<1x16x16x128xbf16, #tpu.memory_space<vmem>>, vector<1x16x16x128xbf16>
    %5 = vector.shape_cast %4 : vector<1x16x16x128xbf16> to vector<16x16x128xbf16>
    %6 = vector.shape_cast %5 : vector<16x16x128xbf16> to vector<256x128xbf16>
    %cst_10 = arith.constant dense<0.000000e+00> : vector<256x128xf32>
    %7 = tpu.matmul %6, %2, %cst_10 {dimension_numbers = #tpu.dot_dimension_numbers<[1], [0], [0], [1], [0, 0, 1, 1], [], []>} : vector<256x128xbf16>, vector<128x128xbf16>, vector<256x128xf32> -> vector<256x128xf32>
    %8 = vector.broadcast %3 : vector<1x128xf32> to vector<256x128xf32>
    %9 = arith.addf %7, %8 : vector<256x128xf32>
    %cst_11 = arith.constant 0.000000e+00 : f32
    %10 = vector.broadcast %cst_11 : f32 to vector<256x128xf32>
    %11 = arith.maximumf %9, %10 : vector<256x128xf32>
    %12 = arith.truncf %11 : vector<256x128xf32> to vector<256x128xbf16>
    %13 = vector.shape_cast %12 : vector<256x128xbf16> to vector<16x16x128xbf16>
    %c1 = arith.constant 1 : index
    %c1_12 = arith.constant 1 : index
    %c0_13 = arith.constant 0 : index
    %14 = vector.load %arg10[%c1, %c1_12, %c0_13] : memref<18x24x128xbf16, #tpu.memory_space<vmem>>, vector<16x16x128xbf16>
    tpu.vector_store %arg10[%c1, %c1_12, %c0_13], %13 {strides = array<i32>} : memref<18x24x128xbf16, #tpu.memory_space<vmem>>, vector<16x16x128xbf16>,
    %c0_14 = arith.constant 0 : index
    %c0_15 = arith.constant 0 : index
    %15 = vector.load %arg4[%c0_14, %c0_15] : memref<1152x128xbf16, #tpu.memory_space<vmem>>, vector<1152x128xbf16>
    %c0_16 = arith.constant 0 : index
    %c0_17 = arith.constant 0 : index
    %16 = vector.load %arg5[%c0_16, %c0_17] : memref<1x128xf32, #tpu.memory_space<vmem>>, vector<1x128xf32>
    %c0_18 = arith.constant 0 : index
    %c0_19 = arith.constant 0 : index
    %17 = vector.load %arg6[%c0_18, %c0_19] : memref<128x128xbf16, #tpu.memory_space<vmem>>, vector<128x128xbf16>
    %c0_20 = arith.constant 0 : index
    %c0_21 = arith.constant 0 : index
    %18 = vector.load %arg8[%c0_20, %c0_21] : memref<1x128xf32, #tpu.memory_space<vmem>>, vector<1x128xf32>
    %c0_22 = arith.constant 0 : index
    %c0_23 = arith.constant 0 : index
    %19 = vector.load %arg7[%c0_22, %c0_23] : memref<128x128xbf16, #tpu.memory_space<vmem>>, vector<128x128xbf16>
    %c0_24 = arith.constant 0 : index
    %c0_25 = arith.constant 0 : index
    %c0_26 = arith.constant 0 : index
    %20 = vector.load %arg10[%c0_24, %c0_25, %c0_26] : memref<18x24x128xbf16, #tpu.memory_space<vmem>>, vector<16x24x128xbf16>
    %21 = vector.shape_cast %20 : vector<16x24x128xbf16> to vector<384x128xbf16>
    %22 = vector.extract_strided_slice %21 {offsets = [383, 0], sizes = [1, 128], strides = [1, 1]} : vector<384x128xbf16> to vector<1x128xbf16>
    %23 = vector.extract_strided_slice %21 {offsets = [0, 0], sizes = [383, 128], strides = [1, 1]} : vector<384x128xbf16> to vector<383x128xbf16>
    %24 = tpu.concatenate %22, %23 in 0 : vector<1x128xbf16>, vector<383x128xbf16> -> vector<384x128xbf16>
    %25 = vector.extract_strided_slice %21 {offsets = [1, 0], sizes = [383, 128], strides = [1, 1]} : vector<384x128xbf16> to vector<383x128xbf16>
    %26 = vector.extract_strided_slice %21 {offsets = [0, 0], sizes = [1, 128], strides = [1, 1]} : vector<384x128xbf16> to vector<1x128xbf16>
    %27 = tpu.concatenate %25, %26 in 0 : vector<383x128xbf16>, vector<1x128xbf16> -> vector<384x128xbf16>
    %c1_27 = arith.constant 1 : index
    %c0_28 = arith.constant 0 : index
    %c0_29 = arith.constant 0 : index
    %28 = vector.load %arg10[%c1_27, %c0_28, %c0_29] : memref<18x24x128xbf16, #tpu.memory_space<vmem>>, vector<16x24x128xbf16>
    %29 = vector.shape_cast %28 : vector<16x24x128xbf16> to vector<384x128xbf16>
    %30 = vector.extract_strided_slice %29 {offsets = [383, 0], sizes = [1, 128], strides = [1, 1]} : vector<384x128xbf16> to vector<1x128xbf16>
    %31 = vector.extract_strided_slice %29 {offsets = [0, 0], sizes = [383, 128], strides = [1, 1]} : vector<384x128xbf16> to vector<383x128xbf16>
    %32 = tpu.concatenate %30, %31 in 0 : vector<1x128xbf16>, vector<383x128xbf16> -> vector<384x128xbf16>
    %33 = vector.extract_strided_slice %29 {offsets = [1, 0], sizes = [383, 128], strides = [1, 1]} : vector<384x128xbf16> to vector<383x128xbf16>
    %34 = vector.extract_strided_slice %29 {offsets = [0, 0], sizes = [1, 128], strides = [1, 1]} : vector<384x128xbf16> to vector<1x128xbf16>
    %35 = tpu.concatenate %33, %34 in 0 : vector<383x128xbf16>, vector<1x128xbf16> -> vector<384x128xbf16>
    %c2 = arith.constant 2 : index
    %c0_30 = arith.constant 0 : index
    %c0_31 = arith.constant 0 : index
    %36 = vector.load %arg10[%c2, %c0_30, %c0_31] : memref<18x24x128xbf16, #tpu.memory_space<vmem>>, vector<16x24x128xbf16>
    %37 = vector.shape_cast %36 : vector<16x24x128xbf16> to vector<384x128xbf16>
    %38 = vector.extract_strided_slice %37 {offsets = [383, 0], sizes = [1, 128], strides = [1, 1]} : vector<384x128xbf16> to vector<1x128xbf16>
    %39 = vector.extract_strided_slice %37 {offsets = [0, 0], sizes = [383, 128], strides = [1, 1]} : vector<384x128xbf16> to vector<383x128xbf16>
    %40 = tpu.concatenate %38, %39 in 0 : vector<1x128xbf16>, vector<383x128xbf16> -> vector<384x128xbf16>
    %41 = vector.extract_strided_slice %37 {offsets = [1, 0], sizes = [383, 128], strides = [1, 1]} : vector<384x128xbf16> to vector<383x128xbf16>
    %42 = vector.extract_strided_slice %37 {offsets = [0, 0], sizes = [1, 128], strides = [1, 1]} : vector<384x128xbf16> to vector<1x128xbf16>
    %43 = tpu.concatenate %41, %42 in 0 : vector<383x128xbf16>, vector<1x128xbf16> -> vector<384x128xbf16>
    %44 = tpu.concatenate %24, %21, %27, %32, %29, %35, %40, %37, %43 in 1 : vector<384x128xbf16>, vector<384x128xbf16>, vector<384x128xbf16>, vector<384x128xbf16>, vector<384x128xbf16>, vector<384x128xbf16>, vector<384x128xbf16>, vector<384x128xbf16>, vector<384x128xbf16> -> vector<384x1152xbf16>
    %cst_32 = arith.constant dense<0.000000e+00> : vector<384x128xf32>
    %45 = tpu.matmul %44, %15, %cst_32 {dimension_numbers = #tpu.dot_dimension_numbers<[1], [0], [0], [1], [0, 0, 1, 1], [], []>} : vector<384x1152xbf16>, vector<1152x128xbf16>, vector<384x128xf32> -> vector<384x128xf32>
    %46 = vector.broadcast %16 : vector<1x128xf32> to vector<384x128xf32>
    %47 = arith.addf %45, %46 : vector<384x128xf32>
    %cst_33 = arith.constant 0.000000e+00 : f32
    %48 = vector.broadcast %cst_33 : f32 to vector<384x128xf32>
    %49 = arith.maximumf %47, %48 : vector<384x128xf32>
    %50 = arith.truncf %49 : vector<384x128xf32> to vector<384x128xbf16>
    %51 = vector.shape_cast %50 : vector<384x128xbf16> to vector<16x24x128xbf16>
    %52 = vector.extract_strided_slice %51 {offsets = [0, 1, 0], sizes = [16, 16, 128], strides = [1, 1, 1]} : vector<16x24x128xbf16> to vector<16x16x128xbf16>
    %53 = vector.shape_cast %52 : vector<16x16x128xbf16> to vector<256x128xbf16>
    %cst_34 = arith.constant dense<0.000000e+00> : vector<256x128xf32>
    %54 = tpu.matmul %53, %17, %cst_34 {dimension_numbers = #tpu.dot_dimension_numbers<[1], [0], [0], [1], [0, 0, 1, 1], [], []>} : vector<256x128xbf16>, vector<128x128xbf16>, vector<256x128xf32> -> vector<256x128xf32>
    %55 = vector.broadcast %18 : vector<1x128xf32> to vector<256x128xf32>
    %56 = arith.addf %54, %55 : vector<256x128xf32>
    %c0_35 = arith.constant 0 : index
    %c0_36 = arith.constant 0 : index
    %c0_37 = arith.constant 0 : index
    %c0_38 = arith.constant 0 : index
    %57 = vector.load %arg1[%c0_35, %c0_36, %c0_37, %c0_38] : memref<1x16x16x128xbf16, #tpu.memory_space<vmem>>, vector<1x16x16x128xbf16>
    %58 = vector.shape_cast %57 : vector<1x16x16x128xbf16> to vector<16x16x128xbf16>
    %59 = vector.shape_cast %58 : vector<16x16x128xbf16> to vector<256x128xbf16>
    %cst_39 = arith.constant dense<0.000000e+00> : vector<256x128xf32>
    %60 = tpu.matmul %59, %19, %cst_39 {dimension_numbers = #tpu.dot_dimension_numbers<[1], [0], [0], [1], [0, 0, 1, 1], [], []>} : vector<256x128xbf16>, vector<128x128xbf16>, vector<256x128xf32> -> vector<256x128xf32>
    %61 = arith.addf %56, %60 : vector<256x128xf32>
    %cst_40 = arith.constant 0.000000e+00 : f32
    %62 = vector.broadcast %cst_40 : f32 to vector<256x128xf32>
    %63 = arith.maximumf %61, %62 : vector<256x128xf32>
    %64 = arith.truncf %63 : vector<256x128xf32> to vector<256x128xbf16>
    %65 = vector.shape_cast %64 : vector<256x128xbf16> to vector<16x16x128xbf16>
    %c0_41 = arith.constant 0 : index
    %c0_42 = arith.constant 0 : index
    %c0_43 = arith.constant 0 : index
    %c0_44 = arith.constant 0 : index
    %66 = vector.load %arg9[%c0_41, %c0_42, %c0_43, %c0_44] : memref<1x16x16x128xbf16, #tpu.memory_space<vmem>>, vector<1x16x16x128xbf16>
    %67 = vector.shape_cast %66 : vector<1x16x16x128xbf16> to vector<16x16x128xbf16>
    %68 = vector.shape_cast %65 : vector<16x16x128xbf16> to vector<1x16x16x128xbf16>
    tpu.vector_store %arg9[%c0_41, %c0_42, %c0_43, %c0_44], %68 {strides = array<i32>} : memref<1x16x16x128xbf16, #tpu.memory_space<vmem>>, vector<1x16x16x128xbf16>,
    return
  }
  func.func @transform_0(%arg0: i32) -> (i32, i32, i32, i32) {
    %c0_i32 = arith.constant 0 : i32
    %c0_i32_0 = arith.constant 0 : i32
    %c0_i32_1 = arith.constant 0 : i32
    %c0_i32_2 = arith.constant 0 : i32
    return %arg0, %c0_i32, %c0_i32_0, %c0_i32_1 : i32, i32, i32, i32
  }
  func.func @transform_1(%arg0: i32) -> (i32, i32) {
    %c0_i32 = arith.constant 0 : i32
    %c0_i32_0 = arith.constant 0 : i32
    %c0_i32_1 = arith.constant 0 : i32
    return %c0_i32, %c0_i32_0 : i32, i32
  }
  func.func @transform_2(%arg0: i32) -> (i32, i32) {
    %c0_i32 = arith.constant 0 : i32
    %c0_i32_0 = arith.constant 0 : i32
    %c0_i32_1 = arith.constant 0 : i32
    return %c0_i32, %c0_i32_0 : i32, i32
  }
  func.func @transform_3(%arg0: i32) -> (i32, i32) {
    %c0_i32 = arith.constant 0 : i32
    %c0_i32_0 = arith.constant 0 : i32
    %c0_i32_1 = arith.constant 0 : i32
    return %c0_i32, %c0_i32_0 : i32, i32
  }
  func.func @transform_4(%arg0: i32) -> (i32, i32) {
    %c0_i32 = arith.constant 0 : i32
    %c0_i32_0 = arith.constant 0 : i32
    %c0_i32_1 = arith.constant 0 : i32
    return %c0_i32, %c0_i32_0 : i32, i32
  }
  func.func @transform_5(%arg0: i32) -> (i32, i32) {
    %c0_i32 = arith.constant 0 : i32
    %c0_i32_0 = arith.constant 0 : i32
    %c0_i32_1 = arith.constant 0 : i32
    return %c0_i32, %c0_i32_0 : i32, i32
  }
  func.func @transform_6(%arg0: i32) -> (i32, i32) {
    %c0_i32 = arith.constant 0 : i32
    %c0_i32_0 = arith.constant 0 : i32
    %c0_i32_1 = arith.constant 0 : i32
    return %c0_i32, %c0_i32_0 : i32, i32
  }
  func.func @transform_7(%arg0: i32) -> (i32, i32) {
    %c0_i32 = arith.constant 0 : i32
    %c0_i32_0 = arith.constant 0 : i32
    %c0_i32_1 = arith.constant 0 : i32
    return %c0_i32, %c0_i32_0 : i32, i32
  }
  func.func @transform_8(%arg0: i32) -> (i32, i32, i32, i32) {
    %c0_i32 = arith.constant 0 : i32
    %c0_i32_0 = arith.constant 0 : i32
    %c0_i32_1 = arith.constant 0 : i32
    %c0_i32_2 = arith.constant 0 : i32
    return %arg0, %c0_i32, %c0_i32_0, %c0_i32_1 : i32, i32, i32, i32
  }
}

</mosaic_0001>

<llo_original>
// kernel: bottleneck_forward.1
$region0: #{bottleneck_forward.1}
  #allocation0 [shape = 'u32[]', space=smem, size = 0x4, offset = 0x4, fixed_abs, tag = 'smem constant byte address 0x4 - core index']
  #allocation1 [shape = 'u32[144,128]{1,0:T(1,128)}', space=vmem, size = 0x12000, scoped, tag = 'internal scratch']
  #allocation2 [shape = 'bf16[18,24,128]{2,1,0:T(8,128)(2,1)}', space=vmem, size = 0x1b000, scoped, tag = 'scratch operand']
  %s0 = inlined_call_operand.vmem [shape: bf16[2,16,16,128], index: 0, kind: input, shape index: {}]
  %s1 = inlined_call_operand.vmem [shape: bf16[128,128], index: 1, kind: input, shape index: {}]
  %s2 = inlined_call_operand.vmem [shape: f32[1,128], index: 2, kind: input, shape index: {}]
  %s3 = inlined_call_operand.vmem [shape: bf16[1152,128], index: 3, kind: input, shape index: {}]
  %s4 = inlined_call_operand.vmem [shape: f32[1,128], index: 4, kind: input, shape index: {}]
  %s5 = inlined_call_operand.vmem [shape: bf16[128,128], index: 5, kind: input, shape index: {}]
  %s6 = inlined_call_operand.vmem [shape: bf16[128,128], index: 6, kind: input, shape index: {}]
  %s7 = inlined_call_operand.vmem [shape: f32[1,128], index: 7, kind: input, shape index: {}]
  %s8 = inlined_call_operand.vmem [shape: bf16[2,16,16,128], index: 8, kind: output, shape index: {}]
  %s9 = sld [smem:[#allocation0]]
  $region65: #{bottleneck_forward.1} parent=0
    _
  %s11 = ssub.s32 1, %s9
  %s12 = scalar_select 0, %s11, %s9
  loop: start=0, step=1, limit=4
  $region2: #{bottleneck_forward.1} parent=0 // loop_pre_header
    _
  $region3: #{bottleneck_forward.1} parent=0 // loop_header
    %s14 = sphi 0, %s18
    %p15 = scmp.ge.s32.totalorder %s14, 4
    %s24 = sphi 0, %s26
    %s27 = sphi 0, %s24
    %s28 = sphi 0, %s27
    %s44 = sphi 0, %s28
    %s48 = sphi 0, %s48
    %s50 = sphi 0, %s48
    %s51 = sphi 0, %s50
    %s65 = sphi 0, %s51
    %s69 = sphi 0, %s69
    %s71 = sphi 0, %s69
    %s72 = sphi 0, %s71
    %s86 = sphi 0, %s72
    %s90 = sphi 0, %s90
    %s92 = sphi 0, %s90
    %s93 = sphi 0, %s92
    %s107 = sphi 0, %s93
    %s111 = sphi 0, %s111
    %s113 = sphi 0, %s111
    %s114 = sphi 0, %s113
    %s128 = sphi 0, %s114
    %s132 = sphi 0, %s132
    %s134 = sphi 0, %s132
    %s135 = sphi 0, %s134
    %s149 = sphi 0, %s135
    %s153 = sphi 0, %s153
    %s155 = sphi 0, %s153
    %s156 = sphi 0, %s155
    %s170 = sphi 0, %s156
    %s174 = sphi 0, %s174
    %s176 = sphi 0, %s174
    %s177 = sphi 0, %s176
    %s191 = sphi 0, %s177
    %s197 = sphi 0, %s199
    %s200 = sphi 0, %s197
    %s201 = sphi 0, %s200
    %s217 = sphi 0, %s201
  $region4: #{bottleneck_forward.1} parent=0 // loop_header_branch
    %17 = sbr.rel (%p15) target = $region8
  $region5: #{bottleneck_forward.1} parent=0 // loop_body
    %s19 = ssub.s32 %s14, 1
    %s20 = ssub.s32 %s14, 2
    %s21 = sadd.s32 %s14, 1
    %s22 = ssub.s32 %s14, %s21
    %p23 = scmp.eq.s32.totalorder %s22, 0
    %s25 = sadd.s32 %s24, 1
    %s26 = scalar_select %p23, %s24, %s25
    %p29 = pneg %p23
    %p30 = scmp.eq.s32.totalorder %s14, 1
    %p31 = por %p29, %p30
    %p32 = scmp.ne.s32.totalorder %s24, %s27
    %p33 = scmp.eq.s32.totalorder %s14, 0
    %p34 = por %p32, %p33
    %p35 = scmp.ne.s32.totalorder %s24, %s27
    %p36 = scmp.eq.s32.totalorder %s19, 1
    %p37 = por %p35, %p36
    %p38 = scmp.ne.s32.totalorder %s27, %s28
    %p39 = scmp.eq.s32.totalorder %s19, 0
    %p40 = por %p38, %p39
    %p41 = scmp.ne.s32.totalorder %s27, %s28
    %p42 = scmp.eq.s32.totalorder %s20, 1
    %p43 = por %p41, %p42
    %p45 = scmp.ne.s32.totalorder %s28, %s44
    %p46 = scmp.eq.s32.totalorder %s20, 0
    %p47 = por %p45, %p46
    %s49 = sadd.s32 %s48, 1
    %p52 = scmp.eq.s32.totalorder %s14, 1
    %p53 = scmp.ne.s32.totalorder %s48, %s50
    %p54 = scmp.eq.s32.totalorder %s14, 0
    %p55 = por %p53, %p54
    %p56 = scmp.ne.s32.totalorder %s48, %s50
    %p57 = scmp.eq.s32.totalorder %s19, 1
    %p58 = por %p56, %p57
    %p59 = scmp.ne.s32.totalorder %s50, %s51
    %p60 = scmp.eq.s32.totalorder %s19, 0
    %p61 = por %p59, %p60
    %p62 = scmp.ne.s32.totalorder %s50, %s51
    %p63 = scmp.eq.s32.totalorder %s20, 1
    %p64 = por %p62, %p63
    %p66 = scmp.ne.s32.totalorder %s51, %s65
    %p67 = scmp.eq.s32.totalorder %s20, 0
    %p68 = por %p66, %p67
    %s70 = sadd.s32 %s69, 1
    %p73 = scmp.eq.s32.totalorder %s14, 1
    %p74 = scmp.ne.s32.totalorder %s69, %s71
    %p75 = scmp.eq.s32.totalorder %s14, 0
    %p76 = por %p74, %p75
    %p77 = scmp.ne.s32.totalorder %s69, %s71
    %p78 = scmp.eq.s32.totalorder %s19, 1
    %p79 = por %p77, %p78
    %p80 = scmp.ne.s32.totalorder %s71, %s72
    %p81 = scmp.eq.s32.totalorder %s19, 0
    %p82 = por %p80, %p81
    %p83 = scmp.ne.s32.totalorder %s71, %s72
    %p84 = scmp.eq.s32.totalorder %s20, 1
    %p85 = por %p83, %p84
    %p87 = scmp.ne.s32.totalorder %s72, %s86
    %p88 = scmp.eq.s32.totalorder %s20, 0
    %p89 = por %p87, %p88
    %s91 = sadd.s32 %s90, 1
    %p94 = scmp.eq.s32.totalorder %s14, 1
    %p95 = scmp.ne.s32.totalorder %s90, %s92
    %p96 = scmp.eq.s32.totalorder %s14, 0
    %p97 = por %p95, %p96
    %p98 = scmp.ne.s32.totalorder %s90, %s92
    %p99 = scmp.eq.s32.totalorder %s19, 1
    %p100 = por %p98, %p99
    %p101 = scmp.ne.s32.totalorder %s92, %s93
    %p102 = scmp.eq.s32.totalorder %s19, 0
    %p103 = por %p101, %p102
    %p104 = scmp.ne.s32.totalorder %s92, %s93
    %p105 = scmp.eq.s32.totalorder %s20, 1
    %p106 = por %p104, %p105
    %p108 = scmp.ne.s32.totalorder %s93, %s107
    %p109 = scmp.eq.s32.totalorder %s20, 0
    %p110 = por %p108, %p109
    %s112 = sadd.s32 %s111, 1
    %p115 = scmp.eq.s32.totalorder %s14, 1
    %p116 = scmp.ne.s32.totalorder %s111, %s113
    %p117 = scmp.eq.s32.totalorder %s14, 0
    %p118 = por %p116, %p117
    %p119 = scmp.ne.s32.totalorder %s111, %s113
    %p120 = scmp.eq.s32.totalorder %s19, 1
    %p121 = por %p119, %p120
    %p122 = scmp.ne.s32.totalorder %s113, %s114
    %p123 = scmp.eq.s32.totalorder %s19, 0
    %p124 = por %p122, %p123
    %p125 = scmp.ne.s32.totalorder %s113, %s114
    %p126 = scmp.eq.s32.totalorder %s20, 1
    %p127 = por %p125, %p126
    %p129 = scmp.ne.s32.totalorder %s114, %s128
    %p130 = scmp.eq.s32.totalorder %s20, 0
    %p131 = por %p129, %p130
    %s133 = sadd.s32 %s132, 1
    %p136 = scmp.eq.s32.totalorder %s14, 1
    %p137 = scmp.ne.s32.totalorder %s132, %s134
    %p138 = scmp.eq.s32.totalorder %s14, 0
    %p139 = por %p137, %p138
    %p140 = scmp.ne.s32.totalorder %s132, %s134
    %p141 = scmp.eq.s32.totalorder %s19, 1
    %p142 = por %p140, %p141
    %p143 = scmp.ne.s32.totalorder %s134, %s135
    %p144 = scmp.eq.s32.totalorder %s19, 0
    %p145 = por %p143, %p144
    %p146 = scmp.ne.s32.totalorder %s134, %s135
    %p147 = scmp.eq.s32.totalorder %s20, 1
    %p148 = por %p146, %p147
    %p150 = scmp.ne.s32.totalorder %s135, %s149
    %p151 = scmp.eq.s32.totalorder %s20, 0
    %p152 = por %p150, %p151
    %s154 = sadd.s32 %s153, 1
    %p157 = scmp.eq.s32.totalorder %s14, 1
    %p158 = scmp.ne.s32.totalorder %s153, %s155
    %p159 = scmp.eq.s32.totalorder %s14, 0
    %p160 = por %p158, %p159
    %p161 = scmp.ne.s32.totalorder %s153, %s155
    %p162 = scmp.eq.s32.totalorder %s19, 1
    %p163 = por %p161, %p162
    %p164 = scmp.ne.s32.totalorder %s155, %s156
    %p165 = scmp.eq.s32.totalorder %s19, 0
    %p166 = por %p164, %p165
    %p167 = scmp.ne.s32.totalorder %s155, %s156
    %p168 = scmp.eq.s32.totalorder %s20, 1
    %p169 = por %p167, %p168
    %p171 = scmp.ne.s32.totalorder %s156, %s170
    %p172 = scmp.eq.s32.totalorder %s20, 0
    %p173 = por %p171, %p172
    %s175 = sadd.s32 %s174, 1
    %p178 = scmp.eq.s32.totalorder %s14, 1
    %p179 = scmp.ne.s32.totalorder %s174, %s176
    %p180 = scmp.eq.s32.totalorder %s14, 0
    %p181 = por %p179, %p180
    %p182 = scmp.ne.s32.totalorder %s174, %s176
    %p183 = scmp.eq.s32.totalorder %s19, 1
    %p184 = por %p182, %p183
    %p185 = scmp.ne.s32.totalorder %s176, %s177
    %p186 = scmp.eq.s32.totalorder %s19, 0
    %p187 = por %p185, %p186
    %p188 = scmp.ne.s32.totalorder %s176, %s177
    %p189 = scmp.eq.s32.totalorder %s20, 1
    %p190 = por %p188, %p189
    %p192 = scmp.ne.s32.totalorder %s177, %s191
    %p193 = scmp.eq.s32.totalorder %s20, 0
    %p194 = por %p192, %p193
    %s195 = ssub.s32 %s14, %s21
    %p196 = scmp.eq.s32.totalorder %s195, 0
    %s198 = sadd.s32 %s197, 1
    %s199 = scalar_select %p196, %s197, %s198
    %p202 = pneg %p196
    %p203 = scmp.eq.s32.totalorder %s14, 1
    %p204 = por %p202, %p203
    %p205 = scmp.ne.s32.totalorder %s197, %s200
    %p206 = scmp.eq.s32.totalorder %s14, 0
    %p207 = por %p205, %p206
    %p208 = scmp.ne.s32.totalorder %s197, %s200
    %p209 = scmp.eq.s32.totalorder %s19, 1
    %p210 = por %p208, %p209
    %p211 = scmp.ne.s32.totalorder %s200, %s201
    %p212 = scmp.eq.s32.totalorder %s19, 0
    %p213 = por %p211, %p212
    %p214 = scmp.ne.s32.totalorder %s200, %s201
    %p215 = scmp.eq.s32.totalorder %s20, 1
    %p216 = por %p214, %p215
    %p218 = scmp.ne.s32.totalorder %s201, %s217
    %p219 = scmp.eq.s32.totalorder %s20, 0
    %p220 = por %p218, %p219
    %p221 = scmp.le.s32.totalorder 1, %s14
    %p222 = scmp.lt.s32.totalorder %s14, 3
    %p223 = pnand %p221, %p222
    %p224 = pneg %p223
    // Predicated region
    $region9: #{bottleneck_forward.1} parent=5 // pred_check
      _
    $region10: #{bottleneck_forward.1} parent=5 // pred_check_branch
      %226 = sbr.rel (%p223) target = $region12
    $region11: #{bottleneck_forward.1} parent=5 // pred_region
      %s227 = ssub.s32 %s14, 1
      // Predicated region
      $region13: #{bottleneck_forward.1} parent=11 // pred_check
        %p228 = pneg %p61
      $region14: #{bottleneck_forward.1} parent=11 // pred_check_branch
        %230 = sbr.rel (%p228) target = $region16
      $region15: #{bottleneck_forward.1} parent=11 // pred_region
        _
      $region16: #{bottleneck_forward.1} parent=11 // pred_fallthru
        _
      // Predicated region
      $region17: #{bottleneck_forward.1} parent=11 // pred_check
        %p231 = pneg %p82
      $region18: #{bottleneck_forward.1} parent=11 // pred_check_branch
        %233 = sbr.rel (%p231) target = $region20
      $region19: #{bottleneck_forward.1} parent=11 // pred_region
        _
      $region20: #{bottleneck_forward.1} parent=11 // pred_fallthru
        _
      // Predicated region
      $region21: #{bottleneck_forward.1} parent=11 // pred_check
        %p234 = pneg %p103
      $region22: #{bottleneck_forward.1} parent=11 // pred_check_branch
        %236 = sbr.rel (%p234) target = $region24
      $region23: #{bottleneck_forward.1} parent=11 // pred_region
        _
      $region24: #{bottleneck_forward.1} parent=11 // pred_fallthru
        _
      // Predicated region
      $region25: #{bottleneck_forward.1} parent=11 // pred_check
        %p237 = pneg %p124
      $region26: #{bottleneck_forward.1} parent=11 // pred_check_branch
        %239 = sbr.rel (%p237) target = $region28
      $region27: #{bottleneck_forward.1} parent=11 // pred_region
        _
      $region28: #{bottleneck_forward.1} parent=11 // pred_fallthru
        _
      // Predicated region
      $region29: #{bottleneck_forward.1} parent=11 // pred_check
        %p240 = pneg %p145
      $region30: #{bottleneck_forward.1} parent=11 // pred_check_branch
        %242 = sbr.rel (%p240) target = $region32
      $region31: #{bottleneck_forward.1} parent=11 // pred_region
        _
      $region32: #{bottleneck_forward.1} parent=11 // pred_fallthru
        _
      // Predicated region
      $region33: #{bottleneck_forward.1} parent=11 // pred_check
        %p243 = pneg %p166
      $region34: #{bottleneck_forward.1} parent=11 // pred_check_branch
        %245 = sbr.rel (%p243) target = $region36
      $region35: #{bottleneck_forward.1} parent=11 // pred_region
        _
      $region36: #{bottleneck_forward.1} parent=11 // pred_fallthru
        _
      // Predicated region
      $region37: #{bottleneck_forward.1} parent=11 // pred_check
        %p246 = pneg %p187
      $region38: #{bottleneck_forward.1} parent=11 // pred_check_branch
        %248 = sbr.rel (%p246) target = $region40
      $region39: #{bottleneck_forward.1} parent=11 // pred_region
        _
      $region40: #{bottleneck_forward.1} parent=11 // pred_fallthru
        _
    $region12: #{bottleneck_forward.1} parent=5 // pred_fallthru
      _
    %p249 = scmp.lt.s32.totalorder %s14, 2
    // Predicated region
    $region41: #{bottleneck_forward.1} parent=5 // pred_check
      %p250 = pneg %p249
    $region42: #{bottleneck_forward.1} parent=5 // pred_check_branch
      %252 = sbr.rel (%p250) target = $region44
    $region43: #{bottleneck_forward.1} parent=5 // pred_region
      // Predicated region
      $region45: #{bottleneck_forward.1} parent=43 // pred_check
        %p253 = pneg %p34
      $region46: #{bottleneck_forward.1} parent=43 // pred_check_branch
        %255 = sbr.rel (%p253) target = $region48
      $region47: #{bottleneck_forward.1} parent=43 // pred_region
        %p256 = scmp.lt.s32.totalorder %s14, 1
        %s257 = scalar_select %p256, %s14, 1
        %s258 = smul.addr %s257, 32
        %s259 = smul.addr %s258, 4
        %s260 = scalar_lea.vmem %s0, %s259
      $region48: #{bottleneck_forward.1} parent=43 // pred_fallthru
        _
    $region44: #{bottleneck_forward.1} parent=5 // pred_fallthru
      _
    %p261 = scmp.le.s32.totalorder 1, %s14
    %p262 = scmp.lt.s32.totalorder %s14, 3
    %p263 = pnand %p261, %p262
    %p264 = pneg %p263
    // Predicated region
    $region49: #{bottleneck_forward.1} parent=5 // pred_check
      _
    $region50: #{bottleneck_forward.1} parent=5 // pred_check_branch
      %266 = sbr.rel (%p263) target = $region52
    $region51: #{bottleneck_forward.1} parent=5 // pred_region
      %s267 = ssub.s32 %s14, 1
      %p268 = scmp.lt.s32.totalorder %s19, 1
      %s269 = scalar_select %p268, %s19, 1
      %s270 = smul.addr %s269, 32
      %s271 = smul.addr %s270, 4
      %s272 = scalar_lea.vmem %s0, %s271
      %p273 = pneg %p40
      %p274 = pneg %p37
      %p275 = pneg %p61
      %p276 = pneg %p58
      %p277 = pneg %p82
      %p278 = pneg %p79
      %p279 = pneg %p103
      %p280 = pneg %p100
      %p281 = pneg %p124
      %p282 = pneg %p121
      %p283 = pneg %p145
      %p284 = pneg %p142
      %p285 = pneg %p166
      %p286 = pneg %p163
      %p287 = pneg %p187
      %p288 = pneg %p184
      %p289 = pneg %p213
      %p290 = pneg %p210
      %p291 = scmp.lt.s32.totalorder %s19, 1
      %s292 = scalar_select %p291, %s19, 1
      %s293 = smul.addr %s292, 32
      %s294 = smul.addr %s293, 4
      %s295 = scalar_lea.vmem %s8, %s294
      %p296 = scmp.lt.s32.totalorder %s19, 1
      %s297 = scalar_select %p296, %s19, 1
      %s298 = smul.addr %s297, 32
      %s299 = smul.addr %s298, 4
      %s300 = scalar_lea.vmem %s0, %s299
      %p301 = scmp.lt.s32.totalorder %s19, 1
      %s302 = scalar_select %p301, %s19, 1
      %s303 = smul.addr %s302, 32
      %s304 = smul.addr %s303, 4
      %s305 = scalar_lea.vmem %s8, %s304
      %307 = vst [vmem:[#allocation2] sm:$0xf] 0
      %308 = vst [vmem:[#allocation2 + $0x4] sm:$0xf] 0
      %309 = vst [vmem:[#allocation2 + $0x8] sm:$0xf] 0
      %310 = vst [vmem:[#allocation2 + $0xc] sm:$0xf] 0
      %311 = vst [vmem:[#allocation2 + $0x10] sm:$0xf] 0
      %312 = vst [vmem:[#allocation2 + $0x14] sm:$0xf] 0
      %313 = vst [vmem:[#allocation2 + $0x18] sm:$0xf] 0
      %314 = vst [vmem:[#allocation2 + $0x1c] sm:$0xf] 0
      %315 = vst [vmem:[#allocation2 + $0x20] sm:$0xf] 0
      %316 = vst [vmem:[#allocation2 + $0x24] sm:$0xf] 0
      %317 = vst [vmem:[#allocation2 + $0x28] sm:$0xf] 0
      %318 = vst [vmem:[#allocation2 + $0x2c] sm:$0xf] 0
      %319 = vst [vmem:[#allocation2 + $0x30] sm:$0xf] 0
      %320 = vst [vmem:[#allocation2 + $0x34] sm:$0xf] 0
      %321 = vst [vmem:[#allocation2 + $0x38] sm:$0xf] 0
      %322 = vst [vmem:[#allocation2 + $0x3c] sm:$0xf] 0
      %323 = vst [vmem:[#allocation2 + $0x40] sm:$0xf] 0
      %324 = vst [vmem:[#allocation2 + $0x44] sm:$0xf] 0
      %325 = vst [vmem:[#allocation2 + $0x48] sm:$0xf] 0
      %326 = vst [vmem:[#allocation2 + $0x4c] sm:$0xf] 0
      %327 = vst [vmem:[#allocation2 + $0x50] sm:$0xf] 0
      %328 = vst [vmem:[#allocation2 + $0x54] sm:$0xf] 0
      %329 = vst [vmem:[#allocation2 + $0x58] sm:$0xf] 0
      %330 = vst [vmem:[#allocation2 + $0x5c] sm:$0xf] 0
      %331 = vst [vmem:[#allocation2 + $0x60] sm:$0xf] 0
      %332 = vst [vmem:[#allocation2 + $0x64] sm:$0xf] 0
      %333 = vst [vmem:[#allocation2 + $0x68] sm:$0xf] 0
      %334 = vst [vmem:[#allocation2 + $0x6c] sm:$0xf] 0
      %335 = vst [vmem:[#allocation2 + $0x70] sm:$0xf] 0
      %336 = vst [vmem:[#allocation2 + $0x74] sm:$0xf] 0
      %337 = vst [vmem:[#allocation2 + $0x78] sm:$0xf] 0
      %338 = vst [vmem:[#allocation2 + $0x7c] sm:$0xf] 0
      %339 = vst [vmem:[#allocation2 + $0x80] sm:$0xf] 0
      %340 = vst [vmem:[#allocation2 + $0x84] sm:$0xf] 0
      %341 = vst [vmem:[#allocation2 + $0x88] sm:$0xf] 0
      %342 = vst [vmem:[#allocation2 + $0x8c] sm:$0xf] 0
      %343 = vst [vmem:[#allocation2 + $0x90] sm:$0xf] 0
      %344 = vst [vmem:[#allocation2 + $0x94] sm:$0xf] 0
      %345 = vst [vmem:[#allocation2 + $0x98] sm:$0xf] 0
      %346 = vst [vmem:[#allocation2 + $0x9c] sm:$0xf] 0
      %347 = vst [vmem:[#allocation2 + $0xa0] sm:$0xf] 0
      %348 = vst [vmem:[#allocation2 + $0xa4] sm:$0xf] 0
      %349 = vst [vmem:[#allocation2 + $0xa8] sm:$0xf] 0
      %350 = vst [vmem:[#allocation2 + $0xac] sm:$0xf] 0
      %351 = vst [vmem:[#allocation2 + $0xb0] sm:$0xf] 0
      %352 = vst [vmem:[#allocation2 + $0xb4] sm:$0xf] 0
      %353 = vst [vmem:[#allocation2 + $0xb8] sm:$0xf] 0
      %354 = vst [vmem:[#allocation2 + $0xbc] sm:$0xf] 0
      %355 = vst [vmem:[#allocation2 + $0xc0] sm:$0xf] 0
      %356 = vst [vmem:[#allocation2 + $0xc4] sm:$0xf] 0
      %357 = vst [vmem:[#allocation2 + $0xc8] sm:$0xf] 0
      %358 = vst [vmem:[#allocation2 + $0xcc] sm:$0xf] 0
      %359 = vst [vmem:[#allocation2 + $0xd0] sm:$0xf] 0
      %360 = vst [vmem:[#allocation2 + $0xd4] sm:$0xf] 0
      %v361 = vld [vmem:[%s1] sm:$0xf]
      %v362 = vld [vmem:[%s1 + $0x4] sm:$0xf]
      %v363 = vld [vmem:[%s1 + $0x8] sm:$0xf]
      %v364 = vld [vmem:[%s1 + $0xc] sm:$0xf]
      %v365 = vld [vmem:[%s1 + $0x10] sm:$0xf]
      %v366 = vld [vmem:[%s1 + $0x14] sm:$0xf]
      %v367 = vld [vmem:[%s1 + $0x18] sm:$0xf]
      %v368 = vld [vmem:[%s1 + $0x1c] sm:$0xf]
      %v369 = vld [vmem:[%s1 + $0x20] sm:$0xf]
      %v370 = vld [vmem:[%s1 + $0x24] sm:$0xf]
      %v371 = vld [vmem:[%s1 + $0x28] sm:$0xf]
      %v372 = vld [vmem:[%s1 + $0x2c] sm:$0xf]
      %v373 = vld [vmem:[%s1 + $0x30] sm:$0xf]
      %v374 = vld [vmem:[%s1 + $0x34] sm:$0xf]
      %v375 = vld [vmem:[%s1 + $0x38] sm:$0xf]
      %v376 = vld [vmem:[%s1 + $0x3c] sm:$0xf]
      %v377 = vld [vmem:[%s2] sm:$0x1]
      %v378 = vld [vmem:[%s300] sm:$0xf]
      %v379 = vld [vmem:[%s300 + $0x4] sm:$0xf]
      %v380 = vld [vmem:[%s300 + $0x8] sm:$0xf]
      %v381 = vld [vmem:[%s300 + $0xc] sm:$0xf]
      %v382 = vld [vmem:[%s300 + $0x10] sm:$0xf]
      %v383 = vld [vmem:[%s300 + $0x14] sm:$0xf]
      %v384 = vld [vmem:[%s300 + $0x18] sm:$0xf]
      %v385 = vld [vmem:[%s300 + $0x1c] sm:$0xf]
      %v386 = vld [vmem:[%s300 + $0x20] sm:$0xf]
      %v387 = vld [vmem:[%s300 + $0x24] sm:$0xf]
      %v388 = vld [vmem:[%s300 + $0x28] sm:$0xf]
      %v389 = vld [vmem:[%s300 + $0x2c] sm:$0xf]
      %v390 = vld [vmem:[%s300 + $0x30] sm:$0xf]
      %v391 = vld [vmem:[%s300 + $0x34] sm:$0xf]
      %v392 = vld [vmem:[%s300 + $0x38] sm:$0xf]
      %v393 = vld [vmem:[%s300 + $0x3c] sm:$0xf]
      %v394 = vld [vmem:[%s300 + $0x40] sm:$0xf]
      %v395 = vld [vmem:[%s300 + $0x44] sm:$0xf]
      %v396 = vld [vmem:[%s300 + $0x48] sm:$0xf]
      %v397 = vld [vmem:[%s300 + $0x4c] sm:$0xf]
      %v398 = vld [vmem:[%s300 + $0x50] sm:$0xf]
      %v399 = vld [vmem:[%s300 + $0x54] sm:$0xf]
      %v400 = vld [vmem:[%s300 + $0x58] sm:$0xf]
      %v401 = vld [vmem:[%s300 + $0x5c] sm:$0xf]
      %v402 = vld [vmem:[%s300 + $0x60] sm:$0xf]
      %v403 = vld [vmem:[%s300 + $0x64] sm:$0xf]
      %v404 = vld [vmem:[%s300 + $0x68] sm:$0xf]
      %v405 = vld [vmem:[%s300 + $0x6c] sm:$0xf]
      %v406 = vld [vmem:[%s300 + $0x70] sm:$0xf]
      %v407 = vld [vmem:[%s300 + $0x74] sm:$0xf]
      %v408 = vld [vmem:[%s300 + $0x78] sm:$0xf]
      %v409 = vld [vmem:[%s300 + $0x7c] sm:$0xf]
      %v411 = vlaneseq
      %v412 = vshrl.u32 %v411, 7
      %v413 = vsub.s32 0, %v412
      %v414 = vrot.slane %v377, %v413
      %v448 = vunpack.c.l.b16 %v378
      %v449 = vunpack.c.l.b16 %v379
      %v450 = vunpack.c.l.b16 %v380
      %v451 = vunpack.c.l.b16 %v381
      %v452 = vunpack.c.l.b16 %v382
      %v453 = vunpack.c.l.b16 %v383
      %v454 = vunpack.c.l.b16 %v384
      %v455 = vunpack.c.l.b16 %v385
      %v456 = vunpack.c.l.b16 %v386
      %v457 = vunpack.c.l.b16 %v387
      %v458 = vunpack.c.l.b16 %v388
      %v459 = vunpack.c.l.b16 %v389
      %v460 = vunpack.c.l.b16 %v390
      %v461 = vunpack.c.l.b16 %v391
      %v462 = vunpack.c.l.b16 %v392
      %v463 = vunpack.c.l.b16 %v393
      %v464 = vunpack.c.l.b16 %v394
      %v465 = vunpack.c.l.b16 %v395
      %v466 = vunpack.c.l.b16 %v396
      %v467 = vunpack.c.l.b16 %v397
      %v468 = vunpack.c.l.b16 %v398
      %v469 = vunpack.c.l.b16 %v399
      %v470 = vunpack.c.l.b16 %v400
      %v471 = vunpack.c.l.b16 %v401
      %v472 = vunpack.c.l.b16 %v402
      %v473 = vunpack.c.l.b16 %v403
      %v474 = vunpack.c.l.b16 %v404
      %v475 = vunpack.c.l.b16 %v405
      %v476 = vunpack.c.l.b16 %v406
      %v477 = vunpack.c.l.b16 %v407
      %v478 = vunpack.c.l.b16 %v408
      %v479 = vunpack.c.l.b16 %v409
      %v480 = vpack.c.b16 %v449, %v448
      %v481 = vpack.c.b16 %v451, %v450
      %v482 = vpack.c.b16 %v453, %v452
      %v483 = vpack.c.b16 %v455, %v454
      %v484 = vpack.c.b16 %v457, %v456
      %v485 = vpack.c.b16 %v459, %v458
      %v486 = vpack.c.b16 %v461, %v460
      %v487 = vpack.c.b16 %v463, %v462
      %v488 = vpack.c.b16 %v465, %v464
      %v489 = vpack.c.b16 %v467, %v466
      %v490 = vpack.c.b16 %v469, %v468
      %v491 = vpack.c.b16 %v471, %v470
      %v492 = vpack.c.b16 %v473, %v472
      %v493 = vpack.c.b16 %v475, %v474
      %v494 = vpack.c.b16 %v477, %v476
      %v495 = vpack.c.b16 %v479, %v478
      %v528 = vunpack.c.l.b16 %v361
      %v529 = vunpack.c.l.b16 %v362
      %v530 = vunpack.c.l.b16 %v363
      %v531 = vunpack.c.l.b16 %v364
      %v532 = vunpack.c.l.b16 %v365
      %v533 = vunpack.c.l.b16 %v366
      %v534 = vunpack.c.l.b16 %v367
      %v535 = vunpack.c.l.b16 %v368
      %v536 = vunpack.c.l.b16 %v369
      %v537 = vunpack.c.l.b16 %v370
      %v538 = vunpack.c.l.b16 %v371
      %v539 = vunpack.c.l.b16 %v372
      %v540 = vunpack.c.l.b16 %v373
      %v541 = vunpack.c.l.b16 %v374
      %v542 = vunpack.c.l.b16 %v375
      %v543 = vunpack.c.l.b16 %v376
      %v544 = vpack.c.b16 %v529, %v528
      %v545 = vpack.c.b16 %v531, %v530
      %v546 = vpack.c.b16 %v533, %v532
      %v547 = vpack.c.b16 %v535, %v534
      %v548 = vpack.c.b16 %v537, %v536
      %v549 = vpack.c.b16 %v539, %v538
      %v550 = vpack.c.b16 %v541, %v540
      %v551 = vpack.c.b16 %v543, %v542
      %560 = vmatprep.subr.bf16.mxu0 0
      %561 = vmatpush1.bf16.msra.mxu0 %v551
      %562 = vmatprep.subr.bf16.mxu0 0
      %563 = vmatpush1.bf16.msra.mxu0 %v550
      %564 = vmatprep.subr.bf16.mxu0 0
      %565 = vmatpush1.bf16.msra.mxu0 %v549
      %566 = vmatprep.subr.bf16.mxu0 0
      %567 = vmatpush1.bf16.msra.mxu0 %v548
      %568 = vmatprep.subr.bf16.mxu0 0
      %569 = vmatpush1.bf16.msra.mxu0 %v547
      %570 = vmatprep.subr.bf16.mxu0 0
      %571 = vmatpush1.bf16.msra.mxu0 %v546
      %572 = vmatprep.subr.bf16.mxu0 0
      %573 = vmatpush1.bf16.msra.mxu0 %v545
      %574 = vmatprep.subr.bf16.mxu0 0
      %575 = vmatpush1.bf16.msra.mxu0 %v544
      %576 = vmatprep.subr.bf16.mxu0 0
      %577 = vmatpush2.bf16.msra.mxu0 0
      %578 = vmatprep.subr.bf16.mxu0 0
      %579 = vmatpush2.bf16.msra.mxu0 0
      %580 = vmatprep.subr.bf16.mxu0 0
      %581 = vmatpush2.bf16.msra.mxu0 0
      %582 = vmatprep.subr.bf16.mxu0 0
      %583 = vmatpush2.bf16.msra.mxu0 0
      %584 = vmatprep.subr.bf16.mxu0 0
      %585 = vmatpush2.bf16.msra.mxu0 0
      %586 = vmatprep.subr.bf16.mxu0 0
      %587 = vmatpush2.bf16.msra.mxu0 0
      %588 = vmatprep.subr.bf16.mxu0 0
      %589 = vmatpush2.bf16.msra.mxu0 0
      %590 = vmatprep.subr.bf16.mxu0 0
      %591 = vmatpush2.bf16.msra.mxu0 0
      %592 = vmatprep.mubr.bf16.mxu0 0
      %593 = vmatmul.mubr.bf16.gmra.mxu0 %v480
      %v594 = vpop.f32.mrf.mxu0
      %v595 = vadd.f32 %v414, %v594
      %v596 = vpop.f32.mrf.mxu0
      %v597 = vpop.f32.mrf.mxu0
      %v598 = vadd.f32 %v414, %v597
      %v599 = vpop.f32.mrf.mxu0
      %600 = vmatprep.mubr.bf16.mxu0 0
      %601 = vmatmul.mubr.bf16.gmra.mxu0 %v481
      %v602 = vpop.f32.mrf.mxu0
      %v603 = vadd.f32 %v414, %v602
      %v604 = vpop.f32.mrf.mxu0
      %v605 = vpop.f32.mrf.mxu0
      %v606 = vadd.f32 %v414, %v605
      %v607 = vpop.f32.mrf.mxu0
      %608 = vmatprep.mubr.bf16.mxu0 0
      %609 = vmatmul.mubr.bf16.gmra.mxu0 %v482
      %v610 = vpop.f32.mrf.mxu0
      %v611 = vadd.f32 %v414, %v610
      %v612 = vpop.f32.mrf.mxu0
      %v613 = vpop.f32.mrf.mxu0
      %v614 = vadd.f32 %v414, %v613
      %v615 = vpop.f32.mrf.mxu0
      %616 = vmatprep.mubr.bf16.mxu0 0
      %617 = vmatmul.mubr.bf16.gmra.mxu0 %v483
      %v618 = vpop.f32.mrf.mxu0
      %v619 = vadd.f32 %v414, %v618
      %v620 = vpop.f32.mrf.mxu0
      %v621 = vpop.f32.mrf.mxu0
      %v622 = vadd.f32 %v414, %v621
      %v623 = vpop.f32.mrf.mxu0
      %624 = vmatprep.mubr.bf16.mxu0 0
      %625 = vmatmul.mubr.bf16.gmra.mxu0 %v484
      %v626 = vpop.f32.mrf.mxu0
      %v627 = vadd.f32 %v414, %v626
      %v628 = vpop.f32.mrf.mxu0
      %v629 = vpop.f32.mrf.mxu0
      %v630 = vadd.f32 %v414, %v629
      %v631 = vpop.f32.mrf.mxu0
      %632 = vmatprep.mubr.bf16.mxu0 0
      %633 = vmatmul.mubr.bf16.gmra.mxu0 %v485
      %v634 = vpop.f32.mrf.mxu0
      %v635 = vadd.f32 %v414, %v634
      %v636 = vpop.f32.mrf.mxu0
      %v637 = vpop.f32.mrf.mxu0
      %v638 = vadd.f32 %v414, %v637
      %v639 = vpop.f32.mrf.mxu0
      %640 = vmatprep.mubr.bf16.mxu0 0
      %641 = vmatmul.mubr.bf16.gmra.mxu0 %v486
      %v642 = vpop.f32.mrf.mxu0
      %v643 = vadd.f32 %v414, %v642
      %v644 = vpop.f32.mrf.mxu0
      %v645 = vpop.f32.mrf.mxu0
      %v646 = vadd.f32 %v414, %v645
      %v647 = vpop.f32.mrf.mxu0
      %648 = vmatprep.mubr.bf16.mxu0 0
      %649 = vmatmul.mubr.bf16.gmra.mxu0 %v487
      %v650 = vpop.f32.mrf.mxu0
      %v651 = vadd.f32 %v414, %v650
      %v652 = vpop.f32.mrf.mxu0
      %v653 = vpop.f32.mrf.mxu0
      %v654 = vadd.f32 %v414, %v653
      %v655 = vpop.f32.mrf.mxu0
      %656 = vmatprep.mubr.bf16.mxu0 0
      %657 = vmatmul.mubr.bf16.gmra.mxu0 %v488
      %v658 = vpop.f32.mrf.mxu0
      %v659 = vadd.f32 %v414, %v658
      %v660 = vpop.f32.mrf.mxu0
      %v661 = vpop.f32.mrf.mxu0
      %v662 = vadd.f32 %v414, %v661
      %v663 = vpop.f32.mrf.mxu0
      %664 = vmatprep.mubr.bf16.mxu0 0
      %665 = vmatmul.mubr.bf16.gmra.mxu0 %v489
      %v666 = vpop.f32.mrf.mxu0
      %v667 = vadd.f32 %v414, %v666
      %v668 = vpop.f32.mrf.mxu0
      %v669 = vpop.f32.mrf.mxu0
      %v670 = vadd.f32 %v414, %v669
      %v671 = vpop.f32.mrf.mxu0
      %672 = vmatprep.mubr.bf16.mxu0 0
      %673 = vmatmul.mubr.bf16.gmra.mxu0 %v490
      %v674 = vpop.f32.mrf.mxu0
      %v675 = vadd.f32 %v414, %v674
      %v676 = vpop.f32.mrf.mxu0
      %v677 = vpop.f32.mrf.mxu0
      %v678 = vadd.f32 %v414, %v677
      %v679 = vpop.f32.mrf.mxu0
      %680 = vmatprep.mubr.bf16.mxu0 0
      %681 = vmatmul.mubr.bf16.gmra.mxu0 %v491
      %v682 = vpop.f32.mrf.mxu0
      %v683 = vadd.f32 %v414, %v682
      %v684 = vpop.f32.mrf.mxu0
      %v685 = vpop.f32.mrf.mxu0
      %v686 = vadd.f32 %v414, %v685
      %v687 = vpop.f32.mrf.mxu0
      %688 = vmatprep.mubr.bf16.mxu0 0
      %689 = vmatmul.mubr.bf16.gmra.mxu0 %v492
      %v690 = vpop.f32.mrf.mxu0
      %v691 = vadd.f32 %v414, %v690
      %v692 = vpop.f32.mrf.mxu0
      %v693 = vpop.f32.mrf.mxu0
      %v694 = vadd.f32 %v414, %v693
      %v695 = vpop.f32.mrf.mxu0
      %696 = vmatprep.mubr.bf16.mxu0 0
      %697 = vmatmul.mubr.bf16.gmra.mxu0 %v493
      %v698 = vpop.f32.mrf.mxu0
      %v699 = vadd.f32 %v414, %v698
      %v700 = vpop.f32.mrf.mxu0
      %v701 = vpop.f32.mrf.mxu0
      %v702 = vadd.f32 %v414, %v701
      %v703 = vpop.f32.mrf.mxu0
      %704 = vmatprep.mubr.bf16.mxu0 0
      %705 = vmatmul.mubr.bf16.gmra.mxu0 %v494
      %v706 = vpop.f32.mrf.mxu0
      %v707 = vadd.f32 %v414, %v706
      %v708 = vpop.f32.mrf.mxu0
      %v709 = vpop.f32.mrf.mxu0
      %v710 = vadd.f32 %v414, %v709
      %v711 = vpop.f32.mrf.mxu0
      %712 = vmatprep.mubr.bf16.mxu0 0
      %713 = vmatmul.mubr.bf16.gmra.mxu0 %v495
      %v714 = vpop.f32.mrf.mxu0
      %v715 = vadd.f32 %v414, %v714
      %v716 = vpop.f32.mrf.mxu0
      %v717 = vpop.f32.mrf.mxu0
      %v718 = vadd.f32 %v414, %v717
      %v719 = vpop.f32.mrf.mxu0
      %720 = vdwg.mxu0
      %v721 = vmax.f32 %v595, 0.0
      %v722 = vmax.f32 %v598, 0.0
      %v723 = vmax.f32 %v603, 0.0
      %v724 = vmax.f32 %v606, 0.0
      %v725 = vmax.f32 %v611, 0.0
      %v726 = vmax.f32 %v614, 0.0
      %v727 = vmax.f32 %v619, 0.0
      %v728 = vmax.f32 %v622, 0.0
      %v729 = vmax.f32 %v627, 0.0
      %v730 = vmax.f32 %v630, 0.0
      %v731 = vmax.f32 %v635, 0.0
      %v732 = vmax.f32 %v638, 0.0
      %v733 = vmax.f32 %v643, 0.0
      %v734 = vmax.f32 %v646, 0.0
      %v735 = vmax.f32 %v651, 0.0
      %v736 = vmax.f32 %v654, 0.0
      %v737 = vmax.f32 %v659, 0.0
      %v738 = vmax.f32 %v662, 0.0
      %v739 = vmax.f32 %v667, 0.0
      %v740 = vmax.f32 %v670, 0.0
      %v741 = vmax.f32 %v675, 0.0
      %v742 = vmax.f32 %v678, 0.0
      %v743 = vmax.f32 %v683, 0.0
      %v744 = vmax.f32 %v686, 0.0
      %v745 = vmax.f32 %v691, 0.0
      %v746 = vmax.f32 %v694, 0.0
      %v747 = vmax.f32 %v699, 0.0
      %v748 = vmax.f32 %v702, 0.0
      %v749 = vmax.f32 %v707, 0.0
      %v750 = vmax.f32 %v710, 0.0
      %v751 = vmax.f32 %v715, 0.0
      %v752 = vmax.f32 %v718, 0.0
      %v753 = vpack.c.bf16 %v722, %v721
      %v754 = vpack.c.bf16 %v724, %v723
      %v755 = vpack.c.bf16 %v726, %v725
      %v756 = vpack.c.bf16 %v728, %v727
      %v757 = vpack.c.bf16 %v730, %v729
      %v758 = vpack.c.bf16 %v732, %v731
      %v759 = vpack.c.bf16 %v734, %v733
      %v760 = vpack.c.bf16 %v736, %v735
      %v761 = vpack.c.bf16 %v738, %v737
      %v762 = vpack.c.bf16 %v740, %v739
      %v763 = vpack.c.bf16 %v742, %v741
      %v764 = vpack.c.bf16 %v744, %v743
      %v765 = vpack.c.bf16 %v746, %v745
      %v766 = vpack.c.bf16 %v748, %v747
      %v767 = vpack.c.bf16 %v750, %v749
      %v768 = vpack.c.bf16 %v752, %v751
      %v785 = vunpack.c.l.b16 %v753
      %v786 = vunpack.c.h.b16 %v753
      %v787 = vunpack.c.l.b16 %v754
      %v788 = vunpack.c.h.b16 %v754
      %v789 = vunpack.c.l.b16 %v755
      %v790 = vunpack.c.h.b16 %v755
      %v791 = vunpack.c.l.b16 %v756
      %v792 = vunpack.c.h.b16 %v756
      %v793 = vunpack.c.l.b16 %v757
      %v794 = vunpack.c.h.b16 %v757
      %v795 = vunpack.c.l.b16 %v758
      %v796 = vunpack.c.h.b16 %v758
      %v797 = vunpack.c.l.b16 %v759
      %v798 = vunpack.c.h.b16 %v759
      %v799 = vunpack.c.l.b16 %v760
      %v800 = vunpack.c.h.b16 %v760
      %v801 = vunpack.c.l.b16 %v761
      %v802 = vunpack.c.h.b16 %v761
      %v803 = vunpack.c.l.b16 %v762
      %v804 = vunpack.c.h.b16 %v762
      %v805 = vunpack.c.l.b16 %v763
      %v806 = vunpack.c.h.b16 %v763
      %v807 = vunpack.c.l.b16 %v764
      %v808 = vunpack.c.h.b16 %v764
      %v809 = vunpack.c.l.b16 %v765
      %v810 = vunpack.c.h.b16 %v765
      %v811 = vunpack.c.l.b16 %v766
      %v812 = vunpack.c.h.b16 %v766
      %v813 = vunpack.c.l.b16 %v767
      %v814 = vunpack.c.h.b16 %v767
      %v815 = vunpack.c.l.b16 %v768
      %v816 = vunpack.c.h.b16 %v768
      %v817 = vpack.c.b16 %v785, %v785
      %v818 = vpack.c.b16 %v786, %v786
      %v819 = vpack.c.b16 %v787, %v787
      %v820 = vpack.c.b16 %v788, %v788
      %v821 = vpack.c.b16 %v789, %v789
      %v822 = vpack.c.b16 %v790, %v790
      %v823 = vpack.c.b16 %v791, %v791
      %v824 = vpack.c.b16 %v792, %v792
      %v825 = vpack.c.b16 %v793, %v793
      %v826 = vpack.c.b16 %v794, %v794
      %v827 = vpack.c.b16 %v795, %v795
      %v828 = vpack.c.b16 %v796, %v796
      %v829 = vpack.c.b16 %v797, %v797
      %v830 = vpack.c.b16 %v798, %v798
      %v831 = vpack.c.b16 %v799, %v799
      %v832 = vpack.c.b16 %v800, %v800
      %v833 = vpack.c.b16 %v801, %v801
      %v834 = vpack.c.b16 %v802, %v802
      %v835 = vpack.c.b16 %v803, %v803
      %v836 = vpack.c.b16 %v804, %v804
      %v837 = vpack.c.b16 %v805, %v805
      %v838 = vpack.c.b16 %v806, %v806
      %v839 = vpack.c.b16 %v807, %v807
      %v840 = vpack.c.b16 %v808, %v808
      %v841 = vpack.c.b16 %v809, %v809
      %v842 = vpack.c.b16 %v810, %v810
      %v843 = vpack.c.b16 %v811, %v811
      %v844 = vpack.c.b16 %v812, %v812
      %v845 = vpack.c.b16 %v813, %v813
      %v846 = vpack.c.b16 %v814, %v814
      %v847 = vpack.c.b16 %v815, %v815
      %v848 = vpack.c.b16 %v816, %v816
      %vm849 = vsmask.f32 256
      %vm850 = vsmask.f32 4368
      %vm851 = vmor %vm849, %vm850
      %v853 = vshrl.u32 %v817, 16
      %v855 = vrot.slane %v853, 7
      %v856 = vshll.u32 %v817, 16
      %v858 = vor.u32 %v855, %v856
      %v859 = vrot.slane %v855, 4
      %v861 = vshrl.u32 %v818, 16
      %v863 = vrot.slane %v861, 7
      %v864 = vshll.u32 %v818, 16
      %v866 = vor.u32 %v863, %v864
      %v867 = vsel %vm851, %v859, %v866
      %v868 = vrot.slane %v863, 4
      %v870 = vshrl.u32 %v819, 16
      %v872 = vrot.slane %v870, 7
      %v873 = vshll.u32 %v819, 16
      %v875 = vor.u32 %v872, %v873
      %v876 = vrot.slane %v872, 4
      %v878 = vshrl.u32 %v820, 16
      %v880 = vrot.slane %v878, 7
      %v881 = vshll.u32 %v820, 16
      %v883 = vor.u32 %v880, %v881
      %v884 = vsel %vm851, %v876, %v883
      %v885 = vrot.slane %v880, 4
      %v887 = vshrl.u32 %v821, 16
      %v889 = vrot.slane %v887, 7
      %v890 = vshll.u32 %v821, 16
      %v892 = vor.u32 %v889, %v890
      %v893 = vrot.slane %v889, 4
      %v895 = vshrl.u32 %v822, 16
      %v897 = vrot.slane %v895, 7
      %v898 = vshll.u32 %v822, 16
      %v900 = vor.u32 %v897, %v898
      %v901 = vsel %vm851, %v893, %v900
      %v902 = vrot.slane %v897, 4
      %v904 = vshrl.u32 %v823, 16
      %v906 = vrot.slane %v904, 7
      %v907 = vshll.u32 %v823, 16
      %v909 = vor.u32 %v906, %v907
      %v910 = vrot.slane %v906, 4
      %v912 = vshrl.u32 %v824, 16
      %v914 = vrot.slane %v912, 7
      %v915 = vshll.u32 %v824, 16
      %v917 = vor.u32 %v914, %v915
      %v918 = vsel %vm851, %v910, %v917
      %v919 = vrot.slane %v914, 4
      %v921 = vshrl.u32 %v825, 16
      %v923 = vrot.slane %v921, 7
      %v924 = vshll.u32 %v825, 16
      %v926 = vor.u32 %v923, %v924
      %v927 = vrot.slane %v923, 4
      %v929 = vshrl.u32 %v826, 16
      %v931 = vrot.slane %v929, 7
      %v932 = vshll.u32 %v826, 16
      %v934 = vor.u32 %v931, %v932
      %v935 = vsel %vm851, %v927, %v934
      %v936 = vrot.slane %v931, 4
      %v938 = vshrl.u32 %v827, 16
      %v940 = vrot.slane %v938, 7
      %v941 = vshll.u32 %v827, 16
      %v943 = vor.u32 %v940, %v941
      %v944 = vrot.slane %v940, 4
      %v946 = vshrl.u32 %v828, 16
      %v948 = vrot.slane %v946, 7
      %v949 = vshll.u32 %v828, 16
      %v951 = vor.u32 %v948, %v949
      %v952 = vsel %vm851, %v944, %v951
      %v953 = vrot.slane %v948, 4
      %v955 = vshrl.u32 %v829, 16
      %v957 = vrot.slane %v955, 7
      %v958 = vshll.u32 %v829, 16
      %v960 = vor.u32 %v957, %v958
      %v961 = vrot.slane %v957, 4
      %v963 = vshrl.u32 %v830, 16
      %v965 = vrot.slane %v963, 7
      %v966 = vshll.u32 %v830, 16
      %v968 = vor.u32 %v965, %v966
      %v969 = vsel %vm851, %v961, %v968
      %v970 = vrot.slane %v965, 4
      %v972 = vshrl.u32 %v831, 16
      %v974 = vrot.slane %v972, 7
      %v975 = vshll.u32 %v831, 16
      %v977 = vor.u32 %v974, %v975
      %v978 = vrot.slane %v974, 4
      %v980 = vshrl.u32 %v832, 16
      %v982 = vrot.slane %v980, 7
      %v983 = vshll.u32 %v832, 16
      %v985 = vor.u32 %v982, %v983
      %v986 = vsel %vm851, %v978, %v985
      %v987 = vrot.slane %v982, 4
      %v989 = vshrl.u32 %v833, 16
      %v991 = vrot.slane %v989, 7
      %v992 = vshll.u32 %v833, 16
      %v994 = vor.u32 %v991, %v992
      %v995 = vrot.slane %v991, 4
      %v997 = vshrl.u32 %v834, 16
      %v999 = vrot.slane %v997, 7
      %v1000 = vshll.u32 %v834, 16
      %v1002 = vor.u32 %v999, %v1000
      %v1003 = vsel %vm851, %v995, %v1002
      %v1004 = vrot.slane %v999, 4
      %v1006 = vshrl.u32 %v835, 16
      %v1008 = vrot.slane %v1006, 7
      %v1009 = vshll.u32 %v835, 16
      %v1011 = vor.u32 %v1008, %v1009
      %v1012 = vrot.slane %v1008, 4
      %v1014 = vshrl.u32 %v836, 16
      %v1016 = vrot.slane %v1014, 7
      %v1017 = vshll.u32 %v836, 16
      %v1019 = vor.u32 %v1016, %v1017
      %v1020 = vsel %vm851, %v1012, %v1019
      %v1021 = vrot.slane %v1016, 4
      %v1023 = vshrl.u32 %v837, 16
      %v1025 = vrot.slane %v1023, 7
      %v1026 = vshll.u32 %v837, 16
      %v1028 = vor.u32 %v1025, %v1026
      %v1029 = vrot.slane %v1025, 4
      %v1031 = vshrl.u32 %v838, 16
      %v1033 = vrot.slane %v1031, 7
      %v1034 = vshll.u32 %v838, 16
      %v1036 = vor.u32 %v1033, %v1034
      %v1037 = vsel %vm851, %v1029, %v1036
      %v1038 = vrot.slane %v1033, 4
      %v1040 = vshrl.u32 %v839, 16
      %v1042 = vrot.slane %v1040, 7
      %v1043 = vshll.u32 %v839, 16
      %v1045 = vor.u32 %v1042, %v1043
      %v1046 = vrot.slane %v1042, 4
      %v1048 = vshrl.u32 %v840, 16
      %v1050 = vrot.slane %v1048, 7
      %v1051 = vshll.u32 %v840, 16
      %v1053 = vor.u32 %v1050, %v1051
      %v1054 = vsel %vm851, %v1046, %v1053
      %v1055 = vrot.slane %v1050, 4
      %v1057 = vshrl.u32 %v841, 16
      %v1059 = vrot.slane %v1057, 7
      %v1060 = vshll.u32 %v841, 16
      %v1062 = vor.u32 %v1059, %v1060
      %v1063 = vrot.slane %v1059, 4
      %v1065 = vshrl.u32 %v842, 16
      %v1067 = vrot.slane %v1065, 7
      %v1068 = vshll.u32 %v842, 16
      %v1070 = vor.u32 %v1067, %v1068
      %v1071 = vsel %vm851, %v1063, %v1070
      %v1072 = vrot.slane %v1067, 4
      %v1074 = vshrl.u32 %v843, 16
      %v1076 = vrot.slane %v1074, 7
      %v1077 = vshll.u32 %v843, 16
      %v1079 = vor.u32 %v1076, %v1077
      %v1080 = vrot.slane %v1076, 4
      %v1082 = vshrl.u32 %v844, 16
      %v1084 = vrot.slane %v1082, 7
      %v1085 = vshll.u32 %v844, 16
      %v1087 = vor.u32 %v1084, %v1085
      %v1088 = vsel %vm851, %v1080, %v1087
      %v1089 = vrot.slane %v1084, 4
      %v1091 = vshrl.u32 %v845, 16
      %v1093 = vrot.slane %v1091, 7
      %v1094 = vshll.u32 %v845, 16
      %v1096 = vor.u32 %v1093, %v1094
      %v1097 = vrot.slane %v1093, 4
      %v1099 = vshrl.u32 %v846, 16
      %v1101 = vrot.slane %v1099, 7
      %v1102 = vshll.u32 %v846, 16
      %v1104 = vor.u32 %v1101, %v1102
      %v1105 = vsel %vm851, %v1097, %v1104
      %v1106 = vrot.slane %v1101, 4
      %v1108 = vshrl.u32 %v847, 16
      %v1110 = vrot.slane %v1108, 7
      %v1111 = vshll.u32 %v847, 16
      %v1113 = vor.u32 %v1110, %v1111
      %v1114 = vrot.slane %v1110, 4
      %v1116 = vshrl.u32 %v848, 16
      %v1118 = vrot.slane %v1116, 7
      %v1119 = vshll.u32 %v848, 16
      %v1121 = vor.u32 %v1118, %v1119
      %v1122 = vsel %vm851, %v1114, %v1121
      %v1123 = vrot.slane %v1118, 4
      %s1172 = scalar_lea.vmem [#allocation2], 12
      %vm1173 = vcmask 1043456
      %vm1174 = vsmask.f32 7938
      %vm1175 = vmand %vm1173, %vm1174
      %v1176 = vld [vmem:[%s1172] sm:$0xf]
      %v1177 = vsel %vm1175, %v858, %v1176
      %1178 = vst [vmem:[%s1172] sm:$0xf] %v1177
      %1179 = vst [vmem:[%s1172 + $0x4] sm:$0xf] %v867
      %vm1180 = vcmask 1040384
      %vm1181 = vmand %vm1180, %vm849
      %v1182 = vld [vmem:[%s1172 + $0x8] sm:$0x1]
      %v1183 = vsel %vm1181, %v868, %v1182
      %1184 = vst [vmem:[%s1172 + $0x8] sm:$0x1] %v1183
      %v1185 = vld [vmem:[%s1172 + $0xc] sm:$0xf]
      %v1186 = vsel %vm1175, %v875, %v1185
      %1187 = vst [vmem:[%s1172 + $0xc] sm:$0xf] %v1186
      %1188 = vst [vmem:[%s1172 + $0x10] sm:$0xf] %v884
      %v1189 = vld [vmem:[%s1172 + $0x14] sm:$0x1]
      %v1190 = vsel %vm1181, %v885, %v1189
      %1191 = vst [vmem:[%s1172 + $0x14] sm:$0x1] %v1190
      %v1192 = vld [vmem:[%s1172 + $0x18] sm:$0xf]
      %v1193 = vsel %vm1175, %v892, %v1192
      %1194 = vst [vmem:[%s1172 + $0x18] sm:$0xf] %v1193
      %1195 = vst [vmem:[%s1172 + $0x1c] sm:$0xf] %v901
      %v1196 = vld [vmem:[%s1172 + $0x20] sm:$0x1]
      %v1197 = vsel %vm1181, %v902, %v1196
      %1198 = vst [vmem:[%s1172 + $0x20] sm:$0x1] %v1197
      %v1199 = vld [vmem:[%s1172 + $0x24] sm:$0xf]
      %v1200 = vsel %vm1175, %v909, %v1199
      %1201 = vst [vmem:[%s1172 + $0x24] sm:$0xf] %v1200
      %1202 = vst [vmem:[%s1172 + $0x28] sm:$0xf] %v918
      %v1203 = vld [vmem:[%s1172 + $0x2c] sm:$0x1]
      %v1204 = vsel %vm1181, %v919, %v1203
      %1205 = vst [vmem:[%s1172 + $0x2c] sm:$0x1] %v1204
      %v1206 = vld [vmem:[%s1172 + $0x30] sm:$0xf]
      %v1207 = vsel %vm1175, %v926, %v1206
      %1208 = vst [vmem:[%s1172 + $0x30] sm:$0xf] %v1207
      %1209 = vst [vmem:[%s1172 + $0x34] sm:$0xf] %v935
      %v1210 = vld [vmem:[%s1172 + $0x38] sm:$0x1]
      %v1211 = vsel %vm1181, %v936, %v1210
      %1212 = vst [vmem:[%s1172 + $0x38] sm:$0x1] %v1211
      %v1213 = vld [vmem:[%s1172 + $0x3c] sm:$0xf]
      %v1214 = vsel %vm1175, %v943, %v1213
      %1215 = vst [vmem:[%s1172 + $0x3c] sm:$0xf] %v1214
      %1216 = vst [vmem:[%s1172 + $0x40] sm:$0xf] %v952
      %v1217 = vld [vmem:[%s1172 + $0x44] sm:$0x1]
      %v1218 = vsel %vm1181, %v953, %v1217
      %1219 = vst [vmem:[%s1172 + $0x44] sm:$0x1] %v1218
      %v1220 = vld [vmem:[%s1172 + $0x48] sm:$0xf]
      %v1221 = vsel %vm1175, %v960, %v1220
      %1222 = vst [vmem:[%s1172 + $0x48] sm:$0xf] %v1221
      %1223 = vst [vmem:[%s1172 + $0x4c] sm:$0xf] %v969
      %v1224 = vld [vmem:[%s1172 + $0x50] sm:$0x1]
      %v1225 = vsel %vm1181, %v970, %v1224
      %1226 = vst [vmem:[%s1172 + $0x50] sm:$0x1] %v1225
      %v1227 = vld [vmem:[%s1172 + $0x54] sm:$0xf]
      %v1228 = vsel %vm1175, %v977, %v1227
      %1229 = vst [vmem:[%s1172 + $0x54] sm:$0xf] %v1228
      %1230 = vst [vmem:[%s1172 + $0x58] sm:$0xf] %v986
      %v1231 = vld [vmem:[%s1172 + $0x5c] sm:$0x1]
      %v1232 = vsel %vm1181, %v987, %v1231
      %1233 = vst [vmem:[%s1172 + $0x5c] sm:$0x1] %v1232
      %v1234 = vld [vmem:[%s1172 + $0x60] sm:$0xf]
      %v1235 = vsel %vm1175, %v994, %v1234
      %1236 = vst [vmem:[%s1172 + $0x60] sm:$0xf] %v1235
      %1237 = vst [vmem:[%s1172 + $0x64] sm:$0xf] %v1003
      %v1238 = vld [vmem:[%s1172 + $0x68] sm:$0x1]
      %v1239 = vsel %vm1181, %v1004, %v1238
      %1240 = vst [vmem:[%s1172 + $0x68] sm:$0x1] %v1239
      %v1241 = vld [vmem:[%s1172 + $0x6c] sm:$0xf]
      %v1242 = vsel %vm1175, %v1011, %v1241
      %1243 = vst [vmem:[%s1172 + $0x6c] sm:$0xf] %v1242
      %1244 = vst [vmem:[%s1172 + $0x70] sm:$0xf] %v1020
      %v1245 = vld [vmem:[%s1172 + $0x74] sm:$0x1]
      %v1246 = vsel %vm1181, %v1021, %v1245
      %1247 = vst [vmem:[%s1172 + $0x74] sm:$0x1] %v1246
      %v1248 = vld [vmem:[%s1172 + $0x78] sm:$0xf]
      %v1249 = vsel %vm1175, %v1028, %v1248
      %1250 = vst [vmem:[%s1172 + $0x78] sm:$0xf] %v1249
      %1251 = vst [vmem:[%s1172 + $0x7c] sm:$0xf] %v1037
      %v1252 = vld [vmem:[%s1172 + $0x80] sm:$0x1]
      %v1253 = vsel %vm1181, %v1038, %v1252
      %1254 = vst [vmem:[%s1172 + $0x80] sm:$0x1] %v1253
      %v1255 = vld [vmem:[%s1172 + $0x84] sm:$0xf]
      %v1256 = vsel %vm1175, %v1045, %v1255
      %1257 = vst [vmem:[%s1172 + $0x84] sm:$0xf] %v1256
      %1258 = vst [vmem:[%s1172 + $0x88] sm:$0xf] %v1054
      %v1259 = vld [vmem:[%s1172 + $0x8c] sm:$0x1]
      %v1260 = vsel %vm1181, %v1055, %v1259
      %1261 = vst [vmem:[%s1172 + $0x8c] sm:$0x1] %v1260
      %v1262 = vld [vmem:[%s1172 + $0x90] sm:$0xf]
      %v1263 = vsel %vm1175, %v1062, %v1262
      %1264 = vst [vmem:[%s1172 + $0x90] sm:$0xf] %v1263
      %1265 = vst [vmem:[%s1172 + $0x94] sm:$0xf] %v1071
      %v1266 = vld [vmem:[%s1172 + $0x98] sm:$0x1]
      %v1267 = vsel %vm1181, %v1072, %v1266
      %1268 = vst [vmem:[%s1172 + $0x98] sm:$0x1] %v1267
      %v1269 = vld [vmem:[%s1172 + $0x9c] sm:$0xf]
      %v1270 = vsel %vm1175, %v1079, %v1269
      %1271 = vst [vmem:[%s1172 + $0x9c] sm:$0xf] %v1270
      %1272 = vst [vmem:[%s1172 + $0xa0] sm:$0xf] %v1088
      %v1273 = vld [vmem:[%s1172 + $0xa4] sm:$0x1]
      %v1274 = vsel %vm1181, %v1089, %v1273
      %1275 = vst [vmem:[%s1172 + $0xa4] sm:$0x1] %v1274
      %v1276 = vld [vmem:[%s1172 + $0xa8] sm:$0xf]
      %v1277 = vsel %vm1175, %v1096, %v1276
      %1278 = vst [vmem:[%s1172 + $0xa8] sm:$0xf] %v1277
      %1279 = vst [vmem:[%s1172 + $0xac] sm:$0xf] %v1105
      %v1280 = vld [vmem:[%s1172 + $0xb0] sm:$0x1]
      %v1281 = vsel %vm1181, %v1106, %v1280
      %1282 = vst [vmem:[%s1172 + $0xb0] sm:$0x1] %v1281
      %v1283 = vld [vmem:[%s1172 + $0xb4] sm:$0xf]
      %v1284 = vsel %vm1175, %v1113, %v1283
      %1285 = vst [vmem:[%s1172 + $0xb4] sm:$0xf] %v1284
      %1286 = vst [vmem:[%s1172 + $0xb8] sm:$0xf] %v1122
      %v1287 = vld [vmem:[%s1172 + $0xbc] sm:$0x1]
      %v1288 = vsel %vm1181, %v1123, %v1287
      %1289 = vst [vmem:[%s1172 + $0xbc] sm:$0x1] %v1288
      %v1290 = vld [vmem:[%s3] sm:$0xf]
      %v1291 = vld [vmem:[%s3 + $0x4] sm:$0xf]
      %v1292 = vld [vmem:[%s3 + $0x8] sm:$0xf]
      %v1293 = vld [vmem:[%s3 + $0xc] sm:$0xf]
      %v1294 = vld [vmem:[%s3 + $0x10] sm:$0xf]
      %v1295 = vld [vmem:[%s3 + $0x14] sm:$0xf]
      %v1296 = vld [vmem:[%s3 + $0x18] sm:$0xf]
      %v1297 = vld [vmem:[%s3 + $0x1c] sm:$0xf]
      %v1298 = vld [vmem:[%s3 + $0x20] sm:$0xf]
      %v1299 = vld [vmem:[%s3 + $0x24] sm:$0xf]
      %v1300 = vld [vmem:[%s3 + $0x28] sm:$0xf]
      %v1301 = vld [vmem:[%s3 + $0x2c] sm:$0xf]
      %v1302 = vld [vmem:[%s3 + $0x30] sm:$0xf]
      %v1303 = vld [vmem:[%s3 + $0x34] sm:$0xf]
      %v1304 = vld [vmem:[%s3 + $0x38] sm:$0xf]
      %v1305 = vld [vmem:[%s3 + $0x3c] sm:$0xf]
      %v1306 = vld [vmem:[%s3 + $0x40] sm:$0xf]
      %v1307 = vld [vmem:[%s3 + $0x44] sm:$0xf]
      %v1308 = vld [vmem:[%s3 + $0x48] sm:$0xf]
      %v1309 = vld [vmem:[%s3 + $0x4c] sm:$0xf]
      %v1310 = vld [vmem:[%s3 + $0x50] sm:$0xf]
      %v1311 = vld [vmem:[%s3 + $0x54] sm:$0xf]
      %v1312 = vld [vmem:[%s3 + $0x58] sm:$0xf]
      %v1313 = vld [vmem:[%s3 + $0x5c] sm:$0xf]
      %v1314 = vld [vmem:[%s3 + $0x60] sm:$0xf]
      %v1315 = vld [vmem:[%s3 + $0x64] sm:$0xf]
      %v1316 = vld [vmem:[%s3 + $0x68] sm:$0xf]
      %v1317 = vld [vmem:[%s3 + $0x6c] sm:$0xf]
      %v1318 = vld [vmem:[%s3 + $0x70] sm:$0xf]
      %v1319 = vld [vmem:[%s3 + $0x74] sm:$0xf]
      %v1320 = vld [vmem:[%s3 + $0x78] sm:$0xf]
      %v1321 = vld [vmem:[%s3 + $0x7c] sm:$0xf]
      %v1322 = vld [vmem:[%s3 + $0x80] sm:$0xf]
      %v1323 = vld [vmem:[%s3 + $0x84] sm:$0xf]
      %v1324 = vld [vmem:[%s3 + $0x88] sm:$0xf]
      %v1325 = vld [vmem:[%s3 + $0x8c] sm:$0xf]
      %v1326 = vld [vmem:[%s3 + $0x90] sm:$0xf]
      %v1327 = vld [vmem:[%s3 + $0x94] sm:$0xf]
      %v1328 = vld [vmem:[%s3 + $0x98] sm:$0xf]
      %v1329 = vld [vmem:[%s3 + $0x9c] sm:$0xf]
      %v1330 = vld [vmem:[%s3 + $0xa0] sm:$0xf]
      %v1331 = vld [vmem:[%s3 + $0xa4] sm:$0xf]
      %v1332 = vld [vmem:[%s3 + $0xa8] sm:$0xf]
      %v1333 = vld [vmem:[%s3 + $0xac] sm:$0xf]
      %v1334 = vld [vmem:[%s3 + $0xb0] sm:$0xf]
      %v1335 = vld [vmem:[%s3 + $0xb4] sm:$0xf]
      %v1336 = vld [vmem:[%s3 + $0xb8] sm:$0xf]
      %v1337 = vld [vmem:[%s3 + $0xbc] sm:$0xf]
      %v1338 = vld [vmem:[%s3 + $0xc0] sm:$0xf]
      %v1339 = vld [vmem:[%s3 + $0xc4] sm:$0xf]
      %v1340 = vld [vmem:[%s3 + $0xc8] sm:$0xf]
      %v1341 = vld [vmem:[%s3 + $0xcc] sm:$0xf]
      %v1342 = vld [vmem:[%s3 + $0xd0] sm:$0xf]
      %v1343 = vld [vmem:[%s3 + $0xd4] sm:$0xf]
      %v1344 = vld [vmem:[%s3 + $0xd8] sm:$0xf]
      %v1345 = vld [vmem:[%s3 + $0xdc] sm:$0xf]
      %v1346 = vld [vmem:[%s3 + $0xe0] sm:$0xf]
      %v1347 = vld [vmem:[%s3 + $0xe4] sm:$0xf]
      %v1348 = vld [vmem:[%s3 + $0xe8] sm:$0xf]
      %v1349 = vld [vmem:[%s3 + $0xec] sm:$0xf]
      %v1350 = vld [vmem:[%s3 + $0xf0] sm:$0xf]
      %v1351 = vld [vmem:[%s3 + $0xf4] sm:$0xf]
      %v1352 = vld [vmem:[%s3 + $0xf8] sm:$0xf]
      %v1353 = vld [vmem:[%s3 + $0xfc] sm:$0xf]
      %v1354 = vld [vmem:[%s3 + $0x100] sm:$0xf]
      %v1355 = vld [vmem:[%s3 + $0x104] sm:$0xf]
      %v1356 = vld [vmem:[%s3 + $0x108] sm:$0xf]
      %v1357 = vld [vmem:[%s3 + $0x10c] sm:$0xf]
      %v1358 = vld [vmem:[%s3 + $0x110] sm:$0xf]
      %v1359 = vld [vmem:[%s3 + $0x114] sm:$0xf]
      %v1360 = vld [vmem:[%s3 + $0x118] sm:$0xf]
      %v1361 = vld [vmem:[%s3 + $0x11c] sm:$0xf]
      %v1362 = vld [vmem:[%s3 + $0x120] sm:$0xf]
      %v1363 = vld [vmem:[%s3 + $0x124] sm:$0xf]
      %v1364 = vld [vmem:[%s3 + $0x128] sm:$0xf]
      %v1365 = vld [vmem:[%s3 + $0x12c] sm:$0xf]
      %v1366 = vld [vmem:[%s3 + $0x130] sm:$0xf]
      %v1367 = vld [vmem:[%s3 + $0x134] sm:$0xf]
      %v1368 = vld [vmem:[%s3 + $0x138] sm:$0xf]
      %v1369 = vld [vmem:[%s3 + $0x13c] sm:$0xf]
      %v1370 = vld [vmem:[%s3 + $0x140] sm:$0xf]
      %v1371 = vld [vmem:[%s3 + $0x144] sm:$0xf]
      %v1372 = vld [vmem:[%s3 + $0x148] sm:$0xf]
      %v1373 = vld [vmem:[%s3 + $0x14c] sm:$0xf]
      %v1374 = vld [vmem:[%s3 + $0x150] sm:$0xf]
      %v1375 = vld [vmem:[%s3 + $0x154] sm:$0xf]
      %v1376 = vld [vmem:[%s3 + $0x158] sm:$0xf]
      %v1377 = vld [vmem:[%s3 + $0x15c] sm:$0xf]
      %v1378 = vld [vmem:[%s3 + $0x160] sm:$0xf]
      %v1379 = vld [vmem:[%s3 + $0x164] sm:$0xf]
      %v1380 = vld [vmem:[%s3 + $0x168] sm:$0xf]
      %v1381 = vld [vmem:[%s3 + $0x16c] sm:$0xf]
      %v1382 = vld [vmem:[%s3 + $0x170] sm:$0xf]
      %v1383 = vld [vmem:[%s3 + $0x174] sm:$0xf]
      %v1384 = vld [vmem:[%s3 + $0x178] sm:$0xf]
      %v1385 = vld [vmem:[%s3 + $0x17c] sm:$0xf]
      %v1386 = vld [vmem:[%s3 + $0x180] sm:$0xf]
      %v1387 = vld [vmem:[%s3 + $0x184] sm:$0xf]
      %v1388 = vld [vmem:[%s3 + $0x188] sm:$0xf]
      %v1389 = vld [vmem:[%s3 + $0x18c] sm:$0xf]
      %v1390 = vld [vmem:[%s3 + $0x190] sm:$0xf]
      %v1391 = vld [vmem:[%s3 + $0x194] sm:$0xf]
      %v1392 = vld [vmem:[%s3 + $0x198] sm:$0xf]
      %v1393 = vld [vmem:[%s3 + $0x19c] sm:$0xf]
      %v1394 = vld [vmem:[%s3 + $0x1a0] sm:$0xf]
      %v1395 = vld [vmem:[%s3 + $0x1a4] sm:$0xf]
      %v1396 = vld [vmem:[%s3 + $0x1a8] sm:$0xf]
      %v1397 = vld [vmem:[%s3 + $0x1ac] sm:$0xf]
      %v1398 = vld [vmem:[%s3 + $0x1b0] sm:$0xf]
      %v1399 = vld [vmem:[%s3 + $0x1b4] sm:$0xf]
      %v1400 = vld [vmem:[%s3 + $0x1b8] sm:$0xf]
      %v1401 = vld [vmem:[%s3 + $0x1bc] sm:$0xf]
      %v1402 = vld [vmem:[%s3 + $0x1c0] sm:$0xf]
      %v1403 = vld [vmem:[%s3 + $0x1c4] sm:$0xf]
      %v1404 = vld [vmem:[%s3 + $0x1c8] sm:$0xf]
      %v1405 = vld [vmem:[%s3 + $0x1cc] sm:$0xf]
      %v1406 = vld [vmem:[%s3 + $0x1d0] sm:$0xf]
      %v1407 = vld [vmem:[%s3 + $0x1d4] sm:$0xf]
      %v1408 = vld [vmem:[%s3 + $0x1d8] sm:$0xf]
      %v1409 = vld [vmem:[%s3 + $0x1dc] sm:$0xf]
      %v1410 = vld [vmem:[%s3 + $0x1e0] sm:$0xf]
      %v1411 = vld [vmem:[%s3 + $0x1e4] sm:$0xf]
      %v1412 = vld [vmem:[%s3 + $0x1e8] sm:$0xf]
      %v1413 = vld [vmem:[%s3 + $0x1ec] sm:$0xf]
      %v1414 = vld [vmem:[%s3 + $0x1f0] sm:$0xf]
      %v1415 = vld [vmem:[%s3 + $0x1f4] sm:$0xf]
      %v1416 = vld [vmem:[%s3 + $0x1f8] sm:$0xf]
      %v1417 = vld [vmem:[%s3 + $0x1fc] sm:$0xf]
      %v1418 = vld [vmem:[%s3 + $0x200] sm:$0xf]
      %v1419 = vld [vmem:[%s3 + $0x204] sm:$0xf]
      %v1420 = vld [vmem:[%s3 + $0x208] sm:$0xf]
      %v1421 = vld [vmem:[%s3 + $0x20c] sm:$0xf]
      %v1422 = vld [vmem:[%s3 + $0x210] sm:$0xf]
      %v1423 = vld [vmem:[%s3 + $0x214] sm:$0xf]
      %v1424 = vld [vmem:[%s3 + $0x218] sm:$0xf]
      %v1425 = vld [vmem:[%s3 + $0x21c] sm:$0xf]
      %v1426 = vld [vmem:[%s3 + $0x220] sm:$0xf]
      %v1427 = vld [vmem:[%s3 + $0x224] sm:$0xf]
      %v1428 = vld [vmem:[%s3 + $0x228] sm:$0xf]
      %v1429 = vld [vmem:[%s3 + $0x22c] sm:$0xf]
      %v1430 = vld [vmem:[%s3 + $0x230] sm:$0xf]
      %v1431 = vld [vmem:[%s3 + $0x234] sm:$0xf]
      %v1432 = vld [vmem:[%s3 + $0x238] sm:$0xf]
      %v1433 = vld [vmem:[%s3 + $0x23c] sm:$0xf]
      %v1434 = vld [vmem:[%s4] sm:$0x1]
      %v1435 = vld [vmem:[%s5] sm:$0xf]
      %v1436 = vld [vmem:[%s5 + $0x4] sm:$0xf]
      %v1437 = vld [vmem:[%s5 + $0x8] sm:$0xf]
      %v1438 = vld [vmem:[%s5 + $0xc] sm:$0xf]
      %v1439 = vld [vmem:[%s5 + $0x10] sm:$0xf]
      %v1440 = vld [vmem:[%s5 + $0x14] sm:$0xf]
      %v1441 = vld [vmem:[%s5 + $0x18] sm:$0xf]
      %v1442 = vld [vmem:[%s5 + $0x1c] sm:$0xf]
      %v1443 = vld [vmem:[%s5 + $0x20] sm:$0xf]
      %v1444 = vld [vmem:[%s5 + $0x24] sm:$0xf]
      %v1445 = vld [vmem:[%s5 + $0x28] sm:$0xf]
      %v1446 = vld [vmem:[%s5 + $0x2c] sm:$0xf]
      %v1447 = vld [vmem:[%s5 + $0x30] sm:$0xf]
      %v1448 = vld [vmem:[%s5 + $0x34] sm:$0xf]
      %v1449 = vld [vmem:[%s5 + $0x38] sm:$0xf]
      %v1450 = vld [vmem:[%s5 + $0x3c] sm:$0xf]
      %v1451 = vld [vmem:[%s7] sm:$0x1]
      %v1452 = vld [vmem:[%s6] sm:$0xf]
      %v1453 = vld [vmem:[%s6 + $0x4] sm:$0xf]
      %v1454 = vld [vmem:[%s6 + $0x8] sm:$0xf]
      %v1455 = vld [vmem:[%s6 + $0xc] sm:$0xf]
      %v1456 = vld [vmem:[%s6 + $0x10] sm:$0xf]
      %v1457 = vld [vmem:[%s6 + $0x14] sm:$0xf]
      %v1458 = vld [vmem:[%s6 + $0x18] sm:$0xf]
      %v1459 = vld [vmem:[%s6 + $0x1c] sm:$0xf]
      %v1460 = vld [vmem:[%s6 + $0x20] sm:$0xf]
      %v1461 = vld [vmem:[%s6 + $0x24] sm:$0xf]
      %v1462 = vld [vmem:[%s6 + $0x28] sm:$0xf]
      %v1463 = vld [vmem:[%s6 + $0x2c] sm:$0xf]
      %v1464 = vld [vmem:[%s6 + $0x30] sm:$0xf]
      %v1465 = vld [vmem:[%s6 + $0x34] sm:$0xf]
      %v1466 = vld [vmem:[%s6 + $0x38] sm:$0xf]
      %v1467 = vld [vmem:[%s6 + $0x3c] sm:$0xf]
      %v1468 = vld [vmem:[#allocation2] sm:$0xf]
      %v1469 = vld [vmem:[#allocation2 + $0x4] sm:$0xf]
      %v1470 = vld [vmem:[#allocation2 + $0x8] sm:$0xf]
      %v1471 = vld [vmem:[#allocation2 + $0xc] sm:$0xf]
      %v1472 = vld [vmem:[#allocation2 + $0x10] sm:$0xf]
      %v1473 = vld [vmem:[#allocation2 + $0x14] sm:$0xf]
      %v1474 = vld [vmem:[#allocation2 + $0x18] sm:$0xf]
      %v1475 = vld [vmem:[#allocation2 + $0x1c] sm:$0xf]
      %v1476 = vld [vmem:[#allocation2 + $0x20] sm:$0xf]
      %v1477 = vld [vmem:[#allocation2 + $0x24] sm:$0xf]
      %v1478 = vld [vmem:[#allocation2 + $0x28] sm:$0xf]
      %v1479 = vld [vmem:[#allocation2 + $0x2c] sm:$0xf]
      %v1480 = vld [vmem:[#allocation2 + $0x30] sm:$0xf]
      %v1481 = vld [vmem:[#allocation2 + $0x34] sm:$0xf]
      %v1482 = vld [vmem:[#allocation2 + $0x38] sm:$0xf]
      %v1483 = vld [vmem:[#allocation2 + $0x3c] sm:$0xf]
      %v1484 = vld [vmem:[#allocation2 + $0x40] sm:$0xf]
      %v1485 = vld [vmem:[#allocation2 + $0x44] sm:$0xf]
      %v1486 = vld [vmem:[#allocation2 + $0x48] sm:$0xf]
      %v1487 = vld [vmem:[#allocation2 + $0x4c] sm:$0xf]
      %v1488 = vld [vmem:[#allocation2 + $0x50] sm:$0xf]
      %v1489 = vld [vmem:[#allocation2 + $0x54] sm:$0xf]
      %v1490 = vld [vmem:[#allocation2 + $0x58] sm:$0xf]
      %v1491 = vld [vmem:[#allocation2 + $0x5c] sm:$0xf]
      %v1492 = vld [vmem:[#allocation2 + $0x60] sm:$0xf]
      %v1493 = vld [vmem:[#allocation2 + $0x64] sm:$0xf]
      %v1494 = vld [vmem:[#allocation2 + $0x68] sm:$0xf]
      %v1495 = vld [vmem:[#allocation2 + $0x6c] sm:$0xf]
      %v1496 = vld [vmem:[#allocation2 + $0x70] sm:$0xf]
      %v1497 = vld [vmem:[#allocation2 + $0x74] sm:$0xf]
      %v1498 = vld [vmem:[#allocation2 + $0x78] sm:$0xf]
      %v1499 = vld [vmem:[#allocation2 + $0x7c] sm:$0xf]
      %v1500 = vld [vmem:[#allocation2 + $0x80] sm:$0xf]
      %v1501 = vld [vmem:[#allocation2 + $0x84] sm:$0xf]
      %v1502 = vld [vmem:[#allocation2 + $0x88] sm:$0xf]
      %v1503 = vld [vmem:[#allocation2 + $0x8c] sm:$0xf]
      %v1504 = vld [vmem:[#allocation2 + $0x90] sm:$0xf]
      %v1505 = vld [vmem:[#allocation2 + $0x94] sm:$0xf]
      %v1506 = vld [vmem:[#allocation2 + $0x98] sm:$0xf]
      %v1507 = vld [vmem:[#allocation2 + $0x9c] sm:$0xf]
      %v1508 = vld [vmem:[#allocation2 + $0xa0] sm:$0xf]
      %v1509 = vld [vmem:[#allocation2 + $0xa4] sm:$0xf]
      %v1510 = vld [vmem:[#allocation2 + $0xa8] sm:$0xf]
      %v1511 = vld [vmem:[#allocation2 + $0xac] sm:$0xf]
      %v1512 = vld [vmem:[#allocation2 + $0xb0] sm:$0xf]
      %v1513 = vld [vmem:[#allocation2 + $0xb4] sm:$0xf]
      %v1514 = vld [vmem:[#allocation2 + $0xb8] sm:$0xf]
      %v1515 = vld [vmem:[#allocation2 + $0xbc] sm:$0xf]
      %v1517 = vunpack.c.l.b16 %v1515
      %v1518 = vpack.c.b16 %v1517, %v1517
      %v1520 = vshrl.u32 %v1518, 16
      %v1522 = vrot.slane %v1520, 3
      %v1571 = vunpack.c.l.b16 %v1468
      %v1572 = vunpack.c.l.b16 %v1469
      %v1573 = vunpack.c.l.b16 %v1470
      %v1574 = vunpack.c.l.b16 %v1471
      %v1575 = vunpack.c.l.b16 %v1472
      %v1576 = vunpack.c.l.b16 %v1473
      %v1577 = vunpack.c.l.b16 %v1474
      %v1578 = vunpack.c.l.b16 %v1475
      %v1579 = vunpack.c.l.b16 %v1476
      %v1580 = vunpack.c.l.b16 %v1477
      %v1581 = vunpack.c.l.b16 %v1478
      %v1582 = vunpack.c.l.b16 %v1479
      %v1583 = vunpack.c.l.b16 %v1480
      %v1584 = vunpack.c.l.b16 %v1481
      %v1585 = vunpack.c.l.b16 %v1482
      %v1586 = vunpack.c.l.b16 %v1483
      %v1587 = vunpack.c.l.b16 %v1484
      %v1588 = vunpack.c.l.b16 %v1485
      %v1589 = vunpack.c.l.b16 %v1486
      %v1590 = vunpack.c.l.b16 %v1487
      %v1591 = vunpack.c.l.b16 %v1488
      %v1592 = vunpack.c.l.b16 %v1489
      %v1593 = vunpack.c.l.b16 %v1490
      %v1594 = vunpack.c.l.b16 %v1491
      %v1595 = vunpack.c.l.b16 %v1492
      %v1596 = vunpack.c.l.b16 %v1493
      %v1597 = vunpack.c.l.b16 %v1494
      %v1598 = vunpack.c.l.b16 %v1495
      %v1599 = vunpack.c.l.b16 %v1496
      %v1600 = vunpack.c.l.b16 %v1497
      %v1601 = vunpack.c.l.b16 %v1498
      %v1602 = vunpack.c.l.b16 %v1499
      %v1603 = vunpack.c.l.b16 %v1500
      %v1604 = vunpack.c.l.b16 %v1501
      %v1605 = vunpack.c.l.b16 %v1502
      %v1606 = vunpack.c.l.b16 %v1503
      %v1607 = vunpack.c.l.b16 %v1504
      %v1608 = vunpack.c.l.b16 %v1505
      %v1609 = vunpack.c.l.b16 %v1506
      %v1610 = vunpack.c.l.b16 %v1507
      %v1611 = vunpack.c.l.b16 %v1508
      %v1612 = vunpack.c.l.b16 %v1509
      %v1613 = vunpack.c.l.b16 %v1510
      %v1614 = vunpack.c.l.b16 %v1511
      %v1615 = vunpack.c.l.b16 %v1512
      %v1616 = vunpack.c.l.b16 %v1513
      %v1617 = vunpack.c.l.b16 %v1514
      %v1618 = vpack.c.b16 %v1572, %v1571
      %v1619 = vpack.c.b16 %v1574, %v1573
      %v1620 = vpack.c.b16 %v1576, %v1575
      %v1621 = vpack.c.b16 %v1578, %v1577
      %v1622 = vpack.c.b16 %v1580, %v1579
      %v1623 = vpack.c.b16 %v1582, %v1581
      %v1624 = vpack.c.b16 %v1584, %v1583
      %v1625 = vpack.c.b16 %v1586, %v1585
      %v1626 = vpack.c.b16 %v1588, %v1587
      %v1627 = vpack.c.b16 %v1590, %v1589
      %v1628 = vpack.c.b16 %v1592, %v1591
      %v1629 = vpack.c.b16 %v1594, %v1593
      %v1630 = vpack.c.b16 %v1596, %v1595
      %v1631 = vpack.c.b16 %v1598, %v1597
      %v1632 = vpack.c.b16 %v1600, %v1599
      %v1633 = vpack.c.b16 %v1602, %v1601
      %v1634 = vpack.c.b16 %v1604, %v1603
      %v1635 = vpack.c.b16 %v1606, %v1605
      %v1636 = vpack.c.b16 %v1608, %v1607
      %v1637 = vpack.c.b16 %v1610, %v1609
      %v1638 = vpack.c.b16 %v1612, %v1611
      %v1639 = vpack.c.b16 %v1614, %v1613
      %v1640 = vpack.c.b16 %v1616, %v1615
      %v1641 = vpack.c.b16 %v1517, %v1617
      %v1643 = vshrl.u32 %v1618, 16
      %v1645 = vrot.slane %v1643, 7
      %v1646 = vshll.u32 %v1618, 16
      %v1648 = vor.u32 %v1645, %v1646
      %v1650 = vshrl.u32 %v1619, 16
      %v1652 = vrot.slane %v1650, 7
      %v1653 = vshll.u32 %v1619, 16
      %v1655 = vor.u32 %v1652, %v1653
      %v1656 = vsel %vm849, %v1645, %v1655
      %v1658 = vshrl.u32 %v1620, 16
      %v1660 = vrot.slane %v1658, 7
      %v1661 = vshll.u32 %v1620, 16
      %v1663 = vor.u32 %v1660, %v1661
      %v1664 = vsel %vm849, %v1652, %v1663
      %v1666 = vshrl.u32 %v1621, 16
      %v1668 = vrot.slane %v1666, 7
      %v1669 = vshll.u32 %v1621, 16
      %v1671 = vor.u32 %v1668, %v1669
      %v1672 = vsel %vm849, %v1660, %v1671
      %v1674 = vshrl.u32 %v1622, 16
      %v1676 = vrot.slane %v1674, 7
      %v1677 = vshll.u32 %v1622, 16
      %v1679 = vor.u32 %v1676, %v1677
      %v1680 = vsel %vm849, %v1668, %v1679
      %v1682 = vshrl.u32 %v1623, 16
      %v1684 = vrot.slane %v1682, 7
      %v1685 = vshll.u32 %v1623, 16
      %v1687 = vor.u32 %v1684, %v1685
      %v1688 = vsel %vm849, %v1676, %v1687
      %v1690 = vshrl.u32 %v1624, 16
      %v1692 = vrot.slane %v1690, 7
      %v1693 = vshll.u32 %v1624, 16
      %v1695 = vor.u32 %v1692, %v1693
      %v1696 = vsel %vm849, %v1684, %v1695
      %v1698 = vshrl.u32 %v1625, 16
      %v1700 = vrot.slane %v1698, 7
      %v1701 = vshll.u32 %v1625, 16
      %v1703 = vor.u32 %v1700, %v1701
      %v1704 = vsel %vm849, %v1692, %v1703
      %v1706 = vshrl.u32 %v1626, 16
      %v1708 = vrot.slane %v1706, 7
      %v1709 = vshll.u32 %v1626, 16
      %v1711 = vor.u32 %v1708, %v1709
      %v1712 = vsel %vm849, %v1700, %v1711
      %v1714 = vshrl.u32 %v1627, 16
      %v1716 = vrot.slane %v1714, 7
      %v1717 = vshll.u32 %v1627, 16
      %v1719 = vor.u32 %v1716, %v1717
      %v1720 = vsel %vm849, %v1708, %v1719
      %v1722 = vshrl.u32 %v1628, 16
      %v1724 = vrot.slane %v1722, 7
      %v1725 = vshll.u32 %v1628, 16
      %v1727 = vor.u32 %v1724, %v1725
      %v1728 = vsel %vm849, %v1716, %v1727
      %v1730 = vshrl.u32 %v1629, 16
      %v1732 = vrot.slane %v1730, 7
      %v1733 = vshll.u32 %v1629, 16
      %v1735 = vor.u32 %v1732, %v1733
      %v1736 = vsel %vm849, %v1724, %v1735
      %v1738 = vshrl.u32 %v1630, 16
      %v1740 = vrot.slane %v1738, 7
      %v1741 = vshll.u32 %v1630, 16
      %v1743 = vor.u32 %v1740, %v1741
      %v1744 = vsel %vm849, %v1732, %v1743
      %v1746 = vshrl.u32 %v1631, 16
      %v1748 = vrot.slane %v1746, 7
      %v1749 = vshll.u32 %v1631, 16
      %v1751 = vor.u32 %v1748, %v1749
      %v1752 = vsel %vm849, %v1740, %v1751
      %v1754 = vshrl.u32 %v1632, 16
      %v1756 = vrot.slane %v1754, 7
      %v1757 = vshll.u32 %v1632, 16
      %v1759 = vor.u32 %v1756, %v1757
      %v1760 = vsel %vm849, %v1748, %v1759
      %v1762 = vshrl.u32 %v1633, 16
      %v1764 = vrot.slane %v1762, 7
      %v1765 = vshll.u32 %v1633, 16
      %v1767 = vor.u32 %v1764, %v1765
      %v1768 = vsel %vm849, %v1756, %v1767
      %v1770 = vshrl.u32 %v1634, 16
      %v1772 = vrot.slane %v1770, 7
      %v1773 = vshll.u32 %v1634, 16
      %v1775 = vor.u32 %v1772, %v1773
      %v1776 = vsel %vm849, %v1764, %v1775
      %v1778 = vshrl.u32 %v1635, 16
      %v1780 = vrot.slane %v1778, 7
      %v1781 = vshll.u32 %v1635, 16
      %v1783 = vor.u32 %v1780, %v1781
      %v1784 = vsel %vm849, %v1772, %v1783
      %v1786 = vshrl.u32 %v1636, 16
      %v1788 = vrot.slane %v1786, 7
      %v1789 = vshll.u32 %v1636, 16
      %v1791 = vor.u32 %v1788, %v1789
      %v1792 = vsel %vm849, %v1780, %v1791
      %v1794 = vshrl.u32 %v1637, 16
      %v1796 = vrot.slane %v1794, 7
      %v1797 = vshll.u32 %v1637, 16
      %v1799 = vor.u32 %v1796, %v1797
      %v1800 = vsel %vm849, %v1788, %v1799
      %v1802 = vshrl.u32 %v1638, 16
      %v1804 = vrot.slane %v1802, 7
      %v1805 = vshll.u32 %v1638, 16
      %v1807 = vor.u32 %v1804, %v1805
      %v1808 = vsel %vm849, %v1796, %v1807
      %v1810 = vshrl.u32 %v1639, 16
      %v1812 = vrot.slane %v1810, 7
      %v1813 = vshll.u32 %v1639, 16
      %v1815 = vor.u32 %v1812, %v1813
      %v1816 = vsel %vm849, %v1804, %v1815
      %v1818 = vshrl.u32 %v1640, 16
      %v1820 = vrot.slane %v1818, 7
      %v1821 = vshll.u32 %v1640, 16
      %v1823 = vor.u32 %v1820, %v1821
      %v1824 = vsel %vm849, %v1812, %v1823
      %v1826 = vshrl.u32 %v1641, 16
      %v1828 = vrot.slane %v1826, 7
      %v1829 = vshll.u32 %v1641, 16
      %v1831 = vor.u32 %v1828, %v1829
      %v1832 = vsel %vm849, %v1820, %v1831
      %v1857 = vsel %vm1181, %v1522, %v1648
      %vm1858 = vsmask.f32 7424
      %v1859 = vrot.slane %v1646, 1
      %v1860 = vor.u32 %v1643, %v1859
      %v1861 = vrot.slane %v1653, 1
      %v1862 = vsel %vm1858, %v1860, %v1861
      %v1863 = vor.u32 %v1650, %v1861
      %v1864 = vrot.slane %v1661, 1
      %v1865 = vsel %vm1858, %v1863, %v1864
      %v1866 = vor.u32 %v1658, %v1864
      %v1867 = vrot.slane %v1669, 1
      %v1868 = vsel %vm1858, %v1866, %v1867
      %v1869 = vor.u32 %v1666, %v1867
      %v1870 = vrot.slane %v1677, 1
      %v1871 = vsel %vm1858, %v1869, %v1870
      %v1872 = vor.u32 %v1674, %v1870
      %v1873 = vrot.slane %v1685, 1
      %v1874 = vsel %vm1858, %v1872, %v1873
      %v1875 = vor.u32 %v1682, %v1873
      %v1876 = vrot.slane %v1693, 1
      %v1877 = vsel %vm1858, %v1875, %v1876
      %v1878 = vor.u32 %v1690, %v1876
      %v1879 = vrot.slane %v1701, 1
      %v1880 = vsel %vm1858, %v1878, %v1879
      %v1881 = vor.u32 %v1698, %v1879
      %v1882 = vrot.slane %v1709, 1
      %v1883 = vsel %vm1858, %v1881, %v1882
      %v1884 = vor.u32 %v1706, %v1882
      %v1885 = vrot.slane %v1717, 1
      %v1886 = vsel %vm1858, %v1884, %v1885
      %v1887 = vor.u32 %v1714, %v1885
      %v1888 = vrot.slane %v1725, 1
      %v1889 = vsel %vm1858, %v1887, %v1888
      %v1890 = vor.u32 %v1722, %v1888
      %v1891 = vrot.slane %v1733, 1
      %v1892 = vsel %vm1858, %v1890, %v1891
      %v1893 = vor.u32 %v1730, %v1891
      %v1894 = vrot.slane %v1741, 1
      %v1895 = vsel %vm1858, %v1893, %v1894
      %v1896 = vor.u32 %v1738, %v1894
      %v1897 = vrot.slane %v1749, 1
      %v1898 = vsel %vm1858, %v1896, %v1897
      %v1899 = vor.u32 %v1746, %v1897
      %v1900 = vrot.slane %v1757, 1
      %v1901 = vsel %vm1858, %v1899, %v1900
      %v1902 = vor.u32 %v1754, %v1900
      %v1903 = vrot.slane %v1765, 1
      %v1904 = vsel %vm1858, %v1902, %v1903
      %v1905 = vor.u32 %v1762, %v1903
      %v1906 = vrot.slane %v1773, 1
      %v1907 = vsel %vm1858, %v1905, %v1906
      %v1908 = vor.u32 %v1770, %v1906
      %v1909 = vrot.slane %v1781, 1
      %v1910 = vsel %vm1858, %v1908, %v1909
      %v1911 = vor.u32 %v1778, %v1909
      %v1912 = vrot.slane %v1789, 1
      %v1913 = vsel %vm1858, %v1911, %v1912
      %v1914 = vor.u32 %v1786, %v1912
      %v1915 = vrot.slane %v1797, 1
      %v1916 = vsel %vm1858, %v1914, %v1915
      %v1917 = vor.u32 %v1794, %v1915
      %v1918 = vrot.slane %v1805, 1
      %v1919 = vsel %vm1858, %v1917, %v1918
      %v1920 = vor.u32 %v1802, %v1918
      %v1921 = vrot.slane %v1813, 1
      %v1922 = vsel %vm1858, %v1920, %v1921
      %v1923 = vor.u32 %v1810, %v1921
      %v1924 = vrot.slane %v1821, 1
      %v1925 = vsel %vm1858, %v1923, %v1924
      %v1926 = vor.u32 %v1818, %v1924
      %v1927 = vrot.slane %v1829, 1
      %v1928 = vsel %vm1858, %v1926, %v1927
      %v1929 = vor.u32 %v1826, %v1927
      %v1954 = vpack.c.b16 %v1571, %v1571
      %v1956 = vshll.u32 %v1954, 16
      %v1958 = vrot.slane %v1956, 1
      %vm1960 = vcmask 1047552
      %vm1961 = vmand %vm1960, %vm1858
      %v1962 = vsel %vm1961, %v1929, %v1958
      %v1963 = vld [vmem:[%s1172] sm:$0xf]
      %v1964 = vld [vmem:[%s1172 + $0x4] sm:$0xf]
      %v1965 = vld [vmem:[%s1172 + $0x8] sm:$0xf]
      %v1966 = vld [vmem:[%s1172 + $0xc] sm:$0xf]
      %v1967 = vld [vmem:[%s1172 + $0x10] sm:$0xf]
      %v1968 = vld [vmem:[%s1172 + $0x14] sm:$0xf]
      %v1969 = vld [vmem:[%s1172 + $0x18] sm:$0xf]
      %v1970 = vld [vmem:[%s1172 + $0x1c] sm:$0xf]
      %v1971 = vld [vmem:[%s1172 + $0x20] sm:$0xf]
      %v1972 = vld [vmem:[%s1172 + $0x24] sm:$0xf]
      %v1973 = vld [vmem:[%s1172 + $0x28] sm:$0xf]
      %v1974 = vld [vmem:[%s1172 + $0x2c] sm:$0xf]
      %v1975 = vld [vmem:[%s1172 + $0x30] sm:$0xf]
      %v1976 = vld [vmem:[%s1172 + $0x34] sm:$0xf]
      %v1977 = vld [vmem:[%s1172 + $0x38] sm:$0xf]
      %v1978 = vld [vmem:[%s1172 + $0x3c] sm:$0xf]
      %v1979 = vld [vmem:[%s1172 + $0x40] sm:$0xf]
      %v1980 = vld [vmem:[%s1172 + $0x44] sm:$0xf]
      %v1981 = vld [vmem:[%s1172 + $0x48] sm:$0xf]
      %v1982 = vld [vmem:[%s1172 + $0x4c] sm:$0xf]
      %v1983 = vld [vmem:[%s1172 + $0x50] sm:$0xf]
      %v1984 = vld [vmem:[%s1172 + $0x54] sm:$0xf]
      %v1985 = vld [vmem:[%s1172 + $0x58] sm:$0xf]
      %v1986 = vld [vmem:[%s1172 + $0x5c] sm:$0xf]
      %v1987 = vld [vmem:[%s1172 + $0x60] sm:$0xf]
      %v1988 = vld [vmem:[%s1172 + $0x64] sm:$0xf]
      %v1989 = vld [vmem:[%s1172 + $0x68] sm:$0xf]
      %v1990 = vld [vmem:[%s1172 + $0x6c] sm:$0xf]
      %v1991 = vld [vmem:[%s1172 + $0x70] sm:$0xf]
      %v1992 = vld [vmem:[%s1172 + $0x74] sm:$0xf]
      %v1993 = vld [vmem:[%s1172 + $0x78] sm:$0xf]
      %v1994 = vld [vmem:[%s1172 + $0x7c] sm:$0xf]
      %v1995 = vld [vmem:[%s1172 + $0x80] sm:$0xf]
      %v1996 = vld [vmem:[%s1172 + $0x84] sm:$0xf]
      %v1997 = vld [vmem:[%s1172 + $0x88] sm:$0xf]
      %v1998 = vld [vmem:[%s1172 + $0x8c] sm:$0xf]
      %v1999 = vld [vmem:[%s1172 + $0x90] sm:$0xf]
      %v2000 = vld [vmem:[%s1172 + $0x94] sm:$0xf]
      %v2001 = vld [vmem:[%s1172 + $0x98] sm:$0xf]
      %v2002 = vld [vmem:[%s1172 + $0x9c] sm:$0xf]
      %v2003 = vld [vmem:[%s1172 + $0xa0] sm:$0xf]
      %v2004 = vld [vmem:[%s1172 + $0xa4] sm:$0xf]
      %v2005 = vld [vmem:[%s1172 + $0xa8] sm:$0xf]
      %v2006 = vld [vmem:[%s1172 + $0xac] sm:$0xf]
      %v2007 = vld [vmem:[%s1172 + $0xb0] sm:$0xf]
      %v2008 = vld [vmem:[%s1172 + $0xb4] sm:$0xf]
      %v2009 = vld [vmem:[%s1172 + $0xb8] sm:$0xf]
      %v2010 = vld [vmem:[%s1172 + $0xbc] sm:$0xf]
      %v2012 = vunpack.c.l.b16 %v2010
      %v2013 = vpack.c.b16 %v2012, %v2012
      %v2015 = vshrl.u32 %v2013, 16
      %v2017 = vrot.slane %v2015, 3
      %v2066 = vunpack.c.l.b16 %v1963
      %v2067 = vunpack.c.l.b16 %v1964
      %v2068 = vunpack.c.l.b16 %v1965
      %v2069 = vunpack.c.l.b16 %v1966
      %v2070 = vunpack.c.l.b16 %v1967
      %v2071 = vunpack.c.l.b16 %v1968
      %v2072 = vunpack.c.l.b16 %v1969
      %v2073 = vunpack.c.l.b16 %v1970
      %v2074 = vunpack.c.l.b16 %v1971
      %v2075 = vunpack.c.l.b16 %v1972
      %v2076 = vunpack.c.l.b16 %v1973
      %v2077 = vunpack.c.l.b16 %v1974
      %v2078 = vunpack.c.l.b16 %v1975
      %v2079 = vunpack.c.l.b16 %v1976
      %v2080 = vunpack.c.l.b16 %v1977
      %v2081 = vunpack.c.l.b16 %v1978
      %v2082 = vunpack.c.l.b16 %v1979
      %v2083 = vunpack.c.l.b16 %v1980
      %v2084 = vunpack.c.l.b16 %v1981
      %v2085 = vunpack.c.l.b16 %v1982
      %v2086 = vunpack.c.l.b16 %v1983
      %v2087 = vunpack.c.l.b16 %v1984
      %v2088 = vunpack.c.l.b16 %v1985
      %v2089 = vunpack.c.l.b16 %v1986
      %v2090 = vunpack.c.l.b16 %v1987
      %v2091 = vunpack.c.l.b16 %v1988
      %v2092 = vunpack.c.l.b16 %v1989
      %v2093 = vunpack.c.l.b16 %v1990
      %v2094 = vunpack.c.l.b16 %v1991
      %v2095 = vunpack.c.l.b16 %v1992
      %v2096 = vunpack.c.l.b16 %v1993
      %v2097 = vunpack.c.l.b16 %v1994
      %v2098 = vunpack.c.l.b16 %v1995
      %v2099 = vunpack.c.l.b16 %v1996
      %v2100 = vunpack.c.l.b16 %v1997
      %v2101 = vunpack.c.l.b16 %v1998
      %v2102 = vunpack.c.l.b16 %v1999
      %v2103 = vunpack.c.l.b16 %v2000
      %v2104 = vunpack.c.l.b16 %v2001
      %v2105 = vunpack.c.l.b16 %v2002
      %v2106 = vunpack.c.l.b16 %v2003
      %v2107 = vunpack.c.l.b16 %v2004
      %v2108 = vunpack.c.l.b16 %v2005
      %v2109 = vunpack.c.l.b16 %v2006
      %v2110 = vunpack.c.l.b16 %v2007
      %v2111 = vunpack.c.l.b16 %v2008
      %v2112 = vunpack.c.l.b16 %v2009
      %v2113 = vpack.c.b16 %v2067, %v2066
      %v2114 = vpack.c.b16 %v2069, %v2068
      %v2115 = vpack.c.b16 %v2071, %v2070
      %v2116 = vpack.c.b16 %v2073, %v2072
      %v2117 = vpack.c.b16 %v2075, %v2074
      %v2118 = vpack.c.b16 %v2077, %v2076
      %v2119 = vpack.c.b16 %v2079, %v2078
      %v2120 = vpack.c.b16 %v2081, %v2080
      %v2121 = vpack.c.b16 %v2083, %v2082
      %v2122 = vpack.c.b16 %v2085, %v2084
      %v2123 = vpack.c.b16 %v2087, %v2086
      %v2124 = vpack.c.b16 %v2089, %v2088
      %v2125 = vpack.c.b16 %v2091, %v2090
      %v2126 = vpack.c.b16 %v2093, %v2092
      %v2127 = vpack.c.b16 %v2095, %v2094
      %v2128 = vpack.c.b16 %v2097, %v2096
      %v2129 = vpack.c.b16 %v2099, %v2098
      %v2130 = vpack.c.b16 %v2101, %v2100
      %v2131 = vpack.c.b16 %v2103, %v2102
      %v2132 = vpack.c.b16 %v2105, %v2104
      %v2133 = vpack.c.b16 %v2107, %v2106
      %v2134 = vpack.c.b16 %v2109, %v2108
      %v2135 = vpack.c.b16 %v2111, %v2110
      %v2136 = vpack.c.b16 %v2012, %v2112
      %v2138 = vshrl.u32 %v2113, 16
      %v2140 = vrot.slane %v2138, 7
      %v2141 = vshll.u32 %v2113, 16
      %v2143 = vor.u32 %v2140, %v2141
      %v2145 = vshrl.u32 %v2114, 16
      %v2147 = vrot.slane %v2145, 7
      %v2148 = vshll.u32 %v2114, 16
      %v2150 = vor.u32 %v2147, %v2148
      %v2151 = vsel %vm849, %v2140, %v2150
      %v2153 = vshrl.u32 %v2115, 16
      %v2155 = vrot.slane %v2153, 7
      %v2156 = vshll.u32 %v2115, 16
      %v2158 = vor.u32 %v2155, %v2156
      %v2159 = vsel %vm849, %v2147, %v2158
      %v2161 = vshrl.u32 %v2116, 16
      %v2163 = vrot.slane %v2161, 7
      %v2164 = vshll.u32 %v2116, 16
      %v2166 = vor.u32 %v2163, %v2164
      %v2167 = vsel %vm849, %v2155, %v2166
      %v2169 = vshrl.u32 %v2117, 16
      %v2171 = vrot.slane %v2169, 7
      %v2172 = vshll.u32 %v2117, 16
      %v2174 = vor.u32 %v2171, %v2172
      %v2175 = vsel %vm849, %v2163, %v2174
      %v2177 = vshrl.u32 %v2118, 16
      %v2179 = vrot.slane %v2177, 7
      %v2180 = vshll.u32 %v2118, 16
      %v2182 = vor.u32 %v2179, %v2180
      %v2183 = vsel %vm849, %v2171, %v2182
      %v2185 = vshrl.u32 %v2119, 16
      %v2187 = vrot.slane %v2185, 7
      %v2188 = vshll.u32 %v2119, 16
      %v2190 = vor.u32 %v2187, %v2188
      %v2191 = vsel %vm849, %v2179, %v2190
      %v2193 = vshrl.u32 %v2120, 16
      %v2195 = vrot.slane %v2193, 7
      %v2196 = vshll.u32 %v2120, 16
      %v2198 = vor.u32 %v2195, %v2196
      %v2199 = vsel %vm849, %v2187, %v2198
      %v2201 = vshrl.u32 %v2121, 16
      %v2203 = vrot.slane %v2201, 7
      %v2204 = vshll.u32 %v2121, 16
      %v2206 = vor.u32 %v2203, %v2204
      %v2207 = vsel %vm849, %v2195, %v2206
      %v2209 = vshrl.u32 %v2122, 16
      %v2211 = vrot.slane %v2209, 7
      %v2212 = vshll.u32 %v2122, 16
      %v2214 = vor.u32 %v2211, %v2212
      %v2215 = vsel %vm849, %v2203, %v2214
      %v2217 = vshrl.u32 %v2123, 16
      %v2219 = vrot.slane %v2217, 7
      %v2220 = vshll.u32 %v2123, 16
      %v2222 = vor.u32 %v2219, %v2220
      %v2223 = vsel %vm849, %v2211, %v2222
      %v2225 = vshrl.u32 %v2124, 16
      %v2227 = vrot.slane %v2225, 7
      %v2228 = vshll.u32 %v2124, 16
      %v2230 = vor.u32 %v2227, %v2228
      %v2231 = vsel %vm849, %v2219, %v2230
      %v2233 = vshrl.u32 %v2125, 16
      %v2235 = vrot.slane %v2233, 7
      %v2236 = vshll.u32 %v2125, 16
      %v2238 = vor.u32 %v2235, %v2236
      %v2239 = vsel %vm849, %v2227, %v2238
      %v2241 = vshrl.u32 %v2126, 16
      %v2243 = vrot.slane %v2241, 7
      %v2244 = vshll.u32 %v2126, 16
      %v2246 = vor.u32 %v2243, %v2244
      %v2247 = vsel %vm849, %v2235, %v2246
      %v2249 = vshrl.u32 %v2127, 16
      %v2251 = vrot.slane %v2249, 7
      %v2252 = vshll.u32 %v2127, 16
      %v2254 = vor.u32 %v2251, %v2252
      %v2255 = vsel %vm849, %v2243, %v2254
      %v2257 = vshrl.u32 %v2128, 16
      %v2259 = vrot.slane %v2257, 7
      %v2260 = vshll.u32 %v2128, 16
      %v2262 = vor.u32 %v2259, %v2260
      %v2263 = vsel %vm849, %v2251, %v2262
      %v2265 = vshrl.u32 %v2129, 16
      %v2267 = vrot.slane %v2265, 7
      %v2268 = vshll.u32 %v2129, 16
      %v2270 = vor.u32 %v2267, %v2268
      %v2271 = vsel %vm849, %v2259, %v2270
      %v2273 = vshrl.u32 %v2130, 16
      %v2275 = vrot.slane %v2273, 7
      %v2276 = vshll.u32 %v2130, 16
      %v2278 = vor.u32 %v2275, %v2276
      %v2279 = vsel %vm849, %v2267, %v2278
      %v2281 = vshrl.u32 %v2131, 16
      %v2283 = vrot.slane %v2281, 7
      %v2284 = vshll.u32 %v2131, 16
      %v2286 = vor.u32 %v2283, %v2284
      %v2287 = vsel %vm849, %v2275, %v2286
      %v2289 = vshrl.u32 %v2132, 16
      %v2291 = vrot.slane %v2289, 7
      %v2292 = vshll.u32 %v2132, 16
      %v2294 = vor.u32 %v2291, %v2292
      %v2295 = vsel %vm849, %v2283, %v2294
      %v2297 = vshrl.u32 %v2133, 16
      %v2299 = vrot.slane %v2297, 7
      %v2300 = vshll.u32 %v2133, 16
      %v2302 = vor.u32 %v2299, %v2300
      %v2303 = vsel %vm849, %v2291, %v2302
      %v2305 = vshrl.u32 %v2134, 16
      %v2307 = vrot.slane %v2305, 7
      %v2308 = vshll.u32 %v2134, 16
      %v2310 = vor.u32 %v2307, %v2308
      %v2311 = vsel %vm849, %v2299, %v2310
      %v2313 = vshrl.u32 %v2135, 16
      %v2315 = vrot.slane %v2313, 7
      %v2316 = vshll.u32 %v2135, 16
      %v2318 = vor.u32 %v2315, %v2316
      %v2319 = vsel %vm849, %v2307, %v2318
      %v2321 = vshrl.u32 %v2136, 16
      %v2323 = vrot.slane %v2321, 7
      %v2324 = vshll.u32 %v2136, 16
      %v2326 = vor.u32 %v2323, %v2324
      %v2327 = vsel %vm849, %v2315, %v2326
      %v2352 = vsel %vm1181, %v2017, %v2143
      %v2353 = vrot.slane %v2141, 1
      %v2354 = vor.u32 %v2138, %v2353
      %v2355 = vrot.slane %v2148, 1
      %v2356 = vsel %vm1858, %v2354, %v2355
      %v2357 = vor.u32 %v2145, %v2355
      %v2358 = vrot.slane %v2156, 1
      %v2359 = vsel %vm1858, %v2357, %v2358
      %v2360 = vor.u32 %v2153, %v2358
      %v2361 = vrot.slane %v2164, 1
      %v2362 = vsel %vm1858, %v2360, %v2361
      %v2363 = vor.u32 %v2161, %v2361
      %v2364 = vrot.slane %v2172, 1
      %v2365 = vsel %vm1858, %v2363, %v2364
      %v2366 = vor.u32 %v2169, %v2364
      %v2367 = vrot.slane %v2180, 1
      %v2368 = vsel %vm1858, %v2366, %v2367
      %v2369 = vor.u32 %v2177, %v2367
      %v2370 = vrot.slane %v2188, 1
      %v2371 = vsel %vm1858, %v2369, %v2370
      %v2372 = vor.u32 %v2185, %v2370
      %v2373 = vrot.slane %v2196, 1
      %v2374 = vsel %vm1858, %v2372, %v2373
      %v2375 = vor.u32 %v2193, %v2373
      %v2376 = vrot.slane %v2204, 1
      %v2377 = vsel %vm1858, %v2375, %v2376
      %v2378 = vor.u32 %v2201, %v2376
      %v2379 = vrot.slane %v2212, 1
      %v2380 = vsel %vm1858, %v2378, %v2379
      %v2381 = vor.u32 %v2209, %v2379
      %v2382 = vrot.slane %v2220, 1
      %v2383 = vsel %vm1858, %v2381, %v2382
      %v2384 = vor.u32 %v2217, %v2382
      %v2385 = vrot.slane %v2228, 1
      %v2386 = vsel %vm1858, %v2384, %v2385
      %v2387 = vor.u32 %v2225, %v2385
      %v2388 = vrot.slane %v2236, 1
      %v2389 = vsel %vm1858, %v2387, %v2388
      %v2390 = vor.u32 %v2233, %v2388
      %v2391 = vrot.slane %v2244, 1
      %v2392 = vsel %vm1858, %v2390, %v2391
      %v2393 = vor.u32 %v2241, %v2391
      %v2394 = vrot.slane %v2252, 1
      %v2395 = vsel %vm1858, %v2393, %v2394
      %v2396 = vor.u32 %v2249, %v2394
      %v2397 = vrot.slane %v2260, 1
      %v2398 = vsel %vm1858, %v2396, %v2397
      %v2399 = vor.u32 %v2257, %v2397
      %v2400 = vrot.slane %v2268, 1
      %v2401 = vsel %vm1858, %v2399, %v2400
      %v2402 = vor.u32 %v2265, %v2400
      %v2403 = vrot.slane %v2276, 1
      %v2404 = vsel %vm1858, %v2402, %v2403
      %v2405 = vor.u32 %v2273, %v2403
      %v2406 = vrot.slane %v2284, 1
      %v2407 = vsel %vm1858, %v2405, %v2406
      %v2408 = vor.u32 %v2281, %v2406
      %v2409 = vrot.slane %v2292, 1
      %v2410 = vsel %vm1858, %v2408, %v2409
      %v2411 = vor.u32 %v2289, %v2409
      %v2412 = vrot.slane %v2300, 1
      %v2413 = vsel %vm1858, %v2411, %v2412
      %v2414 = vor.u32 %v2297, %v2412
      %v2415 = vrot.slane %v2308, 1
      %v2416 = vsel %vm1858, %v2414, %v2415
      %v2417 = vor.u32 %v2305, %v2415
      %v2418 = vrot.slane %v2316, 1
      %v2419 = vsel %vm1858, %v2417, %v2418
      %v2420 = vor.u32 %v2313, %v2418
      %v2421 = vrot.slane %v2324, 1
      %v2422 = vsel %vm1858, %v2420, %v2421
      %v2423 = vor.u32 %v2321, %v2421
      %v2448 = vpack.c.b16 %v2066, %v2066
      %v2450 = vshll.u32 %v2448, 16
      %v2452 = vrot.slane %v2450, 1
      %v2454 = vsel %vm1961, %v2423, %v2452
      %s2455 = scalar_lea.vmem [#allocation2], 24
      %v2456 = vld [vmem:[%s2455] sm:$0xf]
      %v2457 = vld [vmem:[%s2455 + $0x4] sm:$0xf]
      %v2458 = vld [vmem:[%s2455 + $0x8] sm:$0xf]
      %v2459 = vld [vmem:[%s2455 + $0xc] sm:$0xf]
      %v2460 = vld [vmem:[%s2455 + $0x10] sm:$0xf]
      %v2461 = vld [vmem:[%s2455 + $0x14] sm:$0xf]
      %v2462 = vld [vmem:[%s2455 + $0x18] sm:$0xf]
      %v2463 = vld [vmem:[%s2455 + $0x1c] sm:$0xf]
      %v2464 = vld [vmem:[%s2455 + $0x20] sm:$0xf]
      %v2465 = vld [vmem:[%s2455 + $0x24] sm:$0xf]
      %v2466 = vld [vmem:[%s2455 + $0x28] sm:$0xf]
      %v2467 = vld [vmem:[%s2455 + $0x2c] sm:$0xf]
      %v2468 = vld [vmem:[%s2455 + $0x30] sm:$0xf]
      %v2469 = vld [vmem:[%s2455 + $0x34] sm:$0xf]
      %v2470 = vld [vmem:[%s2455 + $0x38] sm:$0xf]
      %v2471 = vld [vmem:[%s2455 + $0x3c] sm:$0xf]
      %v2472 = vld [vmem:[%s2455 + $0x40] sm:$0xf]
      %v2473 = vld [vmem:[%s2455 + $0x44] sm:$0xf]
      %v2474 = vld [vmem:[%s2455 + $0x48] sm:$0xf]
      %v2475 = vld [vmem:[%s2455 + $0x4c] sm:$0xf]
      %v2476 = vld [vmem:[%s2455 + $0x50] sm:$0xf]
      %v2477 = vld [vmem:[%s2455 + $0x54] sm:$0xf]
      %v2478 = vld [vmem:[%s2455 + $0x58] sm:$0xf]
      %v2479 = vld [vmem:[%s2455 + $0x5c] sm:$0xf]
      %v2480 = vld [vmem:[%s2455 + $0x60] sm:$0xf]
      %v2481 = vld [vmem:[%s2455 + $0x64] sm:$0xf]
      %v2482 = vld [vmem:[%s2455 + $0x68] sm:$0xf]
      %v2483 = vld [vmem:[%s2455 + $0x6c] sm:$0xf]
      %v2484 = vld [vmem:[%s2455 + $0x70] sm:$0xf]
      %v2485 = vld [vmem:[%s2455 + $0x74] sm:$0xf]
      %v2486 = vld [vmem:[%s2455 + $0x78] sm:$0xf]
      %v2487 = vld [vmem:[%s2455 + $0x7c] sm:$0xf]
      %v2488 = vld [vmem:[%s2455 + $0x80] sm:$0xf]
      %v2489 = vld [vmem:[%s2455 + $0x84] sm:$0xf]
      %v2490 = vld [vmem:[%s2455 + $0x88] sm:$0xf]
      %v2491 = vld [vmem:[%s2455 + $0x8c] sm:$0xf]
      %v2492 = vld [vmem:[%s2455 + $0x90] sm:$0xf]
      %v2493 = vld [vmem:[%s2455 + $0x94] sm:$0xf]
      %v2494 = vld [vmem:[%s2455 + $0x98] sm:$0xf]
      %v2495 = vld [vmem:[%s2455 + $0x9c] sm:$0xf]
      %v2496 = vld [vmem:[%s2455 + $0xa0] sm:$0xf]
      %v2497 = vld [vmem:[%s2455 + $0xa4] sm:$0xf]
      %v2498 = vld [vmem:[%s2455 + $0xa8] sm:$0xf]
      %v2499 = vld [vmem:[%s2455 + $0xac] sm:$0xf]
      %v2500 = vld [vmem:[%s2455 + $0xb0] sm:$0xf]
      %v2501 = vld [vmem:[%s2455 + $0xb4] sm:$0xf]
      %v2502 = vld [vmem:[%s2455 + $0xb8] sm:$0xf]
      %v2503 = vld [vmem:[%s2455 + $0xbc] sm:$0xf]
      %v2505 = vunpack.c.l.b16 %v2503
      %v2506 = vpack.c.b16 %v2505, %v2505
      %v2508 = vshrl.u32 %v2506, 16
      %v2510 = vrot.slane %v2508, 3
      %v2559 = vunpack.c.l.b16 %v2456
      %v2560 = vunpack.c.l.b16 %v2457
      %v2561 = vunpack.c.l.b16 %v2458
      %v2562 = vunpack.c.l.b16 %v2459
      %v2563 = vunpack.c.l.b16 %v2460
      %v2564 = vunpack.c.l.b16 %v2461
      %v2565 = vunpack.c.l.b16 %v2462
      %v2566 = vunpack.c.l.b16 %v2463
      %v2567 = vunpack.c.l.b16 %v2464
      %v2568 = vunpack.c.l.b16 %v2465
      %v2569 = vunpack.c.l.b16 %v2466
      %v2570 = vunpack.c.l.b16 %v2467
      %v2571 = vunpack.c.l.b16 %v2468
      %v2572 = vunpack.c.l.b16 %v2469
      %v2573 = vunpack.c.l.b16 %v2470
      %v2574 = vunpack.c.l.b16 %v2471
      %v2575 = vunpack.c.l.b16 %v2472
      %v2576 = vunpack.c.l.b16 %v2473
      %v2577 = vunpack.c.l.b16 %v2474
      %v2578 = vunpack.c.l.b16 %v2475
      %v2579 = vunpack.c.l.b16 %v2476
      %v2580 = vunpack.c.l.b16 %v2477
      %v2581 = vunpack.c.l.b16 %v2478
      %v2582 = vunpack.c.l.b16 %v2479
      %v2583 = vunpack.c.l.b16 %v2480
      %v2584 = vunpack.c.l.b16 %v2481
      %v2585 = vunpack.c.l.b16 %v2482
      %v2586 = vunpack.c.l.b16 %v2483
      %v2587 = vunpack.c.l.b16 %v2484
      %v2588 = vunpack.c.l.b16 %v2485
      %v2589 = vunpack.c.l.b16 %v2486
      %v2590 = vunpack.c.l.b16 %v2487
      %v2591 = vunpack.c.l.b16 %v2488
      %v2592 = vunpack.c.l.b16 %v2489
      %v2593 = vunpack.c.l.b16 %v2490
      %v2594 = vunpack.c.l.b16 %v2491
      %v2595 = vunpack.c.l.b16 %v2492
      %v2596 = vunpack.c.l.b16 %v2493
      %v2597 = vunpack.c.l.b16 %v2494
      %v2598 = vunpack.c.l.b16 %v2495
      %v2599 = vunpack.c.l.b16 %v2496
      %v2600 = vunpack.c.l.b16 %v2497
      %v2601 = vunpack.c.l.b16 %v2498
      %v2602 = vunpack.c.l.b16 %v2499
      %v2603 = vunpack.c.l.b16 %v2500
      %v2604 = vunpack.c.l.b16 %v2501
      %v2605 = vunpack.c.l.b16 %v2502
      %v2606 = vpack.c.b16 %v2560, %v2559
      %v2607 = vpack.c.b16 %v2562, %v2561
      %v2608 = vpack.c.b16 %v2564, %v2563
      %v2609 = vpack.c.b16 %v2566, %v2565
      %v2610 = vpack.c.b16 %v2568, %v2567
      %v2611 = vpack.c.b16 %v2570, %v2569
      %v2612 = vpack.c.b16 %v2572, %v2571
      %v2613 = vpack.c.b16 %v2574, %v2573
      %v2614 = vpack.c.b16 %v2576, %v2575
      %v2615 = vpack.c.b16 %v2578, %v2577
      %v2616 = vpack.c.b16 %v2580, %v2579
      %v2617 = vpack.c.b16 %v2582, %v2581
      %v2618 = vpack.c.b16 %v2584, %v2583
      %v2619 = vpack.c.b16 %v2586, %v2585
      %v2620 = vpack.c.b16 %v2588, %v2587
      %v2621 = vpack.c.b16 %v2590, %v2589
      %v2622 = vpack.c.b16 %v2592, %v2591
      %v2623 = vpack.c.b16 %v2594, %v2593
      %v2624 = vpack.c.b16 %v2596, %v2595
      %v2625 = vpack.c.b16 %v2598, %v2597
      %v2626 = vpack.c.b16 %v2600, %v2599
      %v2627 = vpack.c.b16 %v2602, %v2601
      %v2628 = vpack.c.b16 %v2604, %v2603
      %v2629 = vpack.c.b16 %v2505, %v2605
      %v2631 = vshrl.u32 %v2606, 16
      %v2633 = vrot.slane %v2631, 7
      %v2634 = vshll.u32 %v2606, 16
      %v2636 = vor.u32 %v2633, %v2634
      %v2638 = vshrl.u32 %v2607, 16
      %v2640 = vrot.slane %v2638, 7
      %v2641 = vshll.u32 %v2607, 16
      %v2643 = vor.u32 %v2640, %v2641
      %v2644 = vsel %vm849, %v2633, %v2643
      %v2646 = vshrl.u32 %v2608, 16
      %v2648 = vrot.slane %v2646, 7
      %v2649 = vshll.u32 %v2608, 16
      %v2651 = vor.u32 %v2648, %v2649
      %v2652 = vsel %vm849, %v2640, %v2651
      %v2654 = vshrl.u32 %v2609, 16
      %v2656 = vrot.slane %v2654, 7
      %v2657 = vshll.u32 %v2609, 16
      %v2659 = vor.u32 %v2656, %v2657
      %v2660 = vsel %vm849, %v2648, %v2659
      %v2662 = vshrl.u32 %v2610, 16
      %v2664 = vrot.slane %v2662, 7
      %v2665 = vshll.u32 %v2610, 16
      %v2667 = vor.u32 %v2664, %v2665
      %v2668 = vsel %vm849, %v2656, %v2667
      %v2670 = vshrl.u32 %v2611, 16
      %v2672 = vrot.slane %v2670, 7
      %v2673 = vshll.u32 %v2611, 16
      %v2675 = vor.u32 %v2672, %v2673
      %v2676 = vsel %vm849, %v2664, %v2675
      %v2678 = vshrl.u32 %v2612, 16
      %v2680 = vrot.slane %v2678, 7
      %v2681 = vshll.u32 %v2612, 16
      %v2683 = vor.u32 %v2680, %v2681
      %v2684 = vsel %vm849, %v2672, %v2683
      %v2686 = vshrl.u32 %v2613, 16
      %v2688 = vrot.slane %v2686, 7
      %v2689 = vshll.u32 %v2613, 16
      %v2691 = vor.u32 %v2688, %v2689
      %v2692 = vsel %vm849, %v2680, %v2691
      %v2694 = vshrl.u32 %v2614, 16
      %v2696 = vrot.slane %v2694, 7
      %v2697 = vshll.u32 %v2614, 16
      %v2699 = vor.u32 %v2696, %v2697
      %v2700 = vsel %vm849, %v2688, %v2699
      %v2702 = vshrl.u32 %v2615, 16
      %v2704 = vrot.slane %v2702, 7
      %v2705 = vshll.u32 %v2615, 16
      %v2707 = vor.u32 %v2704, %v2705
      %v2708 = vsel %vm849, %v2696, %v2707
      %v2710 = vshrl.u32 %v2616, 16
      %v2712 = vrot.slane %v2710, 7
      %v2713 = vshll.u32 %v2616, 16
      %v2715 = vor.u32 %v2712, %v2713
      %v2716 = vsel %vm849, %v2704, %v2715
      %v2718 = vshrl.u32 %v2617, 16
      %v2720 = vrot.slane %v2718, 7
      %v2721 = vshll.u32 %v2617, 16
      %v2723 = vor.u32 %v2720, %v2721
      %v2724 = vsel %vm849, %v2712, %v2723
      %v2726 = vshrl.u32 %v2618, 16
      %v2728 = vrot.slane %v2726, 7
      %v2729 = vshll.u32 %v2618, 16
      %v2731 = vor.u32 %v2728, %v2729
      %v2732 = vsel %vm849, %v2720, %v2731
      %v2734 = vshrl.u32 %v2619, 16
      %v2736 = vrot.slane %v2734, 7
      %v2737 = vshll.u32 %v2619, 16
      %v2739 = vor.u32 %v2736, %v2737
      %v2740 = vsel %vm849, %v2728, %v2739
      %v2742 = vshrl.u32 %v2620, 16
      %v2744 = vrot.slane %v2742, 7
      %v2745 = vshll.u32 %v2620, 16
      %v2747 = vor.u32 %v2744, %v2745
      %v2748 = vsel %vm849, %v2736, %v2747
      %v2750 = vshrl.u32 %v2621, 16
      %v2752 = vrot.slane %v2750, 7
      %v2753 = vshll.u32 %v2621, 16
      %v2755 = vor.u32 %v2752, %v2753
      %v2756 = vsel %vm849, %v2744, %v2755
      %v2758 = vshrl.u32 %v2622, 16
      %v2760 = vrot.slane %v2758, 7
      %v2761 = vshll.u32 %v2622, 16
      %v2763 = vor.u32 %v2760, %v2761
      %v2764 = vsel %vm849, %v2752, %v2763
      %v2766 = vshrl.u32 %v2623, 16
      %v2768 = vrot.slane %v2766, 7
      %v2769 = vshll.u32 %v2623, 16
      %v2771 = vor.u32 %v2768, %v2769
      %v2772 = vsel %vm849, %v2760, %v2771
      %v2774 = vshrl.u32 %v2624, 16
      %v2776 = vrot.slane %v2774, 7
      %v2777 = vshll.u32 %v2624, 16
      %v2779 = vor.u32 %v2776, %v2777
      %v2780 = vsel %vm849, %v2768, %v2779
      %v2782 = vshrl.u32 %v2625, 16
      %v2784 = vrot.slane %v2782, 7
      %v2785 = vshll.u32 %v2625, 16
      %v2787 = vor.u32 %v2784, %v2785
      %v2788 = vsel %vm849, %v2776, %v2787
      %v2790 = vshrl.u32 %v2626, 16
      %v2792 = vrot.slane %v2790, 7
      %v2793 = vshll.u32 %v2626, 16
      %v2795 = vor.u32 %v2792, %v2793
      %v2796 = vsel %vm849, %v2784, %v2795
      %v2798 = vshrl.u32 %v2627, 16
      %v2800 = vrot.slane %v2798, 7
      %v2801 = vshll.u32 %v2627, 16
      %v2803 = vor.u32 %v2800, %v2801
      %v2804 = vsel %vm849, %v2792, %v2803
      %v2806 = vshrl.u32 %v2628, 16
      %v2808 = vrot.slane %v2806, 7
      %v2809 = vshll.u32 %v2628, 16
      %v2811 = vor.u32 %v2808, %v2809
      %v2812 = vsel %vm849, %v2800, %v2811
      %v2814 = vshrl.u32 %v2629, 16
      %v2816 = vrot.slane %v2814, 7
      %v2817 = vshll.u32 %v2629, 16
      %v2819 = vor.u32 %v2816, %v2817
      %v2820 = vsel %vm849, %v2808, %v2819
      %v2845 = vsel %vm1181, %v2510, %v2636
      %v2846 = vrot.slane %v2634, 1
      %v2847 = vor.u32 %v2631, %v2846
      %v2848 = vrot.slane %v2641, 1
      %v2849 = vsel %vm1858, %v2847, %v2848
      %v2850 = vor.u32 %v2638, %v2848
      %v2851 = vrot.slane %v2649, 1
      %v2852 = vsel %vm1858, %v2850, %v2851
      %v2853 = vor.u32 %v2646, %v2851
      %v2854 = vrot.slane %v2657, 1
      %v2855 = vsel %vm1858, %v2853, %v2854
      %v2856 = vor.u32 %v2654, %v2854
      %v2857 = vrot.slane %v2665, 1
      %v2858 = vsel %vm1858, %v2856, %v2857
      %v2859 = vor.u32 %v2662, %v2857
      %v2860 = vrot.slane %v2673, 1
      %v2861 = vsel %vm1858, %v2859, %v2860
      %v2862 = vor.u32 %v2670, %v2860
      %v2863 = vrot.slane %v2681, 1
      %v2864 = vsel %vm1858, %v2862, %v2863
      %v2865 = vor.u32 %v2678, %v2863
      %v2866 = vrot.slane %v2689, 1
      %v2867 = vsel %vm1858, %v2865, %v2866
      %v2868 = vor.u32 %v2686, %v2866
      %v2869 = vrot.slane %v2697, 1
      %v2870 = vsel %vm1858, %v2868, %v2869
      %v2871 = vor.u32 %v2694, %v2869
      %v2872 = vrot.slane %v2705, 1
      %v2873 = vsel %vm1858, %v2871, %v2872
      %v2874 = vor.u32 %v2702, %v2872
      %v2875 = vrot.slane %v2713, 1
      %v2876 = vsel %vm1858, %v2874, %v2875
      %v2877 = vor.u32 %v2710, %v2875
      %v2878 = vrot.slane %v2721, 1
      %v2879 = vsel %vm1858, %v2877, %v2878
      %v2880 = vor.u32 %v2718, %v2878
      %v2881 = vrot.slane %v2729, 1
      %v2882 = vsel %vm1858, %v2880, %v2881
      %v2883 = vor.u32 %v2726, %v2881
      %v2884 = vrot.slane %v2737, 1
      %v2885 = vsel %vm1858, %v2883, %v2884
      %v2886 = vor.u32 %v2734, %v2884
      %v2887 = vrot.slane %v2745, 1
      %v2888 = vsel %vm1858, %v2886, %v2887
      %v2889 = vor.u32 %v2742, %v2887
      %v2890 = vrot.slane %v2753, 1
      %v2891 = vsel %vm1858, %v2889, %v2890
      %v2892 = vor.u32 %v2750, %v2890
      %v2893 = vrot.slane %v2761, 1
      %v2894 = vsel %vm1858, %v2892, %v2893
      %v2895 = vor.u32 %v2758, %v2893
      %v2896 = vrot.slane %v2769, 1
      %v2897 = vsel %vm1858, %v2895, %v2896
      %v2898 = vor.u32 %v2766, %v2896
      %v2899 = vrot.slane %v2777, 1
      %v2900 = vsel %vm1858, %v2898, %v2899
      %v2901 = vor.u32 %v2774, %v2899
      %v2902 = vrot.slane %v2785, 1
      %v2903 = vsel %vm1858, %v2901, %v2902
      %v2904 = vor.u32 %v2782, %v2902
      %v2905 = vrot.slane %v2793, 1
      %v2906 = vsel %vm1858, %v2904, %v2905
      %v2907 = vor.u32 %v2790, %v2905
      %v2908 = vrot.slane %v2801, 1
      %v2909 = vsel %vm1858, %v2907, %v2908
      %v2910 = vor.u32 %v2798, %v2908
      %v2911 = vrot.slane %v2809, 1
      %v2912 = vsel %vm1858, %v2910, %v2911
      %v2913 = vor.u32 %v2806, %v2911
      %v2914 = vrot.slane %v2817, 1
      %v2915 = vsel %vm1858, %v2913, %v2914
      %v2916 = vor.u32 %v2814, %v2914
      %v2941 = vpack.c.b16 %v2559, %v2559
      %v2943 = vshll.u32 %v2941, 16
      %v2945 = vrot.slane %v2943, 1
      %v2947 = vsel %vm1961, %v2916, %v2945
      %v3021 = vlaneseq
      %v3022 = vshrl.u32 %v3021, 7
      %v3023 = vsub.s32 0, %v3022
      %v3024 = vrot.slane %v1434, %v3023
      %v3170 = vunpack.c.l.b16 %v1290
      %v3171 = vunpack.c.l.b16 %v1291
      %v3172 = vunpack.c.l.b16 %v1292
      %v3173 = vunpack.c.l.b16 %v1293
      %v3174 = vunpack.c.l.b16 %v1294
      %v3175 = vunpack.c.l.b16 %v1295
      %v3176 = vunpack.c.l.b16 %v1296
      %v3177 = vunpack.c.l.b16 %v1297
      %v3178 = vunpack.c.l.b16 %v1298
      %v3179 = vunpack.c.l.b16 %v1299
      %v3180 = vunpack.c.l.b16 %v1300
      %v3181 = vunpack.c.l.b16 %v1301
      %v3182 = vunpack.c.l.b16 %v1302
      %v3183 = vunpack.c.l.b16 %v1303
      %v3184 = vunpack.c.l.b16 %v1304
      %v3185 = vunpack.c.l.b16 %v1305
      %v3186 = vunpack.c.l.b16 %v1306
      %v3187 = vunpack.c.l.b16 %v1307
      %v3188 = vunpack.c.l.b16 %v1308
      %v3189 = vunpack.c.l.b16 %v1309
      %v3190 = vunpack.c.l.b16 %v1310
      %v3191 = vunpack.c.l.b16 %v1311
      %v3192 = vunpack.c.l.b16 %v1312
      %v3193 = vunpack.c.l.b16 %v1313
      %v3194 = vunpack.c.l.b16 %v1314
      %v3195 = vunpack.c.l.b16 %v1315
      %v3196 = vunpack.c.l.b16 %v1316
      %v3197 = vunpack.c.l.b16 %v1317
      %v3198 = vunpack.c.l.b16 %v1318
      %v3199 = vunpack.c.l.b16 %v1319
      %v3200 = vunpack.c.l.b16 %v1320
      %v3201 = vunpack.c.l.b16 %v1321
      %v3202 = vunpack.c.l.b16 %v1322
      %v3203 = vunpack.c.l.b16 %v1323
      %v3204 = vunpack.c.l.b16 %v1324
      %v3205 = vunpack.c.l.b16 %v1325
      %v3206 = vunpack.c.l.b16 %v1326
      %v3207 = vunpack.c.l.b16 %v1327
      %v3208 = vunpack.c.l.b16 %v1328
      %v3209 = vunpack.c.l.b16 %v1329
      %v3210 = vunpack.c.l.b16 %v1330
      %v3211 = vunpack.c.l.b16 %v1331
      %v3212 = vunpack.c.l.b16 %v1332
      %v3213 = vunpack.c.l.b16 %v1333
      %v3214 = vunpack.c.l.b16 %v1334
      %v3215 = vunpack.c.l.b16 %v1335
      %v3216 = vunpack.c.l.b16 %v1336
      %v3217 = vunpack.c.l.b16 %v1337
      %v3218 = vunpack.c.l.b16 %v1338
      %v3219 = vunpack.c.l.b16 %v1339
      %v3220 = vunpack.c.l.b16 %v1340
      %v3221 = vunpack.c.l.b16 %v1341
      %v3222 = vunpack.c.l.b16 %v1342
      %v3223 = vunpack.c.l.b16 %v1343
      %v3224 = vunpack.c.l.b16 %v1344
      %v3225 = vunpack.c.l.b16 %v1345
      %v3226 = vunpack.c.l.b16 %v1346
      %v3227 = vunpack.c.l.b16 %v1347
      %v3228 = vunpack.c.l.b16 %v1348
      %v3229 = vunpack.c.l.b16 %v1349
      %v3230 = vunpack.c.l.b16 %v1350
      %v3231 = vunpack.c.l.b16 %v1351
      %v3232 = vunpack.c.l.b16 %v1352
      %v3233 = vunpack.c.l.b16 %v1353
      %v3234 = vunpack.c.l.b16 %v1354
      %v3235 = vunpack.c.l.b16 %v1355
      %v3236 = vunpack.c.l.b16 %v1356
      %v3237 = vunpack.c.l.b16 %v1357
      %v3238 = vunpack.c.l.b16 %v1358
      %v3239 = vunpack.c.l.b16 %v1359
      %v3240 = vunpack.c.l.b16 %v1360
      %v3241 = vunpack.c.l.b16 %v1361
      %v3242 = vunpack.c.l.b16 %v1362
      %v3243 = vunpack.c.l.b16 %v1363
      %v3244 = vunpack.c.l.b16 %v1364
      %v3245 = vunpack.c.l.b16 %v1365
      %v3246 = vunpack.c.l.b16 %v1366
      %v3247 = vunpack.c.l.b16 %v1367
      %v3248 = vunpack.c.l.b16 %v1368
      %v3249 = vunpack.c.l.b16 %v1369
      %v3250 = vunpack.c.l.b16 %v1370
      %v3251 = vunpack.c.l.b16 %v1371
      %v3252 = vunpack.c.l.b16 %v1372
      %v3253 = vunpack.c.l.b16 %v1373
      %v3254 = vunpack.c.l.b16 %v1374
      %v3255 = vunpack.c.l.b16 %v1375
      %v3256 = vunpack.c.l.b16 %v1376
      %v3257 = vunpack.c.l.b16 %v1377
      %v3258 = vunpack.c.l.b16 %v1378
      %v3259 = vunpack.c.l.b16 %v1379
      %v3260 = vunpack.c.l.b16 %v1380
      %v3261 = vunpack.c.l.b16 %v1381
      %v3262 = vunpack.c.l.b16 %v1382
      %v3263 = vunpack.c.l.b16 %v1383
      %v3264 = vunpack.c.l.b16 %v1384
      %v3265 = vunpack.c.l.b16 %v1385
      %v3266 = vunpack.c.l.b16 %v1386
      %v3267 = vunpack.c.l.b16 %v1387
      %v3268 = vunpack.c.l.b16 %v1388
      %v3269 = vunpack.c.l.b16 %v1389
      %v3270 = vunpack.c.l.b16 %v1390
      %v3271 = vunpack.c.l.b16 %v1391
      %v3272 = vunpack.c.l.b16 %v1392
      %v3273 = vunpack.c.l.b16 %v1393
      %v3274 = vunpack.c.l.b16 %v1394
      %v3275 = vunpack.c.l.b16 %v1395
      %v3276 = vunpack.c.l.b16 %v1396
      %v3277 = vunpack.c.l.b16 %v1397
      %v3278 = vunpack.c.l.b16 %v1398
      %v3279 = vunpack.c.l.b16 %v1399
      %v3280 = vunpack.c.l.b16 %v1400
      %v3281 = vunpack.c.l.b16 %v1401
      %v3282 = vunpack.c.l.b16 %v1402
      %v3283 = vunpack.c.l.b16 %v1403
      %v3284 = vunpack.c.l.b16 %v1404
      %v3285 = vunpack.c.l.b16 %v1405
      %v3286 = vunpack.c.l.b16 %v1406
      %v3287 = vunpack.c.l.b16 %v1407
      %v3288 = vunpack.c.l.b16 %v1408
      %v3289 = vunpack.c.l.b16 %v1409
      %v3290 = vunpack.c.l.b16 %v1410
      %v3291 = vunpack.c.l.b16 %v1411
      %v3292 = vunpack.c.l.b16 %v1412
      %v3293 = vunpack.c.l.b16 %v1413
      %v3294 = vunpack.c.l.b16 %v1414
      %v3295 = vunpack.c.l.b16 %v1415
      %v3296 = vunpack.c.l.b16 %v1416
      %v3297 = vunpack.c.l.b16 %v1417
      %v3298 = vunpack.c.l.b16 %v1418
      %v3299 = vunpack.c.l.b16 %v1419
      %v3300 = vunpack.c.l.b16 %v1420
      %v3301 = vunpack.c.l.b16 %v1421
      %v3302 = vunpack.c.l.b16 %v1422
      %v3303 = vunpack.c.l.b16 %v1423
      %v3304 = vunpack.c.l.b16 %v1424
      %v3305 = vunpack.c.l.b16 %v1425
      %v3306 = vunpack.c.l.b16 %v1426
      %v3307 = vunpack.c.l.b16 %v1427
      %v3308 = vunpack.c.l.b16 %v1428
      %v3309 = vunpack.c.l.b16 %v1429
      %v3310 = vunpack.c.l.b16 %v1430
      %v3311 = vunpack.c.l.b16 %v1431
      %v3312 = vunpack.c.l.b16 %v1432
      %v3313 = vunpack.c.l.b16 %v1433
      %v3314 = vpack.c.b16 %v3171, %v3170
      %v3315 = vpack.c.b16 %v3173, %v3172
      %v3316 = vpack.c.b16 %v3175, %v3174
      %v3317 = vpack.c.b16 %v3177, %v3176
      %v3318 = vpack.c.b16 %v3179, %v3178
      %v3319 = vpack.c.b16 %v3181, %v3180
      %v3320 = vpack.c.b16 %v3183, %v3182
      %v3321 = vpack.c.b16 %v3185, %v3184
      %v3322 = vpack.c.b16 %v3187, %v3186
      %v3323 = vpack.c.b16 %v3189, %v3188
      %v3324 = vpack.c.b16 %v3191, %v3190
      %v3325 = vpack.c.b16 %v3193, %v3192
      %v3326 = vpack.c.b16 %v3195, %v3194
      %v3327 = vpack.c.b16 %v3197, %v3196
      %v3328 = vpack.c.b16 %v3199, %v3198
      %v3329 = vpack.c.b16 %v3201, %v3200
      %v3330 = vpack.c.b16 %v3203, %v3202
      %v3331 = vpack.c.b16 %v3205, %v3204
      %v3332 = vpack.c.b16 %v3207, %v3206
      %v3333 = vpack.c.b16 %v3209, %v3208
      %v3334 = vpack.c.b16 %v3211, %v3210
      %v3335 = vpack.c.b16 %v3213, %v3212
      %v3336 = vpack.c.b16 %v3215, %v3214
      %v3337 = vpack.c.b16 %v3217, %v3216
      %v3338 = vpack.c.b16 %v3219, %v3218
      %v3339 = vpack.c.b16 %v3221, %v3220
      %v3340 = vpack.c.b16 %v3223, %v3222
      %v3341 = vpack.c.b16 %v3225, %v3224
      %v3342 = vpack.c.b16 %v3227, %v3226
      %v3343 = vpack.c.b16 %v3229, %v3228
      %v3344 = vpack.c.b16 %v3231, %v3230
      %v3345 = vpack.c.b16 %v3233, %v3232
      %v3346 = vpack.c.b16 %v3235, %v3234
      %v3347 = vpack.c.b16 %v3237, %v3236
      %v3348 = vpack.c.b16 %v3239, %v3238
      %v3349 = vpack.c.b16 %v3241, %v3240
      %v3350 = vpack.c.b16 %v3243, %v3242
      %v3351 = vpack.c.b16 %v3245, %v3244
      %v3352 = vpack.c.b16 %v3247, %v3246
      %v3353 = vpack.c.b16 %v3249, %v3248
      %v3354 = vpack.c.b16 %v3251, %v3250
      %v3355 = vpack.c.b16 %v3253, %v3252
      %v3356 = vpack.c.b16 %v3255, %v3254
      %v3357 = vpack.c.b16 %v3257, %v3256
      %v3358 = vpack.c.b16 %v3259, %v3258
      %v3359 = vpack.c.b16 %v3261, %v3260
      %v3360 = vpack.c.b16 %v3263, %v3262
      %v3361 = vpack.c.b16 %v3265, %v3264
      %v3362 = vpack.c.b16 %v3267, %v3266
      %v3363 = vpack.c.b16 %v3269, %v3268
      %v3364 = vpack.c.b16 %v3271, %v3270
      %v3365 = vpack.c.b16 %v3273, %v3272
      %v3366 = vpack.c.b16 %v3275, %v3274
      %v3367 = vpack.c.b16 %v3277, %v3276
      %v3368 = vpack.c.b16 %v3279, %v3278
      %v3369 = vpack.c.b16 %v3281, %v3280
      %v3370 = vpack.c.b16 %v3283, %v3282
      %v3371 = vpack.c.b16 %v3285, %v3284
      %v3372 = vpack.c.b16 %v3287, %v3286
      %v3373 = vpack.c.b16 %v3289, %v3288
      %v3374 = vpack.c.b16 %v3291, %v3290
      %v3375 = vpack.c.b16 %v3293, %v3292
      %v3376 = vpack.c.b16 %v3295, %v3294
      %v3377 = vpack.c.b16 %v3297, %v3296
      %v3378 = vpack.c.b16 %v3299, %v3298
      %v3379 = vpack.c.b16 %v3301, %v3300
      %v3380 = vpack.c.b16 %v3303, %v3302
      %v3381 = vpack.c.b16 %v3305, %v3304
      %v3382 = vpack.c.b16 %v3307, %v3306
      %v3383 = vpack.c.b16 %v3309, %v3308
      %v3384 = vpack.c.b16 %v3311, %v3310
      %v3385 = vpack.c.b16 %v3313, %v3312
      %3458 = vmatprep.subr.bf16.mxu0 0
      %3459 = vmatpush1.bf16.msra.mxu0 %v3321
      %3460 = vmatprep.subr.bf16.mxu0 0
      %3461 = vmatpush1.bf16.msra.mxu0 %v3320
      %3462 = vmatprep.subr.bf16.mxu0 0
      %3463 = vmatpush1.bf16.msra.mxu0 %v3319
      %3464 = vmatprep.subr.bf16.mxu0 0
      %3465 = vmatpush1.bf16.msra.mxu0 %v3318
      %3466 = vmatprep.subr.bf16.mxu0 0
      %3467 = vmatpush1.bf16.msra.mxu0 %v3317
      %3468 = vmatprep.subr.bf16.mxu0 0
      %3469 = vmatpush1.bf16.msra.mxu0 %v3316
      %3470 = vmatprep.subr.bf16.mxu0 0
      %3471 = vmatpush1.bf16.msra.mxu0 %v3315
      %3472 = vmatprep.subr.bf16.mxu0 0
      %3473 = vmatpush1.bf16.msra.mxu0 %v3314
      %3474 = vmatprep.subr.bf16.mxu0 0
      %3475 = vmatpush2.bf16.msra.mxu0 %v3329
      %3476 = vmatprep.subr.bf16.mxu0 0
      %3477 = vmatpush2.bf16.msra.mxu0 %v3328
      %3478 = vmatprep.subr.bf16.mxu0 0
      %3479 = vmatpush2.bf16.msra.mxu0 %v3327
      %3480 = vmatprep.subr.bf16.mxu0 0
      %3481 = vmatpush2.bf16.msra.mxu0 %v3326
      %3482 = vmatprep.subr.bf16.mxu0 0
      %3483 = vmatpush2.bf16.msra.mxu0 %v3325
      %3484 = vmatprep.subr.bf16.mxu0 0
      %3485 = vmatpush2.bf16.msra.mxu0 %v3324
      %3486 = vmatprep.subr.bf16.mxu0 0
      %3487 = vmatpush2.bf16.msra.mxu0 %v3323
      %3488 = vmatprep.subr.bf16.mxu0 0
      %3489 = vmatpush2.bf16.msra.mxu0 %v3322
      %3490 = vmatprep.mubr.bf16.mxu0 %v1618
      %3491 = vmatmul.mubr.bf16.gmra.mxu0 %v1857
      %v3492 = vpop.f32.mrf.mxu0
      %v3493 = vadd.f32 %v3024, %v3492
      %v3494 = vpop.f32.mrf.mxu0
      %v3495 = vpop.f32.mrf.mxu0
      %v3496 = vadd.f32 %v3024, %v3495
      %v3497 = vpop.f32.mrf.mxu0
      %3498 = vmatprep.mubr.bf16.mxu0 %v1619
      %3499 = vmatmul.mubr.bf16.gmra.mxu0 %v1656
      %v3500 = vpop.f32.mrf.mxu0
      %v3501 = vadd.f32 %v3024, %v3500
      %v3502 = vpop.f32.mrf.mxu0
      %v3503 = vpop.f32.mrf.mxu0
      %v3504 = vadd.f32 %v3024, %v3503
      %v3505 = vpop.f32.mrf.mxu0
      %3506 = vmatprep.mubr.bf16.mxu0 %v1620
      %3507 = vmatmul.mubr.bf16.gmra.mxu0 %v1664
      %v3508 = vpop.f32.mrf.mxu0
      %v3509 = vadd.f32 %v3024, %v3508
      %v3510 = vpop.f32.mrf.mxu0
      %v3511 = vpop.f32.mrf.mxu0
      %v3512 = vadd.f32 %v3024, %v3511
      %v3513 = vpop.f32.mrf.mxu0
      %3514 = vmatprep.mubr.bf16.mxu0 %v1621
      %3515 = vmatmul.mubr.bf16.gmra.mxu0 %v1672
      %v3516 = vpop.f32.mrf.mxu0
      %v3517 = vadd.f32 %v3024, %v3516
      %v3518 = vpop.f32.mrf.mxu0
      %v3519 = vpop.f32.mrf.mxu0
      %v3520 = vadd.f32 %v3024, %v3519
      %v3521 = vpop.f32.mrf.mxu0
      %3522 = vmatprep.mubr.bf16.mxu0 %v1622
      %3523 = vmatmul.mubr.bf16.gmra.mxu0 %v1680
      %v3524 = vpop.f32.mrf.mxu0
      %v3525 = vadd.f32 %v3024, %v3524
      %v3526 = vpop.f32.mrf.mxu0
      %v3527 = vpop.f32.mrf.mxu0
      %v3528 = vadd.f32 %v3024, %v3527
      %v3529 = vpop.f32.mrf.mxu0
      %3530 = vmatprep.mubr.bf16.mxu0 %v1623
      %3531 = vmatmul.mubr.bf16.gmra.mxu0 %v1688
      %v3532 = vpop.f32.mrf.mxu0
      %v3533 = vadd.f32 %v3024, %v3532
      %v3534 = vpop.f32.mrf.mxu0
      %v3535 = vpop.f32.mrf.mxu0
      %v3536 = vadd.f32 %v3024, %v3535
      %v3537 = vpop.f32.mrf.mxu0
      %3538 = vmatprep.mubr.bf16.mxu0 %v1624
      %3539 = vmatmul.mubr.bf16.gmra.mxu0 %v1696
      %v3540 = vpop.f32.mrf.mxu0
      %v3541 = vadd.f32 %v3024, %v3540
      %v3542 = vpop.f32.mrf.mxu0
      %v3543 = vpop.f32.mrf.mxu0
      %v3544 = vadd.f32 %v3024, %v3543
      %v3545 = vpop.f32.mrf.mxu0
      %3546 = vmatprep.mubr.bf16.mxu0 %v1625
      %3547 = vmatmul.mubr.bf16.gmra.mxu0 %v1704
      %v3548 = vpop.f32.mrf.mxu0
      %v3549 = vadd.f32 %v3024, %v3548
      %v3550 = vpop.f32.mrf.mxu0
      %v3551 = vpop.f32.mrf.mxu0
      %v3552 = vadd.f32 %v3024, %v3551
      %v3553 = vpop.f32.mrf.mxu0
      %3554 = vmatprep.mubr.bf16.mxu0 %v1626
      %3555 = vmatmul.mubr.bf16.gmra.mxu0 %v1712
      %v3556 = vpop.f32.mrf.mxu0
      %v3557 = vadd.f32 %v3024, %v3556
      %v3558 = vpop.f32.mrf.mxu0
      %v3559 = vpop.f32.mrf.mxu0
      %v3560 = vadd.f32 %v3024, %v3559
      %v3561 = vpop.f32.mrf.mxu0
      %3562 = vmatprep.mubr.bf16.mxu0 %v1627
      %3563 = vmatmul.mubr.bf16.gmra.mxu0 %v1720
      %v3564 = vpop.f32.mrf.mxu0
      %v3565 = vadd.f32 %v3024, %v3564
      %v3566 = vpop.f32.mrf.mxu0
      %v3567 = vpop.f32.mrf.mxu0
      %v3568 = vadd.f32 %v3024, %v3567
      %v3569 = vpop.f32.mrf.mxu0
      %3570 = vmatprep.mubr.bf16.mxu0 %v1628
      %3571 = vmatmul.mubr.bf16.gmra.mxu0 %v1728
      %v3572 = vpop.f32.mrf.mxu0
      %v3573 = vadd.f32 %v3024, %v3572
      %v3574 = vpop.f32.mrf.mxu0
      %v3575 = vpop.f32.mrf.mxu0
      %v3576 = vadd.f32 %v3024, %v3575
      %v3577 = vpop.f32.mrf.mxu0
      %3578 = vmatprep.mubr.bf16.mxu0 %v1629
      %3579 = vmatmul.mubr.bf16.gmra.mxu0 %v1736
      %v3580 = vpop.f32.mrf.mxu0
      %v3581 = vadd.f32 %v3024, %v3580
      %v3582 = vpop.f32.mrf.mxu0
      %v3583 = vpop.f32.mrf.mxu0
      %v3584 = vadd.f32 %v3024, %v3583
      %v3585 = vpop.f32.mrf.mxu0
      %3586 = vmatprep.mubr.bf16.mxu0 %v1630
      %3587 = vmatmul.mubr.bf16.gmra.mxu0 %v1744
      %v3588 = vpop.f32.mrf.mxu0
      %v3589 = vadd.f32 %v3024, %v3588
      %v3590 = vpop.f32.mrf.mxu0
      %v3591 = vpop.f32.mrf.mxu0
      %v3592 = vadd.f32 %v3024, %v3591
      %v3593 = vpop.f32.mrf.mxu0
      %3594 = vmatprep.mubr.bf16.mxu0 %v1631
      %3595 = vmatmul.mubr.bf16.gmra.mxu0 %v1752
      %v3596 = vpop.f32.mrf.mxu0
      %v3597 = vadd.f32 %v3024, %v3596
      %v3598 = vpop.f32.mrf.mxu0
      %v3599 = vpop.f32.mrf.mxu0
      %v3600 = vadd.f32 %v3024, %v3599
      %v3601 = vpop.f32.mrf.mxu0
      %3602 = vmatprep.mubr.bf16.mxu0 %v1632
      %3603 = vmatmul.mubr.bf16.gmra.mxu0 %v1760
      %v3604 = vpop.f32.mrf.mxu0
      %v3605 = vadd.f32 %v3024, %v3604
      %v3606 = vpop.f32.mrf.mxu0
      %v3607 = vpop.f32.mrf.mxu0
      %v3608 = vadd.f32 %v3024, %v3607
      %v3609 = vpop.f32.mrf.mxu0
      %3610 = vmatprep.mubr.bf16.mxu0 %v1633
      %3611 = vmatmul.mubr.bf16.gmra.mxu0 %v1768
      %v3612 = vpop.f32.mrf.mxu0
      %v3613 = vadd.f32 %v3024, %v3612
      %v3614 = vpop.f32.mrf.mxu0
      %v3615 = vpop.f32.mrf.mxu0
      %v3616 = vadd.f32 %v3024, %v3615
      %v3617 = vpop.f32.mrf.mxu0
      %3618 = vmatprep.mubr.bf16.mxu0 %v1634
      %3619 = vmatmul.mubr.bf16.gmra.mxu0 %v1776
      %v3620 = vpop.f32.mrf.mxu0
      %v3621 = vadd.f32 %v3024, %v3620
      %v3622 = vpop.f32.mrf.mxu0
      %v3623 = vpop.f32.mrf.mxu0
      %v3624 = vadd.f32 %v3024, %v3623
      %v3625 = vpop.f32.mrf.mxu0
      %3626 = vmatprep.mubr.bf16.mxu0 %v1635
      %3627 = vmatmul.mubr.bf16.gmra.mxu0 %v1784
      %v3628 = vpop.f32.mrf.mxu0
      %v3629 = vadd.f32 %v3024, %v3628
      %v3630 = vpop.f32.mrf.mxu0
      %v3631 = vpop.f32.mrf.mxu0
      %v3632 = vadd.f32 %v3024, %v3631
      %v3633 = vpop.f32.mrf.mxu0
      %3634 = vmatprep.mubr.bf16.mxu0 %v1636
      %3635 = vmatmul.mubr.bf16.gmra.mxu0 %v1792
      %v3636 = vpop.f32.mrf.mxu0
      %v3637 = vadd.f32 %v3024, %v3636
      %v3638 = vpop.f32.mrf.mxu0
      %v3639 = vpop.f32.mrf.mxu0
      %v3640 = vadd.f32 %v3024, %v3639
      %v3641 = vpop.f32.mrf.mxu0
      %3642 = vmatprep.mubr.bf16.mxu0 %v1637
      %3643 = vmatmul.mubr.bf16.gmra.mxu0 %v1800
      %v3644 = vpop.f32.mrf.mxu0
      %v3645 = vadd.f32 %v3024, %v3644
      %v3646 = vpop.f32.mrf.mxu0
      %v3647 = vpop.f32.mrf.mxu0
      %v3648 = vadd.f32 %v3024, %v3647
      %v3649 = vpop.f32.mrf.mxu0
      %3650 = vmatprep.mubr.bf16.mxu0 %v1638
      %3651 = vmatmul.mubr.bf16.gmra.mxu0 %v1808
      %v3652 = vpop.f32.mrf.mxu0
      %v3653 = vadd.f32 %v3024, %v3652
      %v3654 = vpop.f32.mrf.mxu0
      %v3655 = vpop.f32.mrf.mxu0
      %v3656 = vadd.f32 %v3024, %v3655
      %v3657 = vpop.f32.mrf.mxu0
      %3658 = vmatprep.mubr.bf16.mxu0 %v1639
      %3659 = vmatmul.mubr.bf16.gmra.mxu0 %v1816
      %v3660 = vpop.f32.mrf.mxu0
      %v3661 = vadd.f32 %v3024, %v3660
      %v3662 = vpop.f32.mrf.mxu0
      %v3663 = vpop.f32.mrf.mxu0
      %v3664 = vadd.f32 %v3024, %v3663
      %v3665 = vpop.f32.mrf.mxu0
      %3666 = vmatprep.mubr.bf16.mxu0 %v1640
      %3667 = vmatmul.mubr.bf16.gmra.mxu0 %v1824
      %v3668 = vpop.f32.mrf.mxu0
      %v3669 = vadd.f32 %v3024, %v3668
      %v3670 = vpop.f32.mrf.mxu0
      %v3671 = vpop.f32.mrf.mxu0
      %v3672 = vadd.f32 %v3024, %v3671
      %v3673 = vpop.f32.mrf.mxu0
      %3674 = vmatprep.mubr.bf16.mxu0 %v1641
      %3675 = vmatmul.mubr.bf16.gmra.mxu0 %v1832
      %v3676 = vpop.f32.mrf.mxu0
      %v3677 = vadd.f32 %v3024, %v3676
      %v3678 = vpop.f32.mrf.mxu0
      %v3679 = vpop.f32.mrf.mxu0
      %v3680 = vadd.f32 %v3024, %v3679
      %v3681 = vpop.f32.mrf.mxu0
      %3682 = vdwg.mxu0
      %3683 = vmatprep.subr.bf16.mxu0 0
      %3684 = vmatpush1.bf16.msra.mxu0 %v3337
      %3685 = vmatprep.subr.bf16.mxu0 0
      %3686 = vmatpush1.bf16.msra.mxu0 %v3336
      %3687 = vmatprep.subr.bf16.mxu0 0
      %3688 = vmatpush1.bf16.msra.mxu0 %v3335
      %3689 = vmatprep.subr.bf16.mxu0 0
      %3690 = vmatpush1.bf16.msra.mxu0 %v3334
      %3691 = vmatprep.subr.bf16.mxu0 0
      %3692 = vmatpush1.bf16.msra.mxu0 %v3333
      %3693 = vmatprep.subr.bf16.mxu0 0
      %3694 = vmatpush1.bf16.msra.mxu0 %v3332
      %3695 = vmatprep.subr.bf16.mxu0 0
      %3696 = vmatpush1.bf16.msra.mxu0 %v3331
      %3697 = vmatprep.subr.bf16.mxu0 0
      %3698 = vmatpush1.bf16.msra.mxu0 %v3330
      %3699 = vmatprep.subr.bf16.mxu0 0
      %3700 = vmatpush2.bf16.msra.mxu0 %v3345
      %3701 = vmatprep.subr.bf16.mxu0 0
      %3702 = vmatpush2.bf16.msra.mxu0 %v3344
      %3703 = vmatprep.subr.bf16.mxu0 0
      %3704 = vmatpush2.bf16.msra.mxu0 %v3343
      %3705 = vmatprep.subr.bf16.mxu0 0
      %3706 = vmatpush2.bf16.msra.mxu0 %v3342
      %3707 = vmatprep.subr.bf16.mxu0 0
      %3708 = vmatpush2.bf16.msra.mxu0 %v3341
      %3709 = vmatprep.subr.bf16.mxu0 0
      %3710 = vmatpush2.bf16.msra.mxu0 %v3340
      %3711 = vmatprep.subr.bf16.mxu0 0
      %3712 = vmatpush2.bf16.msra.mxu0 %v3339
      %3713 = vmatprep.subr.bf16.mxu0 0
      %3714 = vmatpush2.bf16.msra.mxu0 %v3338
      %3715 = vmatprep.mubr.bf16.mxu0 %v2352
      %3716 = vmatmul.mubr.bf16.gmra.mxu0 %v1862
      %v3717 = vpop.f32.mrf.mxu0
      %v3718 = vadd.f32 %v3493, %v3717
      %v3719 = vpop.f32.mrf.mxu0
      %v3720 = vpop.f32.mrf.mxu0
      %v3721 = vadd.f32 %v3496, %v3720
      %v3722 = vpop.f32.mrf.mxu0
      %3723 = vmatprep.mubr.bf16.mxu0 %v2151
      %3724 = vmatmul.mubr.bf16.gmra.mxu0 %v1865
      %v3725 = vpop.f32.mrf.mxu0
      %v3726 = vadd.f32 %v3501, %v3725
      %v3727 = vpop.f32.mrf.mxu0
      %v3728 = vpop.f32.mrf.mxu0
      %v3729 = vadd.f32 %v3504, %v3728
      %v3730 = vpop.f32.mrf.mxu0
      %3731 = vmatprep.mubr.bf16.mxu0 %v2159
      %3732 = vmatmul.mubr.bf16.gmra.mxu0 %v1868
      %v3733 = vpop.f32.mrf.mxu0
      %v3734 = vadd.f32 %v3509, %v3733
      %v3735 = vpop.f32.mrf.mxu0
      %v3736 = vpop.f32.mrf.mxu0
      %v3737 = vadd.f32 %v3512, %v3736
      %v3738 = vpop.f32.mrf.mxu0
      %3739 = vmatprep.mubr.bf16.mxu0 %v2167
      %3740 = vmatmul.mubr.bf16.gmra.mxu0 %v1871
      %v3741 = vpop.f32.mrf.mxu0
      %v3742 = vadd.f32 %v3517, %v3741
      %v3743 = vpop.f32.mrf.mxu0
      %v3744 = vpop.f32.mrf.mxu0
      %v3745 = vadd.f32 %v3520, %v3744
      %v3746 = vpop.f32.mrf.mxu0
      %3747 = vmatprep.mubr.bf16.mxu0 %v2175
      %3748 = vmatmul.mubr.bf16.gmra.mxu0 %v1874
      %v3749 = vpop.f32.mrf.mxu0
      %v3750 = vadd.f32 %v3525, %v3749
      %v3751 = vpop.f32.mrf.mxu0
      %v3752 = vpop.f32.mrf.mxu0
      %v3753 = vadd.f32 %v3528, %v3752
      %v3754 = vpop.f32.mrf.mxu0
      %3755 = vmatprep.mubr.bf16.mxu0 %v2183
      %3756 = vmatmul.mubr.bf16.gmra.mxu0 %v1877
      %v3757 = vpop.f32.mrf.mxu0
      %v3758 = vadd.f32 %v3533, %v3757
      %v3759 = vpop.f32.mrf.mxu0
      %v3760 = vpop.f32.mrf.mxu0
      %v3761 = vadd.f32 %v3536, %v3760
      %v3762 = vpop.f32.mrf.mxu0
      %3763 = vmatprep.mubr.bf16.mxu0 %v2191
      %3764 = vmatmul.mubr.bf16.gmra.mxu0 %v1880
      %v3765 = vpop.f32.mrf.mxu0
      %v3766 = vadd.f32 %v3541, %v3765
      %v3767 = vpop.f32.mrf.mxu0
      %v3768 = vpop.f32.mrf.mxu0
      %v3769 = vadd.f32 %v3544, %v3768
      %v3770 = vpop.f32.mrf.mxu0
      %3771 = vmatprep.mubr.bf16.mxu0 %v2199
      %3772 = vmatmul.mubr.bf16.gmra.mxu0 %v1883
      %v3773 = vpop.f32.mrf.mxu0
      %v3774 = vadd.f32 %v3549, %v3773
      %v3775 = vpop.f32.mrf.mxu0
      %v3776 = vpop.f32.mrf.mxu0
      %v3777 = vadd.f32 %v3552, %v3776
      %v3778 = vpop.f32.mrf.mxu0
      %3779 = vmatprep.mubr.bf16.mxu0 %v2207
      %3780 = vmatmul.mubr.bf16.gmra.mxu0 %v1886
      %v3781 = vpop.f32.mrf.mxu0
      %v3782 = vadd.f32 %v3557, %v3781
      %v3783 = vpop.f32.mrf.mxu0
      %v3784 = vpop.f32.mrf.mxu0
      %v3785 = vadd.f32 %v3560, %v3784
      %v3786 = vpop.f32.mrf.mxu0
      %3787 = vmatprep.mubr.bf16.mxu0 %v2215
      %3788 = vmatmul.mubr.bf16.gmra.mxu0 %v1889
      %v3789 = vpop.f32.mrf.mxu0
      %v3790 = vadd.f32 %v3565, %v3789
      %v3791 = vpop.f32.mrf.mxu0
      %v3792 = vpop.f32.mrf.mxu0
      %v3793 = vadd.f32 %v3568, %v3792
      %v3794 = vpop.f32.mrf.mxu0
      %3795 = vmatprep.mubr.bf16.mxu0 %v2223
      %3796 = vmatmul.mubr.bf16.gmra.mxu0 %v1892
      %v3797 = vpop.f32.mrf.mxu0
      %v3798 = vadd.f32 %v3573, %v3797
      %v3799 = vpop.f32.mrf.mxu0
      %v3800 = vpop.f32.mrf.mxu0
      %v3801 = vadd.f32 %v3576, %v3800
      %v3802 = vpop.f32.mrf.mxu0
      %3803 = vmatprep.mubr.bf16.mxu0 %v2231
      %3804 = vmatmul.mubr.bf16.gmra.mxu0 %v1895
      %v3805 = vpop.f32.mrf.mxu0
      %v3806 = vadd.f32 %v3581, %v3805
      %v3807 = vpop.f32.mrf.mxu0
      %v3808 = vpop.f32.mrf.mxu0
      %v3809 = vadd.f32 %v3584, %v3808
      %v3810 = vpop.f32.mrf.mxu0
      %3811 = vmatprep.mubr.bf16.mxu0 %v2239
      %3812 = vmatmul.mubr.bf16.gmra.mxu0 %v1898
      %v3813 = vpop.f32.mrf.mxu0
      %v3814 = vadd.f32 %v3589, %v3813
      %v3815 = vpop.f32.mrf.mxu0
      %v3816 = vpop.f32.mrf.mxu0
      %v3817 = vadd.f32 %v3592, %v3816
      %v3818 = vpop.f32.mrf.mxu0
      %3819 = vmatprep.mubr.bf16.mxu0 %v2247
      %3820 = vmatmul.mubr.bf16.gmra.mxu0 %v1901
      %v3821 = vpop.f32.mrf.mxu0
      %v3822 = vadd.f32 %v3597, %v3821
      %v3823 = vpop.f32.mrf.mxu0
      %v3824 = vpop.f32.mrf.mxu0
      %v3825 = vadd.f32 %v3600, %v3824
      %v3826 = vpop.f32.mrf.mxu0
      %3827 = vmatprep.mubr.bf16.mxu0 %v2255
      %3828 = vmatmul.mubr.bf16.gmra.mxu0 %v1904
      %v3829 = vpop.f32.mrf.mxu0
      %v3830 = vadd.f32 %v3605, %v3829
      %v3831 = vpop.f32.mrf.mxu0
      %v3832 = vpop.f32.mrf.mxu0
      %v3833 = vadd.f32 %v3608, %v3832
      %v3834 = vpop.f32.mrf.mxu0
      %3835 = vmatprep.mubr.bf16.mxu0 %v2263
      %3836 = vmatmul.mubr.bf16.gmra.mxu0 %v1907
      %v3837 = vpop.f32.mrf.mxu0
      %v3838 = vadd.f32 %v3613, %v3837
      %v3839 = vpop.f32.mrf.mxu0
      %v3840 = vpop.f32.mrf.mxu0
      %v3841 = vadd.f32 %v3616, %v3840
      %v3842 = vpop.f32.mrf.mxu0
      %3843 = vmatprep.mubr.bf16.mxu0 %v2271
      %3844 = vmatmul.mubr.bf16.gmra.mxu0 %v1910
      %v3845 = vpop.f32.mrf.mxu0
      %v3846 = vadd.f32 %v3621, %v3845
      %v3847 = vpop.f32.mrf.mxu0
      %v3848 = vpop.f32.mrf.mxu0
      %v3849 = vadd.f32 %v3624, %v3848
      %v3850 = vpop.f32.mrf.mxu0
      %3851 = vmatprep.mubr.bf16.mxu0 %v2279
      %3852 = vmatmul.mubr.bf16.gmra.mxu0 %v1913
      %v3853 = vpop.f32.mrf.mxu0
      %v3854 = vadd.f32 %v3629, %v3853
      %v3855 = vpop.f32.mrf.mxu0
      %v3856 = vpop.f32.mrf.mxu0
      %v3857 = vadd.f32 %v3632, %v3856
      %v3858 = vpop.f32.mrf.mxu0
      %3859 = vmatprep.mubr.bf16.mxu0 %v2287
      %3860 = vmatmul.mubr.bf16.gmra.mxu0 %v1916
      %v3861 = vpop.f32.mrf.mxu0
      %v3862 = vadd.f32 %v3637, %v3861
      %v3863 = vpop.f32.mrf.mxu0
      %v3864 = vpop.f32.mrf.mxu0
      %v3865 = vadd.f32 %v3640, %v3864
      %v3866 = vpop.f32.mrf.mxu0
      %3867 = vmatprep.mubr.bf16.mxu0 %v2295
      %3868 = vmatmul.mubr.bf16.gmra.mxu0 %v1919
      %v3869 = vpop.f32.mrf.mxu0
      %v3870 = vadd.f32 %v3645, %v3869
      %v3871 = vpop.f32.mrf.mxu0
      %v3872 = vpop.f32.mrf.mxu0
      %v3873 = vadd.f32 %v3648, %v3872
      %v3874 = vpop.f32.mrf.mxu0
      %3875 = vmatprep.mubr.bf16.mxu0 %v2303
      %3876 = vmatmul.mubr.bf16.gmra.mxu0 %v1922
      %v3877 = vpop.f32.mrf.mxu0
      %v3878 = vadd.f32 %v3653, %v3877
      %v3879 = vpop.f32.mrf.mxu0
      %v3880 = vpop.f32.mrf.mxu0
      %v3881 = vadd.f32 %v3656, %v3880
      %v3882 = vpop.f32.mrf.mxu0
      %3883 = vmatprep.mubr.bf16.mxu0 %v2311
      %3884 = vmatmul.mubr.bf16.gmra.mxu0 %v1925
      %v3885 = vpop.f32.mrf.mxu0
      %v3886 = vadd.f32 %v3661, %v3885
      %v3887 = vpop.f32.mrf.mxu0
      %v3888 = vpop.f32.mrf.mxu0
      %v3889 = vadd.f32 %v3664, %v3888
      %v3890 = vpop.f32.mrf.mxu0
      %3891 = vmatprep.mubr.bf16.mxu0 %v2319
      %3892 = vmatmul.mubr.bf16.gmra.mxu0 %v1928
      %v3893 = vpop.f32.mrf.mxu0
      %v3894 = vadd.f32 %v3669, %v3893
      %v3895 = vpop.f32.mrf.mxu0
      %v3896 = vpop.f32.mrf.mxu0
      %v3897 = vadd.f32 %v3672, %v3896
      %v3898 = vpop.f32.mrf.mxu0
      %3899 = vmatprep.mubr.bf16.mxu0 %v2327
      %3900 = vmatmul.mubr.bf16.gmra.mxu0 %v1962
      %v3901 = vpop.f32.mrf.mxu0
      %v3902 = vadd.f32 %v3677, %v3901
      %v3903 = vpop.f32.mrf.mxu0
      %v3904 = vpop.f32.mrf.mxu0
      %v3905 = vadd.f32 %v3680, %v3904
      %v3906 = vpop.f32.mrf.mxu0
      %3907 = vdwg.mxu0
      %3908 = vmatprep.subr.bf16.mxu0 0
      %3909 = vmatpush1.bf16.msra.mxu0 %v3353
      %3910 = vmatprep.subr.bf16.mxu0 0
      %3911 = vmatpush1.bf16.msra.mxu0 %v3352
      %3912 = vmatprep.subr.bf16.mxu0 0
      %3913 = vmatpush1.bf16.msra.mxu0 %v3351
      %3914 = vmatprep.subr.bf16.mxu0 0
      %3915 = vmatpush1.bf16.msra.mxu0 %v3350
      %3916 = vmatprep.subr.bf16.mxu0 0
      %3917 = vmatpush1.bf16.msra.mxu0 %v3349
      %3918 = vmatprep.subr.bf16.mxu0 0
      %3919 = vmatpush1.bf16.msra.mxu0 %v3348
      %3920 = vmatprep.subr.bf16.mxu0 0
      %3921 = vmatpush1.bf16.msra.mxu0 %v3347
      %3922 = vmatprep.subr.bf16.mxu0 0
      %3923 = vmatpush1.bf16.msra.mxu0 %v3346
      %3924 = vmatprep.subr.bf16.mxu0 0
      %3925 = vmatpush2.bf16.msra.mxu0 %v3361
      %3926 = vmatprep.subr.bf16.mxu0 0
      %3927 = vmatpush2.bf16.msra.mxu0 %v3360
      %3928 = vmatprep.subr.bf16.mxu0 0
      %3929 = vmatpush2.bf16.msra.mxu0 %v3359
      %3930 = vmatprep.subr.bf16.mxu0 0
      %3931 = vmatpush2.bf16.msra.mxu0 %v3358
      %3932 = vmatprep.subr.bf16.mxu0 0
      %3933 = vmatpush2.bf16.msra.mxu0 %v3357
      %3934 = vmatprep.subr.bf16.mxu0 0
      %3935 = vmatpush2.bf16.msra.mxu0 %v3356
      %3936 = vmatprep.subr.bf16.mxu0 0
      %3937 = vmatpush2.bf16.msra.mxu0 %v3355
      %3938 = vmatprep.subr.bf16.mxu0 0
      %3939 = vmatpush2.bf16.msra.mxu0 %v3354
      %3940 = vmatprep.mubr.bf16.mxu0 %v2356
      %3941 = vmatmul.mubr.bf16.gmra.mxu0 %v2113
      %v3942 = vpop.f32.mrf.mxu0
      %v3943 = vadd.f32 %v3718, %v3942
      %v3944 = vpop.f32.mrf.mxu0
      %v3945 = vpop.f32.mrf.mxu0
      %v3946 = vadd.f32 %v3721, %v3945
      %v3947 = vpop.f32.mrf.mxu0
      %3948 = vmatprep.mubr.bf16.mxu0 %v2359
      %3949 = vmatmul.mubr.bf16.gmra.mxu0 %v2114
      %v3950 = vpop.f32.mrf.mxu0
      %v3951 = vadd.f32 %v3726, %v3950
      %v3952 = vpop.f32.mrf.mxu0
      %v3953 = vpop.f32.mrf.mxu0
      %v3954 = vadd.f32 %v3729, %v3953
      %v3955 = vpop.f32.mrf.mxu0
      %3956 = vmatprep.mubr.bf16.mxu0 %v2362
      %3957 = vmatmul.mubr.bf16.gmra.mxu0 %v2115
      %v3958 = vpop.f32.mrf.mxu0
      %v3959 = vadd.f32 %v3734, %v3958
      %v3960 = vpop.f32.mrf.mxu0
      %v3961 = vpop.f32.mrf.mxu0
      %v3962 = vadd.f32 %v3737, %v3961
      %v3963 = vpop.f32.mrf.mxu0
      %3964 = vmatprep.mubr.bf16.mxu0 %v2365
      %3965 = vmatmul.mubr.bf16.gmra.mxu0 %v2116
      %v3966 = vpop.f32.mrf.mxu0
      %v3967 = vadd.f32 %v3742, %v3966
      %v3968 = vpop.f32.mrf.mxu0
      %v3969 = vpop.f32.mrf.mxu0
      %v3970 = vadd.f32 %v3745, %v3969
      %v3971 = vpop.f32.mrf.mxu0
      %3972 = vmatprep.mubr.bf16.mxu0 %v2368
      %3973 = vmatmul.mubr.bf16.gmra.mxu0 %v2117
      %v3974 = vpop.f32.mrf.mxu0
      %v3975 = vadd.f32 %v3750, %v3974
      %v3976 = vpop.f32.mrf.mxu0
      %v3977 = vpop.f32.mrf.mxu0
      %v3978 = vadd.f32 %v3753, %v3977
      %v3979 = vpop.f32.mrf.mxu0
      %3980 = vmatprep.mubr.bf16.mxu0 %v2371
      %3981 = vmatmul.mubr.bf16.gmra.mxu0 %v2118
      %v3982 = vpop.f32.mrf.mxu0
      %v3983 = vadd.f32 %v3758, %v3982
      %v3984 = vpop.f32.mrf.mxu0
      %v3985 = vpop.f32.mrf.mxu0
      %v3986 = vadd.f32 %v3761, %v3985
      %v3987 = vpop.f32.mrf.mxu0
      %3988 = vmatprep.mubr.bf16.mxu0 %v2374
      %3989 = vmatmul.mubr.bf16.gmra.mxu0 %v2119
      %v3990 = vpop.f32.mrf.mxu0
      %v3991 = vadd.f32 %v3766, %v3990
      %v3992 = vpop.f32.mrf.mxu0
      %v3993 = vpop.f32.mrf.mxu0
      %v3994 = vadd.f32 %v3769, %v3993
      %v3995 = vpop.f32.mrf.mxu0
      %3996 = vmatprep.mubr.bf16.mxu0 %v2377
      %3997 = vmatmul.mubr.bf16.gmra.mxu0 %v2120
      %v3998 = vpop.f32.mrf.mxu0
      %v3999 = vadd.f32 %v3774, %v3998
      %v4000 = vpop.f32.mrf.mxu0
      %v4001 = vpop.f32.mrf.mxu0
      %v4002 = vadd.f32 %v3777, %v4001
      %v4003 = vpop.f32.mrf.mxu0
      %4004 = vmatprep.mubr.bf16.mxu0 %v2380
      %4005 = vmatmul.mubr.bf16.gmra.mxu0 %v2121
      %v4006 = vpop.f32.mrf.mxu0
      %v4007 = vadd.f32 %v3782, %v4006
      %v4008 = vpop.f32.mrf.mxu0
      %v4009 = vpop.f32.mrf.mxu0
      %v4010 = vadd.f32 %v3785, %v4009
      %v4011 = vpop.f32.mrf.mxu0
      %4012 = vmatprep.mubr.bf16.mxu0 %v2383
      %4013 = vmatmul.mubr.bf16.gmra.mxu0 %v2122
      %v4014 = vpop.f32.mrf.mxu0
      %v4015 = vadd.f32 %v3790, %v4014
      %v4016 = vpop.f32.mrf.mxu0
      %v4017 = vpop.f32.mrf.mxu0
      %v4018 = vadd.f32 %v3793, %v4017
      %v4019 = vpop.f32.mrf.mxu0
      %4020 = vmatprep.mubr.bf16.mxu0 %v2386
      %4021 = vmatmul.mubr.bf16.gmra.mxu0 %v2123
      %v4022 = vpop.f32.mrf.mxu0
      %v4023 = vadd.f32 %v3798, %v4022
      %v4024 = vpop.f32.mrf.mxu0
      %v4025 = vpop.f32.mrf.mxu0
      %v4026 = vadd.f32 %v3801, %v4025
      %v4027 = vpop.f32.mrf.mxu0
      %4028 = vmatprep.mubr.bf16.mxu0 %v2389
      %4029 = vmatmul.mubr.bf16.gmra.mxu0 %v2124
      %v4030 = vpop.f32.mrf.mxu0
      %v4031 = vadd.f32 %v3806, %v4030
      %v4032 = vpop.f32.mrf.mxu0
      %v4033 = vpop.f32.mrf.mxu0
      %v4034 = vadd.f32 %v3809, %v4033
      %v4035 = vpop.f32.mrf.mxu0
      %4036 = vmatprep.mubr.bf16.mxu0 %v2392
      %4037 = vmatmul.mubr.bf16.gmra.mxu0 %v2125
      %v4038 = vpop.f32.mrf.mxu0
      %v4039 = vadd.f32 %v3814, %v4038
      %v4040 = vpop.f32.mrf.mxu0
      %v4041 = vpop.f32.mrf.mxu0
      %v4042 = vadd.f32 %v3817, %v4041
      %v4043 = vpop.f32.mrf.mxu0
      %4044 = vmatprep.mubr.bf16.mxu0 %v2395
      %4045 = vmatmul.mubr.bf16.gmra.mxu0 %v2126
      %v4046 = vpop.f32.mrf.mxu0
      %v4047 = vadd.f32 %v3822, %v4046
      %v4048 = vpop.f32.mrf.mxu0
      %v4049 = vpop.f32.mrf.mxu0
      %v4050 = vadd.f32 %v3825, %v4049
      %v4051 = vpop.f32.mrf.mxu0
      %4052 = vmatprep.mubr.bf16.mxu0 %v2398
      %4053 = vmatmul.mubr.bf16.gmra.mxu0 %v2127
      %v4054 = vpop.f32.mrf.mxu0
      %v4055 = vadd.f32 %v3830, %v4054
      %v4056 = vpop.f32.mrf.mxu0
      %v4057 = vpop.f32.mrf.mxu0
      %v4058 = vadd.f32 %v3833, %v4057
      %v4059 = vpop.f32.mrf.mxu0
      %4060 = vmatprep.mubr.bf16.mxu0 %v2401
      %4061 = vmatmul.mubr.bf16.gmra.mxu0 %v2128
      %v4062 = vpop.f32.mrf.mxu0
      %v4063 = vadd.f32 %v3838, %v4062
      %v4064 = vpop.f32.mrf.mxu0
      %v4065 = vpop.f32.mrf.mxu0
      %v4066 = vadd.f32 %v3841, %v4065
      %v4067 = vpop.f32.mrf.mxu0
      %4068 = vmatprep.mubr.bf16.mxu0 %v2404
      %4069 = vmatmul.mubr.bf16.gmra.mxu0 %v2129
      %v4070 = vpop.f32.mrf.mxu0
      %v4071 = vadd.f32 %v3846, %v4070
      %v4072 = vpop.f32.mrf.mxu0
      %v4073 = vpop.f32.mrf.mxu0
      %v4074 = vadd.f32 %v3849, %v4073
      %v4075 = vpop.f32.mrf.mxu0
      %4076 = vmatprep.mubr.bf16.mxu0 %v2407
      %4077 = vmatmul.mubr.bf16.gmra.mxu0 %v2130
      %v4078 = vpop.f32.mrf.mxu0
      %v4079 = vadd.f32 %v3854, %v4078
      %v4080 = vpop.f32.mrf.mxu0
      %v4081 = vpop.f32.mrf.mxu0
      %v4082 = vadd.f32 %v3857, %v4081
      %v4083 = vpop.f32.mrf.mxu0
      %4084 = vmatprep.mubr.bf16.mxu0 %v2410
      %4085 = vmatmul.mubr.bf16.gmra.mxu0 %v2131
      %v4086 = vpop.f32.mrf.mxu0
      %v4087 = vadd.f32 %v3862, %v4086
      %v4088 = vpop.f32.mrf.mxu0
      %v4089 = vpop.f32.mrf.mxu0
      %v4090 = vadd.f32 %v3865, %v4089
      %v4091 = vpop.f32.mrf.mxu0
      %4092 = vmatprep.mubr.bf16.mxu0 %v2413
      %4093 = vmatmul.mubr.bf16.gmra.mxu0 %v2132
      %v4094 = vpop.f32.mrf.mxu0
      %v4095 = vadd.f32 %v3870, %v4094
      %v4096 = vpop.f32.mrf.mxu0
      %v4097 = vpop.f32.mrf.mxu0
      %v4098 = vadd.f32 %v3873, %v4097
      %v4099 = vpop.f32.mrf.mxu0
      %4100 = vmatprep.mubr.bf16.mxu0 %v2416
      %4101 = vmatmul.mubr.bf16.gmra.mxu0 %v2133
      %v4102 = vpop.f32.mrf.mxu0
      %v4103 = vadd.f32 %v3878, %v4102
      %v4104 = vpop.f32.mrf.mxu0
      %v4105 = vpop.f32.mrf.mxu0
      %v4106 = vadd.f32 %v3881, %v4105
      %v4107 = vpop.f32.mrf.mxu0
      %4108 = vmatprep.mubr.bf16.mxu0 %v2419
      %4109 = vmatmul.mubr.bf16.gmra.mxu0 %v2134
      %v4110 = vpop.f32.mrf.mxu0
      %v4111 = vadd.f32 %v3886, %v4110
      %v4112 = vpop.f32.mrf.mxu0
      %v4113 = vpop.f32.mrf.mxu0
      %v4114 = vadd.f32 %v3889, %v4113
      %v4115 = vpop.f32.mrf.mxu0
      %4116 = vmatprep.mubr.bf16.mxu0 %v2422
      %4117 = vmatmul.mubr.bf16.gmra.mxu0 %v2135
      %v4118 = vpop.f32.mrf.mxu0
      %v4119 = vadd.f32 %v3894, %v4118
      %v4120 = vpop.f32.mrf.mxu0
      %v4121 = vpop.f32.mrf.mxu0
      %v4122 = vadd.f32 %v3897, %v4121
      %v4123 = vpop.f32.mrf.mxu0
      %4124 = vmatprep.mubr.bf16.mxu0 %v2454
      %4125 = vmatmul.mubr.bf16.gmra.mxu0 %v2136
      %v4126 = vpop.f32.mrf.mxu0
      %v4127 = vadd.f32 %v3902, %v4126
      %v4128 = vpop.f32.mrf.mxu0
      %v4129 = vpop.f32.mrf.mxu0
      %v4130 = vadd.f32 %v3905, %v4129
      %v4131 = vpop.f32.mrf.mxu0
      %4132 = vdwg.mxu0
      %4133 = vmatprep.subr.bf16.mxu0 0
      %4134 = vmatpush1.bf16.msra.mxu0 %v3369
      %4135 = vmatprep.subr.bf16.mxu0 0
      %4136 = vmatpush1.bf16.msra.mxu0 %v3368
      %4137 = vmatprep.subr.bf16.mxu0 0
      %4138 = vmatpush1.bf16.msra.mxu0 %v3367
      %4139 = vmatprep.subr.bf16.mxu0 0
      %4140 = vmatpush1.bf16.msra.mxu0 %v3366
      %4141 = vmatprep.subr.bf16.mxu0 0
      %4142 = vmatpush1.bf16.msra.mxu0 %v3365
      %4143 = vmatprep.subr.bf16.mxu0 0
      %4144 = vmatpush1.bf16.msra.mxu0 %v3364
      %4145 = vmatprep.subr.bf16.mxu0 0
      %4146 = vmatpush1.bf16.msra.mxu0 %v3363
      %4147 = vmatprep.subr.bf16.mxu0 0
      %4148 = vmatpush1.bf16.msra.mxu0 %v3362
      %4149 = vmatprep.subr.bf16.mxu0 0
      %4150 = vmatpush2.bf16.msra.mxu0 %v3377
      %4151 = vmatprep.subr.bf16.mxu0 0
      %4152 = vmatpush2.bf16.msra.mxu0 %v3376
      %4153 = vmatprep.subr.bf16.mxu0 0
      %4154 = vmatpush2.bf16.msra.mxu0 %v3375
      %4155 = vmatprep.subr.bf16.mxu0 0
      %4156 = vmatpush2.bf16.msra.mxu0 %v3374
      %4157 = vmatprep.subr.bf16.mxu0 0
      %4158 = vmatpush2.bf16.msra.mxu0 %v3373
      %4159 = vmatprep.subr.bf16.mxu0 0
      %4160 = vmatpush2.bf16.msra.mxu0 %v3372
      %4161 = vmatprep.subr.bf16.mxu0 0
      %4162 = vmatpush2.bf16.msra.mxu0 %v3371
      %4163 = vmatprep.subr.bf16.mxu0 0
      %4164 = vmatpush2.bf16.msra.mxu0 %v3370
      %4165 = vmatprep.mubr.bf16.mxu0 %v2606
      %4166 = vmatmul.mubr.bf16.gmra.mxu0 %v2845
      %v4167 = vpop.f32.mrf.mxu0
      %v4168 = vadd.f32 %v3943, %v4167
      %v4169 = vpop.f32.mrf.mxu0
      %v4170 = vpop.f32.mrf.mxu0
      %v4171 = vadd.f32 %v3946, %v4170
      %v4172 = vpop.f32.mrf.mxu0
      %4173 = vmatprep.mubr.bf16.mxu0 %v2607
      %4174 = vmatmul.mubr.bf16.gmra.mxu0 %v2644
      %v4175 = vpop.f32.mrf.mxu0
      %v4176 = vadd.f32 %v3951, %v4175
      %v4177 = vpop.f32.mrf.mxu0
      %v4178 = vpop.f32.mrf.mxu0
      %v4179 = vadd.f32 %v3954, %v4178
      %v4180 = vpop.f32.mrf.mxu0
      %4181 = vmatprep.mubr.bf16.mxu0 %v2608
      %4182 = vmatmul.mubr.bf16.gmra.mxu0 %v2652
      %v4183 = vpop.f32.mrf.mxu0
      %v4184 = vadd.f32 %v3959, %v4183
      %v4185 = vpop.f32.mrf.mxu0
      %v4186 = vpop.f32.mrf.mxu0
      %v4187 = vadd.f32 %v3962, %v4186
      %v4188 = vpop.f32.mrf.mxu0
      %4189 = vmatprep.mubr.bf16.mxu0 %v2609
      %4190 = vmatmul.mubr.bf16.gmra.mxu0 %v2660
      %v4191 = vpop.f32.mrf.mxu0
      %v4192 = vadd.f32 %v3967, %v4191
      %v4193 = vpop.f32.mrf.mxu0
      %v4194 = vpop.f32.mrf.mxu0
      %v4195 = vadd.f32 %v3970, %v4194
      %v4196 = vpop.f32.mrf.mxu0
      %4197 = vmatprep.mubr.bf16.mxu0 %v2610
      %4198 = vmatmul.mubr.bf16.gmra.mxu0 %v2668
      %v4199 = vpop.f32.mrf.mxu0
      %v4200 = vadd.f32 %v3975, %v4199
      %v4201 = vpop.f32.mrf.mxu0
      %v4202 = vpop.f32.mrf.mxu0
      %v4203 = vadd.f32 %v3978, %v4202
      %v4204 = vpop.f32.mrf.mxu0
      %4205 = vmatprep.mubr.bf16.mxu0 %v2611
      %4206 = vmatmul.mubr.bf16.gmra.mxu0 %v2676
      %v4207 = vpop.f32.mrf.mxu0
      %v4208 = vadd.f32 %v3983, %v4207
      %v4209 = vpop.f32.mrf.mxu0
      %v4210 = vpop.f32.mrf.mxu0
      %v4211 = vadd.f32 %v3986, %v4210
      %v4212 = vpop.f32.mrf.mxu0
      %4213 = vmatprep.mubr.bf16.mxu0 %v2612
      %4214 = vmatmul.mubr.bf16.gmra.mxu0 %v2684
      %v4215 = vpop.f32.mrf.mxu0
      %v4216 = vadd.f32 %v3991, %v4215
      %v4217 = vpop.f32.mrf.mxu0
      %v4218 = vpop.f32.mrf.mxu0
      %v4219 = vadd.f32 %v3994, %v4218
      %v4220 = vpop.f32.mrf.mxu0
      %4221 = vmatprep.mubr.bf16.mxu0 %v2613
      %4222 = vmatmul.mubr.bf16.gmra.mxu0 %v2692
      %v4223 = vpop.f32.mrf.mxu0
      %v4224 = vadd.f32 %v3999, %v4223
      %v4225 = vpop.f32.mrf.mxu0
      %v4226 = vpop.f32.mrf.mxu0
      %v4227 = vadd.f32 %v4002, %v4226
      %v4228 = vpop.f32.mrf.mxu0
      %4229 = vmatprep.mubr.bf16.mxu0 %v2614
      %4230 = vmatmul.mubr.bf16.gmra.mxu0 %v2700
      %v4231 = vpop.f32.mrf.mxu0
      %v4232 = vadd.f32 %v4007, %v4231
      %v4233 = vpop.f32.mrf.mxu0
      %v4234 = vpop.f32.mrf.mxu0
      %v4235 = vadd.f32 %v4010, %v4234
      %v4236 = vpop.f32.mrf.mxu0
      %4237 = vmatprep.mubr.bf16.mxu0 %v2615
      %4238 = vmatmul.mubr.bf16.gmra.mxu0 %v2708
      %v4239 = vpop.f32.mrf.mxu0
      %v4240 = vadd.f32 %v4015, %v4239
      %v4241 = vpop.f32.mrf.mxu0
      %v4242 = vpop.f32.mrf.mxu0
      %v4243 = vadd.f32 %v4018, %v4242
      %v4244 = vpop.f32.mrf.mxu0
      %4245 = vmatprep.mubr.bf16.mxu0 %v2616
      %4246 = vmatmul.mubr.bf16.gmra.mxu0 %v2716
      %v4247 = vpop.f32.mrf.mxu0
      %v4248 = vadd.f32 %v4023, %v4247
      %v4249 = vpop.f32.mrf.mxu0
      %v4250 = vpop.f32.mrf.mxu0
      %v4251 = vadd.f32 %v4026, %v4250
      %v4252 = vpop.f32.mrf.mxu0
      %4253 = vmatprep.mubr.bf16.mxu0 %v2617
      %4254 = vmatmul.mubr.bf16.gmra.mxu0 %v2724
      %v4255 = vpop.f32.mrf.mxu0
      %v4256 = vadd.f32 %v4031, %v4255
      %v4257 = vpop.f32.mrf.mxu0
      %v4258 = vpop.f32.mrf.mxu0
      %v4259 = vadd.f32 %v4034, %v4258
      %v4260 = vpop.f32.mrf.mxu0
      %4261 = vmatprep.mubr.bf16.mxu0 %v2618
      %4262 = vmatmul.mubr.bf16.gmra.mxu0 %v2732
      %v4263 = vpop.f32.mrf.mxu0
      %v4264 = vadd.f32 %v4039, %v4263
      %v4265 = vpop.f32.mrf.mxu0
      %v4266 = vpop.f32.mrf.mxu0
      %v4267 = vadd.f32 %v4042, %v4266
      %v4268 = vpop.f32.mrf.mxu0
      %4269 = vmatprep.mubr.bf16.mxu0 %v2619
      %4270 = vmatmul.mubr.bf16.gmra.mxu0 %v2740
      %v4271 = vpop.f32.mrf.mxu0
      %v4272 = vadd.f32 %v4047, %v4271
      %v4273 = vpop.f32.mrf.mxu0
      %v4274 = vpop.f32.mrf.mxu0
      %v4275 = vadd.f32 %v4050, %v4274
      %v4276 = vpop.f32.mrf.mxu0
      %4277 = vmatprep.mubr.bf16.mxu0 %v2620
      %4278 = vmatmul.mubr.bf16.gmra.mxu0 %v2748
      %v4279 = vpop.f32.mrf.mxu0
      %v4280 = vadd.f32 %v4055, %v4279
      %v4281 = vpop.f32.mrf.mxu0
      %v4282 = vpop.f32.mrf.mxu0
      %v4283 = vadd.f32 %v4058, %v4282
      %v4284 = vpop.f32.mrf.mxu0
      %4285 = vmatprep.mubr.bf16.mxu0 %v2621
      %4286 = vmatmul.mubr.bf16.gmra.mxu0 %v2756
      %v4287 = vpop.f32.mrf.mxu0
      %v4288 = vadd.f32 %v4063, %v4287
      %v4289 = vpop.f32.mrf.mxu0
      %v4290 = vpop.f32.mrf.mxu0
      %v4291 = vadd.f32 %v4066, %v4290
      %v4292 = vpop.f32.mrf.mxu0
      %4293 = vmatprep.mubr.bf16.mxu0 %v2622
      %4294 = vmatmul.mubr.bf16.gmra.mxu0 %v2764
      %v4295 = vpop.f32.mrf.mxu0
      %v4296 = vadd.f32 %v4071, %v4295
      %v4297 = vpop.f32.mrf.mxu0
      %v4298 = vpop.f32.mrf.mxu0
      %v4299 = vadd.f32 %v4074, %v4298
      %v4300 = vpop.f32.mrf.mxu0
      %4301 = vmatprep.mubr.bf16.mxu0 %v2623
      %4302 = vmatmul.mubr.bf16.gmra.mxu0 %v2772
      %v4303 = vpop.f32.mrf.mxu0
      %v4304 = vadd.f32 %v4079, %v4303
      %v4305 = vpop.f32.mrf.mxu0
      %v4306 = vpop.f32.mrf.mxu0
      %v4307 = vadd.f32 %v4082, %v4306
      %v4308 = vpop.f32.mrf.mxu0
      %4309 = vmatprep.mubr.bf16.mxu0 %v2624
      %4310 = vmatmul.mubr.bf16.gmra.mxu0 %v2780
      %v4311 = vpop.f32.mrf.mxu0
      %v4312 = vadd.f32 %v4087, %v4311
      %v4313 = vpop.f32.mrf.mxu0
      %v4314 = vpop.f32.mrf.mxu0
      %v4315 = vadd.f32 %v4090, %v4314
      %v4316 = vpop.f32.mrf.mxu0
      %4317 = vmatprep.mubr.bf16.mxu0 %v2625
      %4318 = vmatmul.mubr.bf16.gmra.mxu0 %v2788
      %v4319 = vpop.f32.mrf.mxu0
      %v4320 = vadd.f32 %v4095, %v4319
      %v4321 = vpop.f32.mrf.mxu0
      %v4322 = vpop.f32.mrf.mxu0
      %v4323 = vadd.f32 %v4098, %v4322
      %v4324 = vpop.f32.mrf.mxu0
      %4325 = vmatprep.mubr.bf16.mxu0 %v2626
      %4326 = vmatmul.mubr.bf16.gmra.mxu0 %v2796
      %v4327 = vpop.f32.mrf.mxu0
      %v4328 = vadd.f32 %v4103, %v4327
      %v4329 = vpop.f32.mrf.mxu0
      %v4330 = vpop.f32.mrf.mxu0
      %v4331 = vadd.f32 %v4106, %v4330
      %v4332 = vpop.f32.mrf.mxu0
      %4333 = vmatprep.mubr.bf16.mxu0 %v2627
      %4334 = vmatmul.mubr.bf16.gmra.mxu0 %v2804
      %v4335 = vpop.f32.mrf.mxu0
      %v4336 = vadd.f32 %v4111, %v4335
      %v4337 = vpop.f32.mrf.mxu0
      %v4338 = vpop.f32.mrf.mxu0
      %v4339 = vadd.f32 %v4114, %v4338
      %v4340 = vpop.f32.mrf.mxu0
      %4341 = vmatprep.mubr.bf16.mxu0 %v2628
      %4342 = vmatmul.mubr.bf16.gmra.mxu0 %v2812
      %v4343 = vpop.f32.mrf.mxu0
      %v4344 = vadd.f32 %v4119, %v4343
      %v4345 = vpop.f32.mrf.mxu0
      %v4346 = vpop.f32.mrf.mxu0
      %v4347 = vadd.f32 %v4122, %v4346
      %v4348 = vpop.f32.mrf.mxu0
      %4349 = vmatprep.mubr.bf16.mxu0 %v2629
      %4350 = vmatmul.mubr.bf16.gmra.mxu0 %v2820
      %v4351 = vpop.f32.mrf.mxu0
      %v4352 = vadd.f32 %v4127, %v4351
      %v4353 = vpop.f32.mrf.mxu0
      %v4354 = vpop.f32.mrf.mxu0
      %v4355 = vadd.f32 %v4130, %v4354
      %v4356 = vpop.f32.mrf.mxu0
      %4357 = vdwg.mxu0
      %4358 = vmatprep.subr.bf16.mxu0 0
      %4359 = vmatpush1.bf16.msra.mxu0 %v3385
      %4360 = vmatprep.subr.bf16.mxu0 0
      %4361 = vmatpush1.bf16.msra.mxu0 %v3384
      %4362 = vmatprep.subr.bf16.mxu0 0
      %4363 = vmatpush1.bf16.msra.mxu0 %v3383
      %4364 = vmatprep.subr.bf16.mxu0 0
      %4365 = vmatpush1.bf16.msra.mxu0 %v3382
      %4366 = vmatprep.subr.bf16.mxu0 0
      %4367 = vmatpush1.bf16.msra.mxu0 %v3381
      %4368 = vmatprep.subr.bf16.mxu0 0
      %4369 = vmatpush1.bf16.msra.mxu0 %v3380
      %4370 = vmatprep.subr.bf16.mxu0 0
      %4371 = vmatpush1.bf16.msra.mxu0 %v3379
      %4372 = vmatprep.subr.bf16.mxu0 0
      %4373 = vmatpush1.bf16.msra.mxu0 %v3378
      %4374 = vmatprep.subr.bf16.mxu0 0
      %4375 = vmatpush2.bf16.msra.mxu0 0
      %4376 = vmatprep.subr.bf16.mxu0 0
      %4377 = vmatpush2.bf16.msra.mxu0 0
      %4378 = vmatprep.subr.bf16.mxu0 0
      %4379 = vmatpush2.bf16.msra.mxu0 0
      %4380 = vmatprep.subr.bf16.mxu0 0
      %4381 = vmatpush2.bf16.msra.mxu0 0
      %4382 = vmatprep.subr.bf16.mxu0 0
      %4383 = vmatpush2.bf16.msra.mxu0 0
      %4384 = vmatprep.subr.bf16.mxu0 0
      %4385 = vmatpush2.bf16.msra.mxu0 0
      %4386 = vmatprep.subr.bf16.mxu0 0
      %4387 = vmatpush2.bf16.msra.mxu0 0
      %4388 = vmatprep.subr.bf16.mxu0 0
      %4389 = vmatpush2.bf16.msra.mxu0 0
      %4390 = vmatprep.mubr.bf16.mxu0 0
      %4391 = vmatmul.mubr.bf16.gmra.mxu0 %v2849
      %v4392 = vpop.f32.mrf.mxu0
      %v4393 = vadd.f32 %v4168, %v4392
      %v4394 = vpop.f32.mrf.mxu0
      %v4395 = vpop.f32.mrf.mxu0
      %v4396 = vadd.f32 %v4171, %v4395
      %v4397 = vpop.f32.mrf.mxu0
      %4398 = vmatprep.mubr.bf16.mxu0 0
      %4399 = vmatmul.mubr.bf16.gmra.mxu0 %v2852
      %v4400 = vpop.f32.mrf.mxu0
      %v4401 = vadd.f32 %v4176, %v4400
      %v4402 = vpop.f32.mrf.mxu0
      %v4403 = vpop.f32.mrf.mxu0
      %v4404 = vadd.f32 %v4179, %v4403
      %v4405 = vpop.f32.mrf.mxu0
      %4406 = vmatprep.mubr.bf16.mxu0 0
      %4407 = vmatmul.mubr.bf16.gmra.mxu0 %v2855
      %v4408 = vpop.f32.mrf.mxu0
      %v4409 = vadd.f32 %v4184, %v4408
      %v4410 = vpop.f32.mrf.mxu0
      %v4411 = vpop.f32.mrf.mxu0
      %v4412 = vadd.f32 %v4187, %v4411
      %v4413 = vpop.f32.mrf.mxu0
      %4414 = vmatprep.mubr.bf16.mxu0 0
      %4415 = vmatmul.mubr.bf16.gmra.mxu0 %v2858
      %v4416 = vpop.f32.mrf.mxu0
      %v4417 = vadd.f32 %v4192, %v4416
      %v4418 = vpop.f32.mrf.mxu0
      %v4419 = vpop.f32.mrf.mxu0
      %v4420 = vadd.f32 %v4195, %v4419
      %v4421 = vpop.f32.mrf.mxu0
      %4422 = vmatprep.mubr.bf16.mxu0 0
      %4423 = vmatmul.mubr.bf16.gmra.mxu0 %v2861
      %v4424 = vpop.f32.mrf.mxu0
      %v4425 = vadd.f32 %v4200, %v4424
      %v4426 = vpop.f32.mrf.mxu0
      %v4427 = vpop.f32.mrf.mxu0
      %v4428 = vadd.f32 %v4203, %v4427
      %v4429 = vpop.f32.mrf.mxu0
      %4430 = vmatprep.mubr.bf16.mxu0 0
      %4431 = vmatmul.mubr.bf16.gmra.mxu0 %v2864
      %v4432 = vpop.f32.mrf.mxu0
      %v4433 = vadd.f32 %v4208, %v4432
      %v4434 = vpop.f32.mrf.mxu0
      %v4435 = vpop.f32.mrf.mxu0
      %v4436 = vadd.f32 %v4211, %v4435
      %v4437 = vpop.f32.mrf.mxu0
      %4438 = vmatprep.mubr.bf16.mxu0 0
      %4439 = vmatmul.mubr.bf16.gmra.mxu0 %v2867
      %v4440 = vpop.f32.mrf.mxu0
      %v4441 = vadd.f32 %v4216, %v4440
      %v4442 = vpop.f32.mrf.mxu0
      %v4443 = vpop.f32.mrf.mxu0
      %v4444 = vadd.f32 %v4219, %v4443
      %v4445 = vpop.f32.mrf.mxu0
      %4446 = vmatprep.mubr.bf16.mxu0 0
      %4447 = vmatmul.mubr.bf16.gmra.mxu0 %v2870
      %v4448 = vpop.f32.mrf.mxu0
      %v4449 = vadd.f32 %v4224, %v4448
      %v4450 = vpop.f32.mrf.mxu0
      %v4451 = vpop.f32.mrf.mxu0
      %v4452 = vadd.f32 %v4227, %v4451
      %v4453 = vpop.f32.mrf.mxu0
      %4454 = vmatprep.mubr.bf16.mxu0 0
      %4455 = vmatmul.mubr.bf16.gmra.mxu0 %v2873
      %v4456 = vpop.f32.mrf.mxu0
      %v4457 = vadd.f32 %v4232, %v4456
      %v4458 = vpop.f32.mrf.mxu0
      %v4459 = vpop.f32.mrf.mxu0
      %v4460 = vadd.f32 %v4235, %v4459
      %v4461 = vpop.f32.mrf.mxu0
      %4462 = vmatprep.mubr.bf16.mxu0 0
      %4463 = vmatmul.mubr.bf16.gmra.mxu0 %v2876
      %v4464 = vpop.f32.mrf.mxu0
      %v4465 = vadd.f32 %v4240, %v4464
      %v4466 = vpop.f32.mrf.mxu0
      %v4467 = vpop.f32.mrf.mxu0
      %v4468 = vadd.f32 %v4243, %v4467
      %v4469 = vpop.f32.mrf.mxu0
      %4470 = vmatprep.mubr.bf16.mxu0 0
      %4471 = vmatmul.mubr.bf16.gmra.mxu0 %v2879
      %v4472 = vpop.f32.mrf.mxu0
      %v4473 = vadd.f32 %v4248, %v4472
      %v4474 = vpop.f32.mrf.mxu0
      %v4475 = vpop.f32.mrf.mxu0
      %v4476 = vadd.f32 %v4251, %v4475
      %v4477 = vpop.f32.mrf.mxu0
      %4478 = vmatprep.mubr.bf16.mxu0 0
      %4479 = vmatmul.mubr.bf16.gmra.mxu0 %v2882
      %v4480 = vpop.f32.mrf.mxu0
      %v4481 = vadd.f32 %v4256, %v4480
      %v4482 = vpop.f32.mrf.mxu0
      %v4483 = vpop.f32.mrf.mxu0
      %v4484 = vadd.f32 %v4259, %v4483
      %v4485 = vpop.f32.mrf.mxu0
      %4486 = vmatprep.mubr.bf16.mxu0 0
      %4487 = vmatmul.mubr.bf16.gmra.mxu0 %v2885
      %v4488 = vpop.f32.mrf.mxu0
      %v4489 = vadd.f32 %v4264, %v4488
      %v4490 = vpop.f32.mrf.mxu0
      %v4491 = vpop.f32.mrf.mxu0
      %v4492 = vadd.f32 %v4267, %v4491
      %v4493 = vpop.f32.mrf.mxu0
      %4494 = vmatprep.mubr.bf16.mxu0 0
      %4495 = vmatmul.mubr.bf16.gmra.mxu0 %v2888
      %v4496 = vpop.f32.mrf.mxu0
      %v4497 = vadd.f32 %v4272, %v4496
      %v4498 = vpop.f32.mrf.mxu0
      %v4499 = vpop.f32.mrf.mxu0
      %v4500 = vadd.f32 %v4275, %v4499
      %v4501 = vpop.f32.mrf.mxu0
      %4502 = vmatprep.mubr.bf16.mxu0 0
      %4503 = vmatmul.mubr.bf16.gmra.mxu0 %v2891
      %v4504 = vpop.f32.mrf.mxu0
      %v4505 = vadd.f32 %v4280, %v4504
      %v4506 = vpop.f32.mrf.mxu0
      %v4507 = vpop.f32.mrf.mxu0
      %v4508 = vadd.f32 %v4283, %v4507
      %v4509 = vpop.f32.mrf.mxu0
      %4510 = vmatprep.mubr.bf16.mxu0 0
      %4511 = vmatmul.mubr.bf16.gmra.mxu0 %v2894
      %v4512 = vpop.f32.mrf.mxu0
      %v4513 = vadd.f32 %v4288, %v4512
      %v4514 = vpop.f32.mrf.mxu0
      %v4515 = vpop.f32.mrf.mxu0
      %v4516 = vadd.f32 %v4291, %v4515
      %v4517 = vpop.f32.mrf.mxu0
      %4518 = vmatprep.mubr.bf16.mxu0 0
      %4519 = vmatmul.mubr.bf16.gmra.mxu0 %v2897
      %v4520 = vpop.f32.mrf.mxu0
      %v4521 = vadd.f32 %v4296, %v4520
      %v4522 = vpop.f32.mrf.mxu0
      %v4523 = vpop.f32.mrf.mxu0
      %v4524 = vadd.f32 %v4299, %v4523
      %v4525 = vpop.f32.mrf.mxu0
      %4526 = vmatprep.mubr.bf16.mxu0 0
      %4527 = vmatmul.mubr.bf16.gmra.mxu0 %v2900
      %v4528 = vpop.f32.mrf.mxu0
      %v4529 = vadd.f32 %v4304, %v4528
      %v4530 = vpop.f32.mrf.mxu0
      %v4531 = vpop.f32.mrf.mxu0
      %v4532 = vadd.f32 %v4307, %v4531
      %v4533 = vpop.f32.mrf.mxu0
      %4534 = vmatprep.mubr.bf16.mxu0 0
      %4535 = vmatmul.mubr.bf16.gmra.mxu0 %v2903
      %v4536 = vpop.f32.mrf.mxu0
      %v4537 = vadd.f32 %v4312, %v4536
      %v4538 = vpop.f32.mrf.mxu0
      %v4539 = vpop.f32.mrf.mxu0
      %v4540 = vadd.f32 %v4315, %v4539
      %v4541 = vpop.f32.mrf.mxu0
      %4542 = vmatprep.mubr.bf16.mxu0 0
      %4543 = vmatmul.mubr.bf16.gmra.mxu0 %v2906
      %v4544 = vpop.f32.mrf.mxu0
      %v4545 = vadd.f32 %v4320, %v4544
      %v4546 = vpop.f32.mrf.mxu0
      %v4547 = vpop.f32.mrf.mxu0
      %v4548 = vadd.f32 %v4323, %v4547
      %v4549 = vpop.f32.mrf.mxu0
      %4550 = vmatprep.mubr.bf16.mxu0 0
      %4551 = vmatmul.mubr.bf16.gmra.mxu0 %v2909
      %v4552 = vpop.f32.mrf.mxu0
      %v4553 = vadd.f32 %v4328, %v4552
      %v4554 = vpop.f32.mrf.mxu0
      %v4555 = vpop.f32.mrf.mxu0
      %v4556 = vadd.f32 %v4331, %v4555
      %v4557 = vpop.f32.mrf.mxu0
      %4558 = vmatprep.mubr.bf16.mxu0 0
      %4559 = vmatmul.mubr.bf16.gmra.mxu0 %v2912
      %v4560 = vpop.f32.mrf.mxu0
      %v4561 = vadd.f32 %v4336, %v4560
      %v4562 = vpop.f32.mrf.mxu0
      %v4563 = vpop.f32.mrf.mxu0
      %v4564 = vadd.f32 %v4339, %v4563
      %v4565 = vpop.f32.mrf.mxu0
      %4566 = vmatprep.mubr.bf16.mxu0 0
      %4567 = vmatmul.mubr.bf16.gmra.mxu0 %v2915
      %v4568 = vpop.f32.mrf.mxu0
      %v4569 = vadd.f32 %v4344, %v4568
      %v4570 = vpop.f32.mrf.mxu0
      %v4571 = vpop.f32.mrf.mxu0
      %v4572 = vadd.f32 %v4347, %v4571
      %v4573 = vpop.f32.mrf.mxu0
      %4574 = vmatprep.mubr.bf16.mxu0 0
      %4575 = vmatmul.mubr.bf16.gmra.mxu0 %v2947
      %v4576 = vpop.f32.mrf.mxu0
      %v4577 = vadd.f32 %v4352, %v4576
      %v4578 = vpop.f32.mrf.mxu0
      %v4579 = vpop.f32.mrf.mxu0
      %v4580 = vadd.f32 %v4355, %v4579
      %v4581 = vpop.f32.mrf.mxu0
      %4582 = vdwg.mxu0
      %v4583 = vmax.f32 %v4393, 0.0
      %v4584 = vmax.f32 %v4396, 0.0
      %v4585 = vmax.f32 %v4401, 0.0
      %v4586 = vmax.f32 %v4404, 0.0
      %v4587 = vmax.f32 %v4409, 0.0
      %v4588 = vmax.f32 %v4412, 0.0
      %v4589 = vmax.f32 %v4417, 0.0
      %v4590 = vmax.f32 %v4420, 0.0
      %v4591 = vmax.f32 %v4425, 0.0
      %v4592 = vmax.f32 %v4428, 0.0
      %v4593 = vmax.f32 %v4433, 0.0
      %v4594 = vmax.f32 %v4436, 0.0
      %v4595 = vmax.f32 %v4441, 0.0
      %v4596 = vmax.f32 %v4444, 0.0
      %v4597 = vmax.f32 %v4449, 0.0
      %v4598 = vmax.f32 %v4452, 0.0
      %v4599 = vmax.f32 %v4457, 0.0
      %v4600 = vmax.f32 %v4460, 0.0
      %v4601 = vmax.f32 %v4465, 0.0
      %v4602 = vmax.f32 %v4468, 0.0
      %v4603 = vmax.f32 %v4473, 0.0
      %v4604 = vmax.f32 %v4476, 0.0
      %v4605 = vmax.f32 %v4481, 0.0
      %v4606 = vmax.f32 %v4484, 0.0
      %v4607 = vmax.f32 %v4489, 0.0
      %v4608 = vmax.f32 %v4492, 0.0
      %v4609 = vmax.f32 %v4497, 0.0
      %v4610 = vmax.f32 %v4500, 0.0
      %v4611 = vmax.f32 %v4505, 0.0
      %v4612 = vmax.f32 %v4508, 0.0
      %v4613 = vmax.f32 %v4513, 0.0
      %v4614 = vmax.f32 %v4516, 0.0
      %v4615 = vmax.f32 %v4521, 0.0
      %v4616 = vmax.f32 %v4524, 0.0
      %v4617 = vmax.f32 %v4529, 0.0
      %v4618 = vmax.f32 %v4532, 0.0
      %v4619 = vmax.f32 %v4537, 0.0
      %v4620 = vmax.f32 %v4540, 0.0
      %v4621 = vmax.f32 %v4545, 0.0
      %v4622 = vmax.f32 %v4548, 0.0
      %v4623 = vmax.f32 %v4553, 0.0
      %v4624 = vmax.f32 %v4556, 0.0
      %v4625 = vmax.f32 %v4561, 0.0
      %v4626 = vmax.f32 %v4564, 0.0
      %v4627 = vmax.f32 %v4569, 0.0
      %v4628 = vmax.f32 %v4572, 0.0
      %v4629 = vmax.f32 %v4577, 0.0
      %v4630 = vmax.f32 %v4580, 0.0
      %v4631 = vpack.c.bf16 %v4584, %v4583
      %v4632 = vpack.c.bf16 %v4586, %v4585
      %v4633 = vpack.c.bf16 %v4588, %v4587
      %v4634 = vpack.c.bf16 %v4590, %v4589
      %v4635 = vpack.c.bf16 %v4592, %v4591
      %v4636 = vpack.c.bf16 %v4594, %v4593
      %v4637 = vpack.c.bf16 %v4596, %v4595
      %v4638 = vpack.c.bf16 %v4598, %v4597
      %v4639 = vpack.c.bf16 %v4600, %v4599
      %v4640 = vpack.c.bf16 %v4602, %v4601
      %v4641 = vpack.c.bf16 %v4604, %v4603
      %v4642 = vpack.c.bf16 %v4606, %v4605
      %v4643 = vpack.c.bf16 %v4608, %v4607
      %v4644 = vpack.c.bf16 %v4610, %v4609
      %v4645 = vpack.c.bf16 %v4612, %v4611
      %v4646 = vpack.c.bf16 %v4614, %v4613
      %v4647 = vpack.c.bf16 %v4616, %v4615
      %v4648 = vpack.c.bf16 %v4618, %v4617
      %v4649 = vpack.c.bf16 %v4620, %v4619
      %v4650 = vpack.c.bf16 %v4622, %v4621
      %v4651 = vpack.c.bf16 %v4624, %v4623
      %v4652 = vpack.c.bf16 %v4626, %v4625
      %v4653 = vpack.c.bf16 %v4628, %v4627
      %v4654 = vpack.c.bf16 %v4630, %v4629
      %v4679 = vunpack.c.l.b16 %v4631
      %v4680 = vunpack.c.h.b16 %v4631
      %v4681 = vunpack.c.l.b16 %v4632
      %v4682 = vunpack.c.h.b16 %v4632
      %v4683 = vunpack.c.l.b16 %v4633
      %v4684 = vunpack.c.h.b16 %v4633
      %v4685 = vunpack.c.l.b16 %v4634
      %v4686 = vunpack.c.h.b16 %v4634
      %v4687 = vunpack.c.l.b16 %v4635
      %v4688 = vunpack.c.h.b16 %v4635
      %v4689 = vunpack.c.l.b16 %v4636
      %v4690 = vunpack.c.h.b16 %v4636
      %v4691 = vunpack.c.l.b16 %v4637
      %v4692 = vunpack.c.h.b16 %v4637
      %v4693 = vunpack.c.l.b16 %v4638
      %v4694 = vunpack.c.h.b16 %v4638
      %v4695 = vunpack.c.l.b16 %v4639
      %v4696 = vunpack.c.h.b16 %v4639
      %v4697 = vunpack.c.l.b16 %v4640
      %v4698 = vunpack.c.h.b16 %v4640
      %v4699 = vunpack.c.l.b16 %v4641
      %v4700 = vunpack.c.h.b16 %v4641
      %v4701 = vunpack.c.l.b16 %v4642
      %v4702 = vunpack.c.h.b16 %v4642
      %v4703 = vunpack.c.l.b16 %v4643
      %v4704 = vunpack.c.h.b16 %v4643
      %v4705 = vunpack.c.l.b16 %v4644
      %v4706 = vunpack.c.h.b16 %v4644
      %v4707 = vunpack.c.l.b16 %v4645
      %v4708 = vunpack.c.h.b16 %v4645
      %v4709 = vunpack.c.l.b16 %v4646
      %v4710 = vunpack.c.h.b16 %v4646
      %v4711 = vunpack.c.l.b16 %v4647
      %v4712 = vunpack.c.h.b16 %v4647
      %v4713 = vunpack.c.l.b16 %v4648
      %v4714 = vunpack.c.h.b16 %v4648
      %v4715 = vunpack.c.l.b16 %v4649
      %v4716 = vunpack.c.h.b16 %v4649
      %v4717 = vunpack.c.l.b16 %v4650
      %v4718 = vunpack.c.h.b16 %v4650
      %v4719 = vunpack.c.l.b16 %v4651
      %v4720 = vunpack.c.h.b16 %v4651
      %v4721 = vunpack.c.l.b16 %v4652
      %v4722 = vunpack.c.h.b16 %v4652
      %v4723 = vunpack.c.l.b16 %v4653
      %v4724 = vunpack.c.h.b16 %v4653
      %v4725 = vunpack.c.l.b16 %v4654
      %v4726 = vunpack.c.h.b16 %v4654
      %v4727 = vpack.c.b16 %v4679, %v4679
      %v4728 = vpack.c.b16 %v4680, %v4680
      %v4729 = vpack.c.b16 %v4681, %v4681
      %v4730 = vpack.c.b16 %v4682, %v4682
      %v4731 = vpack.c.b16 %v4683, %v4683
      %v4732 = vpack.c.b16 %v4684, %v4684
      %v4733 = vpack.c.b16 %v4685, %v4685
      %v4734 = vpack.c.b16 %v4686, %v4686
      %v4735 = vpack.c.b16 %v4687, %v4687
      %v4736 = vpack.c.b16 %v4688, %v4688
      %v4737 = vpack.c.b16 %v4689, %v4689
      %v4738 = vpack.c.b16 %v4690, %v4690
      %v4739 = vpack.c.b16 %v4691, %v4691
      %v4740 = vpack.c.b16 %v4692, %v4692
      %v4741 = vpack.c.b16 %v4693, %v4693
      %v4742 = vpack.c.b16 %v4694, %v4694
      %v4743 = vpack.c.b16 %v4695, %v4695
      %v4744 = vpack.c.b16 %v4696, %v4696
      %v4745 = vpack.c.b16 %v4697, %v4697
      %v4746 = vpack.c.b16 %v4698, %v4698
      %v4747 = vpack.c.b16 %v4699, %v4699
      %v4748 = vpack.c.b16 %v4700, %v4700
      %v4749 = vpack.c.b16 %v4701, %v4701
      %v4750 = vpack.c.b16 %v4702, %v4702
      %v4751 = vpack.c.b16 %v4703, %v4703
      %v4752 = vpack.c.b16 %v4704, %v4704
      %v4753 = vpack.c.b16 %v4705, %v4705
      %v4754 = vpack.c.b16 %v4706, %v4706
      %v4755 = vpack.c.b16 %v4707, %v4707
      %v4756 = vpack.c.b16 %v4708, %v4708
      %v4757 = vpack.c.b16 %v4709, %v4709
      %v4758 = vpack.c.b16 %v4710, %v4710
      %v4759 = vpack.c.b16 %v4711, %v4711
      %v4760 = vpack.c.b16 %v4712, %v4712
      %v4761 = vpack.c.b16 %v4713, %v4713
      %v4762 = vpack.c.b16 %v4714, %v4714
      %v4763 = vpack.c.b16 %v4715, %v4715
      %v4764 = vpack.c.b16 %v4716, %v4716
      %v4765 = vpack.c.b16 %v4717, %v4717
      %v4766 = vpack.c.b16 %v4718, %v4718
      %v4767 = vpack.c.b16 %v4719, %v4719
      %v4768 = vpack.c.b16 %v4720, %v4720
      %v4769 = vpack.c.b16 %v4721, %v4721
      %v4770 = vpack.c.b16 %v4722, %v4722
      %v4771 = vpack.c.b16 %v4723, %v4723
      %v4772 = vpack.c.b16 %v4724, %v4724
      %v4773 = vpack.c.b16 %v4725, %v4725
      %v4774 = vpack.c.b16 %v4726, %v4726
      %vm4775 = vsmask.f32 3328
      %vm4776 = vsmask.f32 7440
      %vm4777 = vmor %vm4775, %vm4776
      %v4779 = vshrl.u32 %v4727, 16
      %v4781 = vrot.slane %v4779, 4
      %v4782 = vshll.u32 %v4727, 16
      %v4784 = vrot.slane %v4782, 5
      %v4785 = vor.u32 %v4781, %v4784
      %v4786 = vrot.slane %v4785, 4
      %v4788 = vshll.u32 %v4728, 16
      %v4790 = vrot.slane %v4788, 5
      %v4791 = vsel %vm4777, %v4786, %v4790
      %v4792 = vshrl.u32 %v4728, 16
      %v4794 = vrot.slane %v4792, 4
      %v4795 = vor.u32 %v4794, %v4790
      %v4796 = vrot.slane %v4795, 4
      %v4798 = vshll.u32 %v4729, 16
      %v4800 = vrot.slane %v4798, 5
      %v4801 = vsel %vm4777, %v4796, %v4800
      %v4803 = vshrl.u32 %v4730, 16
      %v4805 = vrot.slane %v4803, 4
      %v4806 = vshll.u32 %v4730, 16
      %v4808 = vrot.slane %v4806, 5
      %v4809 = vor.u32 %v4805, %v4808
      %v4810 = vrot.slane %v4809, 4
      %v4812 = vshll.u32 %v4731, 16
      %v4814 = vrot.slane %v4812, 5
      %v4815 = vsel %vm4777, %v4810, %v4814
      %v4816 = vshrl.u32 %v4731, 16
      %v4818 = vrot.slane %v4816, 4
      %v4819 = vor.u32 %v4818, %v4814
      %v4820 = vrot.slane %v4819, 4
      %v4822 = vshll.u32 %v4732, 16
      %v4824 = vrot.slane %v4822, 5
      %v4825 = vsel %vm4777, %v4820, %v4824
      %v4827 = vshrl.u32 %v4733, 16
      %v4829 = vrot.slane %v4827, 4
      %v4830 = vshll.u32 %v4733, 16
      %v4832 = vrot.slane %v4830, 5
      %v4833 = vor.u32 %v4829, %v4832
      %v4834 = vrot.slane %v4833, 4
      %v4836 = vshll.u32 %v4734, 16
      %v4838 = vrot.slane %v4836, 5
      %v4839 = vsel %vm4777, %v4834, %v4838
      %v4840 = vshrl.u32 %v4734, 16
      %v4842 = vrot.slane %v4840, 4
      %v4843 = vor.u32 %v4842, %v4838
      %v4844 = vrot.slane %v4843, 4
      %v4846 = vshll.u32 %v4735, 16
      %v4848 = vrot.slane %v4846, 5
      %v4849 = vsel %vm4777, %v4844, %v4848
      %v4851 = vshrl.u32 %v4736, 16
      %v4853 = vrot.slane %v4851, 4
      %v4854 = vshll.u32 %v4736, 16
      %v4856 = vrot.slane %v4854, 5
      %v4857 = vor.u32 %v4853, %v4856
      %v4858 = vrot.slane %v4857, 4
      %v4860 = vshll.u32 %v4737, 16
      %v4862 = vrot.slane %v4860, 5
      %v4863 = vsel %vm4777, %v4858, %v4862
      %v4864 = vshrl.u32 %v4737, 16
      %v4866 = vrot.slane %v4864, 4
      %v4867 = vor.u32 %v4866, %v4862
      %v4868 = vrot.slane %v4867, 4
      %v4870 = vshll.u32 %v4738, 16
      %v4872 = vrot.slane %v4870, 5
      %v4873 = vsel %vm4777, %v4868, %v4872
      %v4875 = vshrl.u32 %v4739, 16
      %v4877 = vrot.slane %v4875, 4
      %v4878 = vshll.u32 %v4739, 16
      %v4880 = vrot.slane %v4878, 5
      %v4881 = vor.u32 %v4877, %v4880
      %v4882 = vrot.slane %v4881, 4
      %v4884 = vshll.u32 %v4740, 16
      %v4886 = vrot.slane %v4884, 5
      %v4887 = vsel %vm4777, %v4882, %v4886
      %v4888 = vshrl.u32 %v4740, 16
      %v4890 = vrot.slane %v4888, 4
      %v4891 = vor.u32 %v4890, %v4886
      %v4892 = vrot.slane %v4891, 4
      %v4894 = vshll.u32 %v4741, 16
      %v4896 = vrot.slane %v4894, 5
      %v4897 = vsel %vm4777, %v4892, %v4896
      %v4899 = vshrl.u32 %v4742, 16
      %v4901 = vrot.slane %v4899, 4
      %v4902 = vshll.u32 %v4742, 16
      %v4904 = vrot.slane %v4902, 5
      %v4905 = vor.u32 %v4901, %v4904
      %v4906 = vrot.slane %v4905, 4
      %v4908 = vshll.u32 %v4743, 16
      %v4910 = vrot.slane %v4908, 5
      %v4911 = vsel %vm4777, %v4906, %v4910
      %v4912 = vshrl.u32 %v4743, 16
      %v4914 = vrot.slane %v4912, 4
      %v4915 = vor.u32 %v4914, %v4910
      %v4916 = vrot.slane %v4915, 4
      %v4918 = vshll.u32 %v4744, 16
      %v4920 = vrot.slane %v4918, 5
      %v4921 = vsel %vm4777, %v4916, %v4920
      %v4923 = vshrl.u32 %v4745, 16
      %v4925 = vrot.slane %v4923, 4
      %v4926 = vshll.u32 %v4745, 16
      %v4928 = vrot.slane %v4926, 5
      %v4929 = vor.u32 %v4925, %v4928
      %v4930 = vrot.slane %v4929, 4
      %v4932 = vshll.u32 %v4746, 16
      %v4934 = vrot.slane %v4932, 5
      %v4935 = vsel %vm4777, %v4930, %v4934
      %v4936 = vshrl.u32 %v4746, 16
      %v4938 = vrot.slane %v4936, 4
      %v4939 = vor.u32 %v4938, %v4934
      %v4940 = vrot.slane %v4939, 4
      %v4942 = vshll.u32 %v4747, 16
      %v4944 = vrot.slane %v4942, 5
      %v4945 = vsel %vm4777, %v4940, %v4944
      %v4947 = vshrl.u32 %v4748, 16
      %v4949 = vrot.slane %v4947, 4
      %v4950 = vshll.u32 %v4748, 16
      %v4952 = vrot.slane %v4950, 5
      %v4953 = vor.u32 %v4949, %v4952
      %v4954 = vrot.slane %v4953, 4
      %v4956 = vshll.u32 %v4749, 16
      %v4958 = vrot.slane %v4956, 5
      %v4959 = vsel %vm4777, %v4954, %v4958
      %v4960 = vshrl.u32 %v4749, 16
      %v4962 = vrot.slane %v4960, 4
      %v4963 = vor.u32 %v4962, %v4958
      %v4964 = vrot.slane %v4963, 4
      %v4966 = vshll.u32 %v4750, 16
      %v4968 = vrot.slane %v4966, 5
      %v4969 = vsel %vm4777, %v4964, %v4968
      %v4971 = vshrl.u32 %v4751, 16
      %v4973 = vrot.slane %v4971, 4
      %v4974 = vshll.u32 %v4751, 16
      %v4976 = vrot.slane %v4974, 5
      %v4977 = vor.u32 %v4973, %v4976
      %v4978 = vrot.slane %v4977, 4
      %v4980 = vshll.u32 %v4752, 16
      %v4982 = vrot.slane %v4980, 5
      %v4983 = vsel %vm4777, %v4978, %v4982
      %v4984 = vshrl.u32 %v4752, 16
      %v4986 = vrot.slane %v4984, 4
      %v4987 = vor.u32 %v4986, %v4982
      %v4988 = vrot.slane %v4987, 4
      %v4990 = vshll.u32 %v4753, 16
      %v4992 = vrot.slane %v4990, 5
      %v4993 = vsel %vm4777, %v4988, %v4992
      %v4995 = vshrl.u32 %v4754, 16
      %v4997 = vrot.slane %v4995, 4
      %v4998 = vshll.u32 %v4754, 16
      %v5000 = vrot.slane %v4998, 5
      %v5001 = vor.u32 %v4997, %v5000
      %v5002 = vrot.slane %v5001, 4
      %v5004 = vshll.u32 %v4755, 16
      %v5006 = vrot.slane %v5004, 5
      %v5007 = vsel %vm4777, %v5002, %v5006
      %v5008 = vshrl.u32 %v4755, 16
      %v5010 = vrot.slane %v5008, 4
      %v5011 = vor.u32 %v5010, %v5006
      %v5012 = vrot.slane %v5011, 4
      %v5014 = vshll.u32 %v4756, 16
      %v5016 = vrot.slane %v5014, 5
      %v5017 = vsel %vm4777, %v5012, %v5016
      %v5019 = vshrl.u32 %v4757, 16
      %v5021 = vrot.slane %v5019, 4
      %v5022 = vshll.u32 %v4757, 16
      %v5024 = vrot.slane %v5022, 5
      %v5025 = vor.u32 %v5021, %v5024
      %v5026 = vrot.slane %v5025, 4
      %v5028 = vshll.u32 %v4758, 16
      %v5030 = vrot.slane %v5028, 5
      %v5031 = vsel %vm4777, %v5026, %v5030
      %v5032 = vshrl.u32 %v4758, 16
      %v5034 = vrot.slane %v5032, 4
      %v5035 = vor.u32 %v5034, %v5030
      %v5036 = vrot.slane %v5035, 4
      %v5038 = vshll.u32 %v4759, 16
      %v5040 = vrot.slane %v5038, 5
      %v5041 = vsel %vm4777, %v5036, %v5040
      %v5043 = vshrl.u32 %v4760, 16
      %v5045 = vrot.slane %v5043, 4
      %v5046 = vshll.u32 %v4760, 16
      %v5048 = vrot.slane %v5046, 5
      %v5049 = vor.u32 %v5045, %v5048
      %v5050 = vrot.slane %v5049, 4
      %v5052 = vshll.u32 %v4761, 16
      %v5054 = vrot.slane %v5052, 5
      %v5055 = vsel %vm4777, %v5050, %v5054
      %v5056 = vshrl.u32 %v4761, 16
      %v5058 = vrot.slane %v5056, 4
      %v5059 = vor.u32 %v5058, %v5054
      %v5060 = vrot.slane %v5059, 4
      %v5062 = vshll.u32 %v4762, 16
      %v5064 = vrot.slane %v5062, 5
      %v5065 = vsel %vm4777, %v5060, %v5064
      %v5067 = vshrl.u32 %v4763, 16
      %v5069 = vrot.slane %v5067, 4
      %v5070 = vshll.u32 %v4763, 16
      %v5072 = vrot.slane %v5070, 5
      %v5073 = vor.u32 %v5069, %v5072
      %v5074 = vrot.slane %v5073, 4
      %v5076 = vshll.u32 %v4764, 16
      %v5078 = vrot.slane %v5076, 5
      %v5079 = vsel %vm4777, %v5074, %v5078
      %v5080 = vshrl.u32 %v4764, 16
      %v5082 = vrot.slane %v5080, 4
      %v5083 = vor.u32 %v5082, %v5078
      %v5084 = vrot.slane %v5083, 4
      %v5086 = vshll.u32 %v4765, 16
      %v5088 = vrot.slane %v5086, 5
      %v5089 = vsel %vm4777, %v5084, %v5088
      %v5091 = vshrl.u32 %v4766, 16
      %v5093 = vrot.slane %v5091, 4
      %v5094 = vshll.u32 %v4766, 16
      %v5096 = vrot.slane %v5094, 5
      %v5097 = vor.u32 %v5093, %v5096
      %v5098 = vrot.slane %v5097, 4
      %v5100 = vshll.u32 %v4767, 16
      %v5102 = vrot.slane %v5100, 5
      %v5103 = vsel %vm4777, %v5098, %v5102
      %v5104 = vshrl.u32 %v4767, 16
      %v5106 = vrot.slane %v5104, 4
      %v5107 = vor.u32 %v5106, %v5102
      %v5108 = vrot.slane %v5107, 4
      %v5110 = vshll.u32 %v4768, 16
      %v5112 = vrot.slane %v5110, 5
      %v5113 = vsel %vm4777, %v5108, %v5112
      %v5115 = vshrl.u32 %v4769, 16
      %v5117 = vrot.slane %v5115, 4
      %v5118 = vshll.u32 %v4769, 16
      %v5120 = vrot.slane %v5118, 5
      %v5121 = vor.u32 %v5117, %v5120
      %v5122 = vrot.slane %v5121, 4
      %v5124 = vshll.u32 %v4770, 16
      %v5126 = vrot.slane %v5124, 5
      %v5127 = vsel %vm4777, %v5122, %v5126
      %v5128 = vshrl.u32 %v4770, 16
      %v5130 = vrot.slane %v5128, 4
      %v5131 = vor.u32 %v5130, %v5126
      %v5132 = vrot.slane %v5131, 4
      %v5134 = vshll.u32 %v4771, 16
      %v5136 = vrot.slane %v5134, 5
      %v5137 = vsel %vm4777, %v5132, %v5136
      %v5139 = vshrl.u32 %v4772, 16
      %v5141 = vrot.slane %v5139, 4
      %v5142 = vshll.u32 %v4772, 16
      %v5144 = vrot.slane %v5142, 5
      %v5145 = vor.u32 %v5141, %v5144
      %v5146 = vrot.slane %v5145, 4
      %v5148 = vshll.u32 %v4773, 16
      %v5150 = vrot.slane %v5148, 5
      %v5151 = vsel %vm4777, %v5146, %v5150
      %v5152 = vshrl.u32 %v4773, 16
      %v5154 = vrot.slane %v5152, 4
      %v5155 = vor.u32 %v5154, %v5150
      %v5156 = vrot.slane %v5155, 4
      %v5158 = vshll.u32 %v4774, 16
      %v5160 = vrot.slane %v5158, 5
      %v5161 = vsel %vm4777, %v5156, %v5160
      %v5163 = vlaneseq
      %v5164 = vshrl.u32 %v5163, 7
      %v5165 = vsub.s32 0, %v5164
      %v5166 = vrot.slane %v1451, %v5165
      %v5168 = vunpack.c.l.b16 %v4791
      %v5169 = vunpack.c.l.b16 %v4801
      %v5170 = vunpack.c.l.b16 %v4815
      %v5171 = vunpack.c.l.b16 %v4825
      %v5172 = vunpack.c.l.b16 %v4839
      %v5173 = vunpack.c.l.b16 %v4849
      %v5174 = vunpack.c.l.b16 %v4863
      %v5175 = vunpack.c.l.b16 %v4873
      %v5176 = vunpack.c.l.b16 %v4887
      %v5177 = vunpack.c.l.b16 %v4897
      %v5178 = vunpack.c.l.b16 %v4911
      %v5179 = vunpack.c.l.b16 %v4921
      %v5180 = vunpack.c.l.b16 %v4935
      %v5181 = vunpack.c.l.b16 %v4945
      %v5182 = vunpack.c.l.b16 %v4959
      %v5183 = vunpack.c.l.b16 %v4969
      %v5184 = vunpack.c.l.b16 %v4983
      %v5185 = vunpack.c.l.b16 %v4993
      %v5186 = vunpack.c.l.b16 %v5007
      %v5187 = vunpack.c.l.b16 %v5017
      %v5188 = vunpack.c.l.b16 %v5031
      %v5189 = vunpack.c.l.b16 %v5041
      %v5190 = vunpack.c.l.b16 %v5055
      %v5191 = vunpack.c.l.b16 %v5065
      %v5192 = vunpack.c.l.b16 %v5079
      %v5193 = vunpack.c.l.b16 %v5089
      %v5194 = vunpack.c.l.b16 %v5103
      %v5195 = vunpack.c.l.b16 %v5113
      %v5196 = vunpack.c.l.b16 %v5127
      %v5197 = vunpack.c.l.b16 %v5137
      %v5198 = vunpack.c.l.b16 %v5151
      %v5199 = vunpack.c.l.b16 %v5161
      %v5200 = vpack.c.b16 %v5169, %v5168
      %v5201 = vpack.c.b16 %v5171, %v5170
      %v5202 = vpack.c.b16 %v5173, %v5172
      %v5203 = vpack.c.b16 %v5175, %v5174
      %v5204 = vpack.c.b16 %v5177, %v5176
      %v5205 = vpack.c.b16 %v5179, %v5178
      %v5206 = vpack.c.b16 %v5181, %v5180
      %v5207 = vpack.c.b16 %v5183, %v5182
      %v5208 = vpack.c.b16 %v5185, %v5184
      %v5209 = vpack.c.b16 %v5187, %v5186
      %v5210 = vpack.c.b16 %v5189, %v5188
      %v5211 = vpack.c.b16 %v5191, %v5190
      %v5212 = vpack.c.b16 %v5193, %v5192
      %v5213 = vpack.c.b16 %v5195, %v5194
      %v5214 = vpack.c.b16 %v5197, %v5196
      %v5215 = vpack.c.b16 %v5199, %v5198
      %v5248 = vunpack.c.l.b16 %v1435
      %v5249 = vunpack.c.l.b16 %v1436
      %v5250 = vunpack.c.l.b16 %v1437
      %v5251 = vunpack.c.l.b16 %v1438
      %v5252 = vunpack.c.l.b16 %v1439
      %v5253 = vunpack.c.l.b16 %v1440
      %v5254 = vunpack.c.l.b16 %v1441
      %v5255 = vunpack.c.l.b16 %v1442
      %v5256 = vunpack.c.l.b16 %v1443
      %v5257 = vunpack.c.l.b16 %v1444
      %v5258 = vunpack.c.l.b16 %v1445
      %v5259 = vunpack.c.l.b16 %v1446
      %v5260 = vunpack.c.l.b16 %v1447
      %v5261 = vunpack.c.l.b16 %v1448
      %v5262 = vunpack.c.l.b16 %v1449
      %v5263 = vunpack.c.l.b16 %v1450
      %v5264 = vpack.c.b16 %v5249, %v5248
      %v5265 = vpack.c.b16 %v5251, %v5250
      %v5266 = vpack.c.b16 %v5253, %v5252
      %v5267 = vpack.c.b16 %v5255, %v5254
      %v5268 = vpack.c.b16 %v5257, %v5256
      %v5269 = vpack.c.b16 %v5259, %v5258
      %v5270 = vpack.c.b16 %v5261, %v5260
      %v5271 = vpack.c.b16 %v5263, %v5262
      %5280 = vmatprep.subr.bf16.mxu0 0
      %5281 = vmatpush1.bf16.msra.mxu0 %v5271
      %5282 = vmatprep.subr.bf16.mxu0 0
      %5283 = vmatpush1.bf16.msra.mxu0 %v5270
      %5284 = vmatprep.subr.bf16.mxu0 0
      %5285 = vmatpush1.bf16.msra.mxu0 %v5269
      %5286 = vmatprep.subr.bf16.mxu0 0
      %5287 = vmatpush1.bf16.msra.mxu0 %v5268
      %5288 = vmatprep.subr.bf16.mxu0 0
      %5289 = vmatpush1.bf16.msra.mxu0 %v5267
      %5290 = vmatprep.subr.bf16.mxu0 0
      %5291 = vmatpush1.bf16.msra.mxu0 %v5266
      %5292 = vmatprep.subr.bf16.mxu0 0
      %5293 = vmatpush1.bf16.msra.mxu0 %v5265
      %5294 = vmatprep.subr.bf16.mxu0 0
      %5295 = vmatpush1.bf16.msra.mxu0 %v5264
      %5296 = vmatprep.subr.bf16.mxu0 0
      %5297 = vmatpush2.bf16.msra.mxu0 0
      %5298 = vmatprep.subr.bf16.mxu0 0
      %5299 = vmatpush2.bf16.msra.mxu0 0
      %5300 = vmatprep.subr.bf16.mxu0 0
      %5301 = vmatpush2.bf16.msra.mxu0 0
      %5302 = vmatprep.subr.bf16.mxu0 0
      %5303 = vmatpush2.bf16.msra.mxu0 0
      %5304 = vmatprep.subr.bf16.mxu0 0
      %5305 = vmatpush2.bf16.msra.mxu0 0
      %5306 = vmatprep.subr.bf16.mxu0 0
      %5307 = vmatpush2.bf16.msra.mxu0 0
      %5308 = vmatprep.subr.bf16.mxu0 0
      %5309 = vmatpush2.bf16.msra.mxu0 0
      %5310 = vmatprep.subr.bf16.mxu0 0
      %5311 = vmatpush2.bf16.msra.mxu0 0
      %5312 = vmatprep.mubr.bf16.mxu0 0
      %5313 = vmatmul.mubr.bf16.gmra.mxu0 %v5200
      %v5314 = vpop.f32.mrf.mxu0
      %v5315 = vadd.f32 %v5166, %v5314
      %v5316 = vpop.f32.mrf.mxu0
      %v5317 = vpop.f32.mrf.mxu0
      %v5318 = vadd.f32 %v5166, %v5317
      %v5319 = vpop.f32.mrf.mxu0
      %5320 = vmatprep.mubr.bf16.mxu0 0
      %5321 = vmatmul.mubr.bf16.gmra.mxu0 %v5201
      %v5322 = vpop.f32.mrf.mxu0
      %v5323 = vadd.f32 %v5166, %v5322
      %v5324 = vpop.f32.mrf.mxu0
      %v5325 = vpop.f32.mrf.mxu0
      %v5326 = vadd.f32 %v5166, %v5325
      %v5327 = vpop.f32.mrf.mxu0
      %5328 = vmatprep.mubr.bf16.mxu0 0
      %5329 = vmatmul.mubr.bf16.gmra.mxu0 %v5202
      %v5330 = vpop.f32.mrf.mxu0
      %v5331 = vadd.f32 %v5166, %v5330
      %v5332 = vpop.f32.mrf.mxu0
      %v5333 = vpop.f32.mrf.mxu0
      %v5334 = vadd.f32 %v5166, %v5333
      %v5335 = vpop.f32.mrf.mxu0
      %5336 = vmatprep.mubr.bf16.mxu0 0
      %5337 = vmatmul.mubr.bf16.gmra.mxu0 %v5203
      %v5338 = vpop.f32.mrf.mxu0
      %v5339 = vadd.f32 %v5166, %v5338
      %v5340 = vpop.f32.mrf.mxu0
      %v5341 = vpop.f32.mrf.mxu0
      %v5342 = vadd.f32 %v5166, %v5341
      %v5343 = vpop.f32.mrf.mxu0
      %5344 = vmatprep.mubr.bf16.mxu0 0
      %5345 = vmatmul.mubr.bf16.gmra.mxu0 %v5204
      %v5346 = vpop.f32.mrf.mxu0
      %v5347 = vadd.f32 %v5166, %v5346
      %v5348 = vpop.f32.mrf.mxu0
      %v5349 = vpop.f32.mrf.mxu0
      %v5350 = vadd.f32 %v5166, %v5349
      %v5351 = vpop.f32.mrf.mxu0
      %5352 = vmatprep.mubr.bf16.mxu0 0
      %5353 = vmatmul.mubr.bf16.gmra.mxu0 %v5205
      %v5354 = vpop.f32.mrf.mxu0
      %v5355 = vadd.f32 %v5166, %v5354
      %v5356 = vpop.f32.mrf.mxu0
      %v5357 = vpop.f32.mrf.mxu0
      %v5358 = vadd.f32 %v5166, %v5357
      %v5359 = vpop.f32.mrf.mxu0
      %5360 = vmatprep.mubr.bf16.mxu0 0
      %5361 = vmatmul.mubr.bf16.gmra.mxu0 %v5206
      %v5362 = vpop.f32.mrf.mxu0
      %v5363 = vadd.f32 %v5166, %v5362
      %v5364 = vpop.f32.mrf.mxu0
      %v5365 = vpop.f32.mrf.mxu0
      %v5366 = vadd.f32 %v5166, %v5365
      %v5367 = vpop.f32.mrf.mxu0
      %5368 = vmatprep.mubr.bf16.mxu0 0
      %5369 = vmatmul.mubr.bf16.gmra.mxu0 %v5207
      %v5370 = vpop.f32.mrf.mxu0
      %v5371 = vadd.f32 %v5166, %v5370
      %v5372 = vpop.f32.mrf.mxu0
      %v5373 = vpop.f32.mrf.mxu0
      %v5374 = vadd.f32 %v5166, %v5373
      %v5375 = vpop.f32.mrf.mxu0
      %5376 = vmatprep.mubr.bf16.mxu0 0
      %5377 = vmatmul.mubr.bf16.gmra.mxu0 %v5208
      %v5378 = vpop.f32.mrf.mxu0
      %v5379 = vadd.f32 %v5166, %v5378
      %v5380 = vpop.f32.mrf.mxu0
      %v5381 = vpop.f32.mrf.mxu0
      %v5382 = vadd.f32 %v5166, %v5381
      %v5383 = vpop.f32.mrf.mxu0
      %5384 = vmatprep.mubr.bf16.mxu0 0
      %5385 = vmatmul.mubr.bf16.gmra.mxu0 %v5209
      %v5386 = vpop.f32.mrf.mxu0
      %v5387 = vadd.f32 %v5166, %v5386
      %v5388 = vpop.f32.mrf.mxu0
      %v5389 = vpop.f32.mrf.mxu0
      %v5390 = vadd.f32 %v5166, %v5389
      %v5391 = vpop.f32.mrf.mxu0
      %5392 = vmatprep.mubr.bf16.mxu0 0
      %5393 = vmatmul.mubr.bf16.gmra.mxu0 %v5210
      %v5394 = vpop.f32.mrf.mxu0
      %v5395 = vadd.f32 %v5166, %v5394
      %v5396 = vpop.f32.mrf.mxu0
      %v5397 = vpop.f32.mrf.mxu0
      %v5398 = vadd.f32 %v5166, %v5397
      %v5399 = vpop.f32.mrf.mxu0
      %5400 = vmatprep.mubr.bf16.mxu0 0
      %5401 = vmatmul.mubr.bf16.gmra.mxu0 %v5211
      %v5402 = vpop.f32.mrf.mxu0
      %v5403 = vadd.f32 %v5166, %v5402
      %v5404 = vpop.f32.mrf.mxu0
      %v5405 = vpop.f32.mrf.mxu0
      %v5406 = vadd.f32 %v5166, %v5405
      %v5407 = vpop.f32.mrf.mxu0
      %5408 = vmatprep.mubr.bf16.mxu0 0
      %5409 = vmatmul.mubr.bf16.gmra.mxu0 %v5212
      %v5410 = vpop.f32.mrf.mxu0
      %v5411 = vadd.f32 %v5166, %v5410
      %v5412 = vpop.f32.mrf.mxu0
      %v5413 = vpop.f32.mrf.mxu0
      %v5414 = vadd.f32 %v5166, %v5413
      %v5415 = vpop.f32.mrf.mxu0
      %5416 = vmatprep.mubr.bf16.mxu0 0
      %5417 = vmatmul.mubr.bf16.gmra.mxu0 %v5213
      %v5418 = vpop.f32.mrf.mxu0
      %v5419 = vadd.f32 %v5166, %v5418
      %v5420 = vpop.f32.mrf.mxu0
      %v5421 = vpop.f32.mrf.mxu0
      %v5422 = vadd.f32 %v5166, %v5421
      %v5423 = vpop.f32.mrf.mxu0
      %5424 = vmatprep.mubr.bf16.mxu0 0
      %5425 = vmatmul.mubr.bf16.gmra.mxu0 %v5214
      %v5426 = vpop.f32.mrf.mxu0
      %v5427 = vadd.f32 %v5166, %v5426
      %v5428 = vpop.f32.mrf.mxu0
      %v5429 = vpop.f32.mrf.mxu0
      %v5430 = vadd.f32 %v5166, %v5429
      %v5431 = vpop.f32.mrf.mxu0
      %5432 = vmatprep.mubr.bf16.mxu0 0
      %5433 = vmatmul.mubr.bf16.gmra.mxu0 %v5215
      %v5434 = vpop.f32.mrf.mxu0
      %v5435 = vadd.f32 %v5166, %v5434
      %v5436 = vpop.f32.mrf.mxu0
      %v5437 = vpop.f32.mrf.mxu0
      %v5438 = vadd.f32 %v5166, %v5437
      %v5439 = vpop.f32.mrf.mxu0
      %5440 = vdwg.mxu0
      %v5441 = vld [vmem:[%s300] sm:$0xf]
      %v5442 = vld [vmem:[%s300 + $0x4] sm:$0xf]
      %v5443 = vld [vmem:[%s300 + $0x8] sm:$0xf]
      %v5444 = vld [vmem:[%s300 + $0xc] sm:$0xf]
      %v5445 = vld [vmem:[%s300 + $0x10] sm:$0xf]
      %v5446 = vld [vmem:[%s300 + $0x14] sm:$0xf]
      %v5447 = vld [vmem:[%s300 + $0x18] sm:$0xf]
      %v5448 = vld [vmem:[%s300 + $0x1c] sm:$0xf]
      %v5449 = vld [vmem:[%s300 + $0x20] sm:$0xf]
      %v5450 = vld [vmem:[%s300 + $0x24] sm:$0xf]
      %v5451 = vld [vmem:[%s300 + $0x28] sm:$0xf]
      %v5452 = vld [vmem:[%s300 + $0x2c] sm:$0xf]
      %v5453 = vld [vmem:[%s300 + $0x30] sm:$0xf]
      %v5454 = vld [vmem:[%s300 + $0x34] sm:$0xf]
      %v5455 = vld [vmem:[%s300 + $0x38] sm:$0xf]
      %v5456 = vld [vmem:[%s300 + $0x3c] sm:$0xf]
      %v5457 = vld [vmem:[%s300 + $0x40] sm:$0xf]
      %v5458 = vld [vmem:[%s300 + $0x44] sm:$0xf]
      %v5459 = vld [vmem:[%s300 + $0x48] sm:$0xf]
      %v5460 = vld [vmem:[%s300 + $0x4c] sm:$0xf]
      %v5461 = vld [vmem:[%s300 + $0x50] sm:$0xf]
      %v5462 = vld [vmem:[%s300 + $0x54] sm:$0xf]
      %v5463 = vld [vmem:[%s300 + $0x58] sm:$0xf]
      %v5464 = vld [vmem:[%s300 + $0x5c] sm:$0xf]
      %v5465 = vld [vmem:[%s300 + $0x60] sm:$0xf]
      %v5466 = vld [vmem:[%s300 + $0x64] sm:$0xf]
      %v5467 = vld [vmem:[%s300 + $0x68] sm:$0xf]
      %v5468 = vld [vmem:[%s300 + $0x6c] sm:$0xf]
      %v5469 = vld [vmem:[%s300 + $0x70] sm:$0xf]
      %v5470 = vld [vmem:[%s300 + $0x74] sm:$0xf]
      %v5471 = vld [vmem:[%s300 + $0x78] sm:$0xf]
      %v5472 = vld [vmem:[%s300 + $0x7c] sm:$0xf]
      %v5505 = vunpack.c.l.b16 %v5441
      %v5506 = vunpack.c.l.b16 %v5442
      %v5507 = vunpack.c.l.b16 %v5443
      %v5508 = vunpack.c.l.b16 %v5444
      %v5509 = vunpack.c.l.b16 %v5445
      %v5510 = vunpack.c.l.b16 %v5446
      %v5511 = vunpack.c.l.b16 %v5447
      %v5512 = vunpack.c.l.b16 %v5448
      %v5513 = vunpack.c.l.b16 %v5449
      %v5514 = vunpack.c.l.b16 %v5450
      %v5515 = vunpack.c.l.b16 %v5451
      %v5516 = vunpack.c.l.b16 %v5452
      %v5517 = vunpack.c.l.b16 %v5453
      %v5518 = vunpack.c.l.b16 %v5454
      %v5519 = vunpack.c.l.b16 %v5455
      %v5520 = vunpack.c.l.b16 %v5456
      %v5521 = vunpack.c.l.b16 %v5457
      %v5522 = vunpack.c.l.b16 %v5458
      %v5523 = vunpack.c.l.b16 %v5459
      %v5524 = vunpack.c.l.b16 %v5460
      %v5525 = vunpack.c.l.b16 %v5461
      %v5526 = vunpack.c.l.b16 %v5462
      %v5527 = vunpack.c.l.b16 %v5463
      %v5528 = vunpack.c.l.b16 %v5464
      %v5529 = vunpack.c.l.b16 %v5465
      %v5530 = vunpack.c.l.b16 %v5466
      %v5531 = vunpack.c.l.b16 %v5467
      %v5532 = vunpack.c.l.b16 %v5468
      %v5533 = vunpack.c.l.b16 %v5469
      %v5534 = vunpack.c.l.b16 %v5470
      %v5535 = vunpack.c.l.b16 %v5471
      %v5536 = vunpack.c.l.b16 %v5472
      %v5537 = vpack.c.b16 %v5506, %v5505
      %v5538 = vpack.c.b16 %v5508, %v5507
      %v5539 = vpack.c.b16 %v5510, %v5509
      %v5540 = vpack.c.b16 %v5512, %v5511
      %v5541 = vpack.c.b16 %v5514, %v5513
      %v5542 = vpack.c.b16 %v5516, %v5515
      %v5543 = vpack.c.b16 %v5518, %v5517
      %v5544 = vpack.c.b16 %v5520, %v5519
      %v5545 = vpack.c.b16 %v5522, %v5521
      %v5546 = vpack.c.b16 %v5524, %v5523
      %v5547 = vpack.c.b16 %v5526, %v5525
      %v5548 = vpack.c.b16 %v5528, %v5527
      %v5549 = vpack.c.b16 %v5530, %v5529
      %v5550 = vpack.c.b16 %v5532, %v5531
      %v5551 = vpack.c.b16 %v5534, %v5533
      %v5552 = vpack.c.b16 %v5536, %v5535
      %v5585 = vunpack.c.l.b16 %v1452
      %v5586 = vunpack.c.l.b16 %v1453
      %v5587 = vunpack.c.l.b16 %v1454
      %v5588 = vunpack.c.l.b16 %v1455
      %v5589 = vunpack.c.l.b16 %v1456
      %v5590 = vunpack.c.l.b16 %v1457
      %v5591 = vunpack.c.l.b16 %v1458
      %v5592 = vunpack.c.l.b16 %v1459
      %v5593 = vunpack.c.l.b16 %v1460
      %v5594 = vunpack.c.l.b16 %v1461
      %v5595 = vunpack.c.l.b16 %v1462
      %v5596 = vunpack.c.l.b16 %v1463
      %v5597 = vunpack.c.l.b16 %v1464
      %v5598 = vunpack.c.l.b16 %v1465
      %v5599 = vunpack.c.l.b16 %v1466
      %v5600 = vunpack.c.l.b16 %v1467
      %v5601 = vpack.c.b16 %v5586, %v5585
      %v5602 = vpack.c.b16 %v5588, %v5587
      %v5603 = vpack.c.b16 %v5590, %v5589
      %v5604 = vpack.c.b16 %v5592, %v5591
      %v5605 = vpack.c.b16 %v5594, %v5593
      %v5606 = vpack.c.b16 %v5596, %v5595
      %v5607 = vpack.c.b16 %v5598, %v5597
      %v5608 = vpack.c.b16 %v5600, %v5599
      %5617 = vmatprep.subr.bf16.mxu0 0
      %5618 = vmatpush1.bf16.msra.mxu0 %v5608
      %5619 = vmatprep.subr.bf16.mxu0 0
      %5620 = vmatpush1.bf16.msra.mxu0 %v5607
      %5621 = vmatprep.subr.bf16.mxu0 0
      %5622 = vmatpush1.bf16.msra.mxu0 %v5606
      %5623 = vmatprep.subr.bf16.mxu0 0
      %5624 = vmatpush1.bf16.msra.mxu0 %v5605
      %5625 = vmatprep.subr.bf16.mxu0 0
      %5626 = vmatpush1.bf16.msra.mxu0 %v5604
      %5627 = vmatprep.subr.bf16.mxu0 0
      %5628 = vmatpush1.bf16.msra.mxu0 %v5603
      %5629 = vmatprep.subr.bf16.mxu0 0
      %5630 = vmatpush1.bf16.msra.mxu0 %v5602
      %5631 = vmatprep.subr.bf16.mxu0 0
      %5632 = vmatpush1.bf16.msra.mxu0 %v5601
      %5633 = vmatprep.subr.bf16.mxu0 0
      %5634 = vmatpush2.bf16.msra.mxu0 0
      %5635 = vmatprep.subr.bf16.mxu0 0
      %5636 = vmatpush2.bf16.msra.mxu0 0
      %5637 = vmatprep.subr.bf16.mxu0 0
      %5638 = vmatpush2.bf16.msra.mxu0 0
      %5639 = vmatprep.subr.bf16.mxu0 0
      %5640 = vmatpush2.bf16.msra.mxu0 0
      %5641 = vmatprep.subr.bf16.mxu0 0
      %5642 = vmatpush2.bf16.msra.mxu0 0
      %5643 = vmatprep.subr.bf16.mxu0 0
      %5644 = vmatpush2.bf16.msra.mxu0 0
      %5645 = vmatprep.subr.bf16.mxu0 0
      %5646 = vmatpush2.bf16.msra.mxu0 0
      %5647 = vmatprep.subr.bf16.mxu0 0
      %5648 = vmatpush2.bf16.msra.mxu0 0
      %5649 = vmatprep.mubr.bf16.mxu0 0
      %5650 = vmatmul.mubr.bf16.gmra.mxu0 %v5537
      %v5651 = vpop.f32.mrf.mxu0
      %v5652 = vadd.f32 0.0, %v5651
      %v5653 = vpop.f32.mrf.mxu0
      %v5654 = vpop.f32.mrf.mxu0
      %v5655 = vadd.f32 0.0, %v5654
      %v5656 = vpop.f32.mrf.mxu0
      %5657 = vmatprep.mubr.bf16.mxu0 0
      %5658 = vmatmul.mubr.bf16.gmra.mxu0 %v5538
      %v5659 = vpop.f32.mrf.mxu0
      %v5660 = vadd.f32 0.0, %v5659
      %v5661 = vpop.f32.mrf.mxu0
      %v5662 = vpop.f32.mrf.mxu0
      %v5663 = vadd.f32 0.0, %v5662
      %v5664 = vpop.f32.mrf.mxu0
      %5665 = vmatprep.mubr.bf16.mxu0 0
      %5666 = vmatmul.mubr.bf16.gmra.mxu0 %v5539
      %v5667 = vpop.f32.mrf.mxu0
      %v5668 = vadd.f32 0.0, %v5667
      %v5669 = vpop.f32.mrf.mxu0
      %v5670 = vpop.f32.mrf.mxu0
      %v5671 = vadd.f32 0.0, %v5670
      %v5672 = vpop.f32.mrf.mxu0
      %5673 = vmatprep.mubr.bf16.mxu0 0
      %5674 = vmatmul.mubr.bf16.gmra.mxu0 %v5540
      %v5675 = vpop.f32.mrf.mxu0
      %v5676 = vadd.f32 0.0, %v5675
      %v5677 = vpop.f32.mrf.mxu0
      %v5678 = vpop.f32.mrf.mxu0
      %v5679 = vadd.f32 0.0, %v5678
      %v5680 = vpop.f32.mrf.mxu0
      %5681 = vmatprep.mubr.bf16.mxu0 0
      %5682 = vmatmul.mubr.bf16.gmra.mxu0 %v5541
      %v5683 = vpop.f32.mrf.mxu0
      %v5684 = vadd.f32 0.0, %v5683
      %v5685 = vpop.f32.mrf.mxu0
      %v5686 = vpop.f32.mrf.mxu0
      %v5687 = vadd.f32 0.0, %v5686
      %v5688 = vpop.f32.mrf.mxu0
      %5689 = vmatprep.mubr.bf16.mxu0 0
      %5690 = vmatmul.mubr.bf16.gmra.mxu0 %v5542
      %v5691 = vpop.f32.mrf.mxu0
      %v5692 = vadd.f32 0.0, %v5691
      %v5693 = vpop.f32.mrf.mxu0
      %v5694 = vpop.f32.mrf.mxu0
      %v5695 = vadd.f32 0.0, %v5694
      %v5696 = vpop.f32.mrf.mxu0
      %5697 = vmatprep.mubr.bf16.mxu0 0
      %5698 = vmatmul.mubr.bf16.gmra.mxu0 %v5543
      %v5699 = vpop.f32.mrf.mxu0
      %v5700 = vadd.f32 0.0, %v5699
      %v5701 = vpop.f32.mrf.mxu0
      %v5702 = vpop.f32.mrf.mxu0
      %v5703 = vadd.f32 0.0, %v5702
      %v5704 = vpop.f32.mrf.mxu0
      %5705 = vmatprep.mubr.bf16.mxu0 0
      %5706 = vmatmul.mubr.bf16.gmra.mxu0 %v5544
      %v5707 = vpop.f32.mrf.mxu0
      %v5708 = vadd.f32 0.0, %v5707
      %v5709 = vpop.f32.mrf.mxu0
      %v5710 = vpop.f32.mrf.mxu0
      %v5711 = vadd.f32 0.0, %v5710
      %v5712 = vpop.f32.mrf.mxu0
      %5713 = vmatprep.mubr.bf16.mxu0 0
      %5714 = vmatmul.mubr.bf16.gmra.mxu0 %v5545
      %v5715 = vpop.f32.mrf.mxu0
      %v5716 = vadd.f32 0.0, %v5715
      %v5717 = vpop.f32.mrf.mxu0
      %v5718 = vpop.f32.mrf.mxu0
      %v5719 = vadd.f32 0.0, %v5718
      %v5720 = vpop.f32.mrf.mxu0
      %5721 = vmatprep.mubr.bf16.mxu0 0
      %5722 = vmatmul.mubr.bf16.gmra.mxu0 %v5546
      %v5723 = vpop.f32.mrf.mxu0
      %v5724 = vadd.f32 0.0, %v5723
      %v5725 = vpop.f32.mrf.mxu0
      %v5726 = vpop.f32.mrf.mxu0
      %v5727 = vadd.f32 0.0, %v5726
      %v5728 = vpop.f32.mrf.mxu0
      %5729 = vmatprep.mubr.bf16.mxu0 0
      %5730 = vmatmul.mubr.bf16.gmra.mxu0 %v5547
      %v5731 = vpop.f32.mrf.mxu0
      %v5732 = vadd.f32 0.0, %v5731
      %v5733 = vpop.f32.mrf.mxu0
      %v5734 = vpop.f32.mrf.mxu0
      %v5735 = vadd.f32 0.0, %v5734
      %v5736 = vpop.f32.mrf.mxu0
      %5737 = vmatprep.mubr.bf16.mxu0 0
      %5738 = vmatmul.mubr.bf16.gmra.mxu0 %v5548
      %v5739 = vpop.f32.mrf.mxu0
      %v5740 = vadd.f32 0.0, %v5739
      %v5741 = vpop.f32.mrf.mxu0
      %v5742 = vpop.f32.mrf.mxu0
      %v5743 = vadd.f32 0.0, %v5742
      %v5744 = vpop.f32.mrf.mxu0
      %5745 = vmatprep.mubr.bf16.mxu0 0
      %5746 = vmatmul.mubr.bf16.gmra.mxu0 %v5549
      %v5747 = vpop.f32.mrf.mxu0
      %v5748 = vadd.f32 0.0, %v5747
      %v5749 = vpop.f32.mrf.mxu0
      %v5750 = vpop.f32.mrf.mxu0
      %v5751 = vadd.f32 0.0, %v5750
      %v5752 = vpop.f32.mrf.mxu0
      %5753 = vmatprep.mubr.bf16.mxu0 0
      %5754 = vmatmul.mubr.bf16.gmra.mxu0 %v5550
      %v5755 = vpop.f32.mrf.mxu0
      %v5756 = vadd.f32 0.0, %v5755
      %v5757 = vpop.f32.mrf.mxu0
      %v5758 = vpop.f32.mrf.mxu0
      %v5759 = vadd.f32 0.0, %v5758
      %v5760 = vpop.f32.mrf.mxu0
      %5761 = vmatprep.mubr.bf16.mxu0 0
      %5762 = vmatmul.mubr.bf16.gmra.mxu0 %v5551
      %v5763 = vpop.f32.mrf.mxu0
      %v5764 = vadd.f32 0.0, %v5763
      %v5765 = vpop.f32.mrf.mxu0
      %v5766 = vpop.f32.mrf.mxu0
      %v5767 = vadd.f32 0.0, %v5766
      %v5768 = vpop.f32.mrf.mxu0
      %5769 = vmatprep.mubr.bf16.mxu0 0
      %5770 = vmatmul.mubr.bf16.gmra.mxu0 %v5552
      %v5771 = vpop.f32.mrf.mxu0
      %v5772 = vadd.f32 0.0, %v5771
      %v5773 = vpop.f32.mrf.mxu0
      %v5774 = vpop.f32.mrf.mxu0
      %v5775 = vadd.f32 0.0, %v5774
      %v5776 = vpop.f32.mrf.mxu0
      %5777 = vdwg.mxu0
      %v5778 = vadd.f32 %v5315, %v5652
      %v5779 = vadd.f32 %v5318, %v5655
      %v5780 = vadd.f32 %v5323, %v5660
      %v5781 = vadd.f32 %v5326, %v5663
      %v5782 = vadd.f32 %v5331, %v5668
      %v5783 = vadd.f32 %v5334, %v5671
      %v5784 = vadd.f32 %v5339, %v5676
      %v5785 = vadd.f32 %v5342, %v5679
      %v5786 = vadd.f32 %v5347, %v5684
      %v5787 = vadd.f32 %v5350, %v5687
      %v5788 = vadd.f32 %v5355, %v5692
      %v5789 = vadd.f32 %v5358, %v5695
      %v5790 = vadd.f32 %v5363, %v5700
      %v5791 = vadd.f32 %v5366, %v5703
      %v5792 = vadd.f32 %v5371, %v5708
      %v5793 = vadd.f32 %v5374, %v5711
      %v5794 = vadd.f32 %v5379, %v5716
      %v5795 = vadd.f32 %v5382, %v5719
      %v5796 = vadd.f32 %v5387, %v5724
      %v5797 = vadd.f32 %v5390, %v5727
      %v5798 = vadd.f32 %v5395, %v5732
      %v5799 = vadd.f32 %v5398, %v5735
      %v5800 = vadd.f32 %v5403, %v5740
      %v5801 = vadd.f32 %v5406, %v5743
      %v5802 = vadd.f32 %v5411, %v5748
      %v5803 = vadd.f32 %v5414, %v5751
      %v5804 = vadd.f32 %v5419, %v5756
      %v5805 = vadd.f32 %v5422, %v5759
      %v5806 = vadd.f32 %v5427, %v5764
      %v5807 = vadd.f32 %v5430, %v5767
      %v5808 = vadd.f32 %v5435, %v5772
      %v5809 = vadd.f32 %v5438, %v5775
      %v5810 = vmax.f32 %v5778, 0.0
      %v5811 = vmax.f32 %v5779, 0.0
      %v5812 = vmax.f32 %v5780, 0.0
      %v5813 = vmax.f32 %v5781, 0.0
      %v5814 = vmax.f32 %v5782, 0.0
      %v5815 = vmax.f32 %v5783, 0.0
      %v5816 = vmax.f32 %v5784, 0.0
      %v5817 = vmax.f32 %v5785, 0.0
      %v5818 = vmax.f32 %v5786, 0.0
      %v5819 = vmax.f32 %v5787, 0.0
      %v5820 = vmax.f32 %v5788, 0.0
      %v5821 = vmax.f32 %v5789, 0.0
      %v5822 = vmax.f32 %v5790, 0.0
      %v5823 = vmax.f32 %v5791, 0.0
      %v5824 = vmax.f32 %v5792, 0.0
      %v5825 = vmax.f32 %v5793, 0.0
      %v5826 = vmax.f32 %v5794, 0.0
      %v5827 = vmax.f32 %v5795, 0.0
      %v5828 = vmax.f32 %v5796, 0.0
      %v5829 = vmax.f32 %v5797, 0.0
      %v5830 = vmax.f32 %v5798, 0.0
      %v5831 = vmax.f32 %v5799, 0.0
      %v5832 = vmax.f32 %v5800, 0.0
      %v5833 = vmax.f32 %v5801, 0.0
      %v5834 = vmax.f32 %v5802, 0.0
      %v5835 = vmax.f32 %v5803, 0.0
      %v5836 = vmax.f32 %v5804, 0.0
      %v5837 = vmax.f32 %v5805, 0.0
      %v5838 = vmax.f32 %v5806, 0.0
      %v5839 = vmax.f32 %v5807, 0.0
      %v5840 = vmax.f32 %v5808, 0.0
      %v5841 = vmax.f32 %v5809, 0.0
      %v5842 = vpack.c.bf16 %v5811, %v5810
      %v5843 = vpack.c.bf16 %v5813, %v5812
      %v5844 = vpack.c.bf16 %v5815, %v5814
      %v5845 = vpack.c.bf16 %v5817, %v5816
      %v5846 = vpack.c.bf16 %v5819, %v5818
      %v5847 = vpack.c.bf16 %v5821, %v5820
      %v5848 = vpack.c.bf16 %v5823, %v5822
      %v5849 = vpack.c.bf16 %v5825, %v5824
      %v5850 = vpack.c.bf16 %v5827, %v5826
      %v5851 = vpack.c.bf16 %v5829, %v5828
      %v5852 = vpack.c.bf16 %v5831, %v5830
      %v5853 = vpack.c.bf16 %v5833, %v5832
      %v5854 = vpack.c.bf16 %v5835, %v5834
      %v5855 = vpack.c.bf16 %v5837, %v5836
      %v5856 = vpack.c.bf16 %v5839, %v5838
      %v5857 = vpack.c.bf16 %v5841, %v5840
      %v5874 = vunpack.c.l.b16 %v5842
      %v5875 = vunpack.c.h.b16 %v5842
      %v5876 = vunpack.c.l.b16 %v5843
      %v5877 = vunpack.c.h.b16 %v5843
      %v5878 = vunpack.c.l.b16 %v5844
      %v5879 = vunpack.c.h.b16 %v5844
      %v5880 = vunpack.c.l.b16 %v5845
      %v5881 = vunpack.c.h.b16 %v5845
      %v5882 = vunpack.c.l.b16 %v5846
      %v5883 = vunpack.c.h.b16 %v5846
      %v5884 = vunpack.c.l.b16 %v5847
      %v5885 = vunpack.c.h.b16 %v5847
      %v5886 = vunpack.c.l.b16 %v5848
      %v5887 = vunpack.c.h.b16 %v5848
      %v5888 = vunpack.c.l.b16 %v5849
      %v5889 = vunpack.c.h.b16 %v5849
      %v5890 = vunpack.c.l.b16 %v5850
      %v5891 = vunpack.c.h.b16 %v5850
      %v5892 = vunpack.c.l.b16 %v5851
      %v5893 = vunpack.c.h.b16 %v5851
      %v5894 = vunpack.c.l.b16 %v5852
      %v5895 = vunpack.c.h.b16 %v5852
      %v5896 = vunpack.c.l.b16 %v5853
      %v5897 = vunpack.c.h.b16 %v5853
      %v5898 = vunpack.c.l.b16 %v5854
      %v5899 = vunpack.c.h.b16 %v5854
      %v5900 = vunpack.c.l.b16 %v5855
      %v5901 = vunpack.c.h.b16 %v5855
      %v5902 = vunpack.c.l.b16 %v5856
      %v5903 = vunpack.c.h.b16 %v5856
      %v5904 = vunpack.c.l.b16 %v5857
      %v5905 = vunpack.c.h.b16 %v5857
      %v5906 = vpack.c.b16 %v5874, %v5874
      %v5907 = vpack.c.b16 %v5875, %v5875
      %v5908 = vpack.c.b16 %v5876, %v5876
      %v5909 = vpack.c.b16 %v5877, %v5877
      %v5910 = vpack.c.b16 %v5878, %v5878
      %v5911 = vpack.c.b16 %v5879, %v5879
      %v5912 = vpack.c.b16 %v5880, %v5880
      %v5913 = vpack.c.b16 %v5881, %v5881
      %v5914 = vpack.c.b16 %v5882, %v5882
      %v5915 = vpack.c.b16 %v5883, %v5883
      %v5916 = vpack.c.b16 %v5884, %v5884
      %v5917 = vpack.c.b16 %v5885, %v5885
      %v5918 = vpack.c.b16 %v5886, %v5886
      %v5919 = vpack.c.b16 %v5887, %v5887
      %v5920 = vpack.c.b16 %v5888, %v5888
      %v5921 = vpack.c.b16 %v5889, %v5889
      %v5922 = vpack.c.b16 %v5890, %v5890
      %v5923 = vpack.c.b16 %v5891, %v5891
      %v5924 = vpack.c.b16 %v5892, %v5892
      %v5925 = vpack.c.b16 %v5893, %v5893
      %v5926 = vpack.c.b16 %v5894, %v5894
      %v5927 = vpack.c.b16 %v5895, %v5895
      %v5928 = vpack.c.b16 %v5896, %v5896
      %v5929 = vpack.c.b16 %v5897, %v5897
      %v5930 = vpack.c.b16 %v5898, %v5898
      %v5931 = vpack.c.b16 %v5899, %v5899
      %v5932 = vpack.c.b16 %v5900, %v5900
      %v5933 = vpack.c.b16 %v5901, %v5901
      %v5934 = vpack.c.b16 %v5902, %v5902
      %v5935 = vpack.c.b16 %v5903, %v5903
      %v5936 = vpack.c.b16 %v5904, %v5904
      %v5937 = vpack.c.b16 %v5905, %v5905
      %5970 = vst [vmem:[%s305] sm:$0xf] %v5906
      %5971 = vst [vmem:[%s305 + $0x4] sm:$0xf] %v5907
      %5972 = vst [vmem:[%s305 + $0x8] sm:$0xf] %v5908
      %5973 = vst [vmem:[%s305 + $0xc] sm:$0xf] %v5909
      %5974 = vst [vmem:[%s305 + $0x10] sm:$0xf] %v5910
      %5975 = vst [vmem:[%s305 + $0x14] sm:$0xf] %v5911
      %5976 = vst [vmem:[%s305 + $0x18] sm:$0xf] %v5912
      %5977 = vst [vmem:[%s305 + $0x1c] sm:$0xf] %v5913
      %5978 = vst [vmem:[%s305 + $0x20] sm:$0xf] %v5914
      %5979 = vst [vmem:[%s305 + $0x24] sm:$0xf] %v5915
      %5980 = vst [vmem:[%s305 + $0x28] sm:$0xf] %v5916
      %5981 = vst [vmem:[%s305 + $0x2c] sm:$0xf] %v5917
      %5982 = vst [vmem:[%s305 + $0x30] sm:$0xf] %v5918
      %5983 = vst [vmem:[%s305 + $0x34] sm:$0xf] %v5919
      %5984 = vst [vmem:[%s305 + $0x38] sm:$0xf] %v5920
      %5985 = vst [vmem:[%s305 + $0x3c] sm:$0xf] %v5921
      %5986 = vst [vmem:[%s305 + $0x40] sm:$0xf] %v5922
      %5987 = vst [vmem:[%s305 + $0x44] sm:$0xf] %v5923
      %5988 = vst [vmem:[%s305 + $0x48] sm:$0xf] %v5924
      %5989 = vst [vmem:[%s305 + $0x4c] sm:$0xf] %v5925
      %5990 = vst [vmem:[%s305 + $0x50] sm:$0xf] %v5926
      %5991 = vst [vmem:[%s305 + $0x54] sm:$0xf] %v5927
      %5992 = vst [vmem:[%s305 + $0x58] sm:$0xf] %v5928
      %5993 = vst [vmem:[%s305 + $0x5c] sm:$0xf] %v5929
      %5994 = vst [vmem:[%s305 + $0x60] sm:$0xf] %v5930
      %5995 = vst [vmem:[%s305 + $0x64] sm:$0xf] %v5931
      %5996 = vst [vmem:[%s305 + $0x68] sm:$0xf] %v5932
      %5997 = vst [vmem:[%s305 + $0x6c] sm:$0xf] %v5933
      %5998 = vst [vmem:[%s305 + $0x70] sm:$0xf] %v5934
      %5999 = vst [vmem:[%s305 + $0x74] sm:$0xf] %v5935
      %6000 = vst [vmem:[%s305 + $0x78] sm:$0xf] %v5936
      %6001 = vst [vmem:[%s305 + $0x7c] sm:$0xf] %v5937
      %p6002 = scmp.lt.s32.totalorder %s19, 1
      %s6003 = scalar_select %p6002, %s19, 1
      %s6004 = smul.addr %s6003, 32
      %s6005 = smul.addr %s6004, 4
      %s6006 = scalar_lea.vmem %s8, %s6005
      // Predicated region
      $region53: #{bottleneck_forward.1} parent=51 // pred_check
        %p6007 = pneg %p210
      $region54: #{bottleneck_forward.1} parent=51 // pred_check_branch
        %6009 = sbr.rel (%p6007) target = $region56
      $region55: #{bottleneck_forward.1} parent=51 // pred_region
        _
      $region56: #{bottleneck_forward.1} parent=51 // pred_fallthru
        _
    $region52: #{bottleneck_forward.1} parent=5 // pred_fallthru
      _
    %p6010 = scmp.le.s32.totalorder 2, %s14
    // Predicated region
    $region57: #{bottleneck_forward.1} parent=5 // pred_check
      %p6011 = pneg %p6010
    $region58: #{bottleneck_forward.1} parent=5 // pred_check_branch
      %6013 = sbr.rel (%p6011) target = $region60
    $region59: #{bottleneck_forward.1} parent=5 // pred_region
      %s6014 = ssub.s32 %s14, 2
      // Predicated region
      $region61: #{bottleneck_forward.1} parent=59 // pred_check
        %p6015 = pneg %p216
      $region62: #{bottleneck_forward.1} parent=59 // pred_check_branch
        %6017 = sbr.rel (%p6015) target = $region64
      $region63: #{bottleneck_forward.1} parent=59 // pred_region
        %p6018 = scmp.lt.s32.totalorder %s20, 1
        %s6019 = scalar_select %p6018, %s20, 1
        %s6020 = smul.addr %s6019, 32
        %s6021 = smul.addr %s6020, 4
        %s6022 = scalar_lea.vmem %s8, %s6021
      $region64: #{bottleneck_forward.1} parent=59 // pred_fallthru
        _
    $region60: #{bottleneck_forward.1} parent=5 // pred_fallthru
      _
  $region6: #{bottleneck_forward.1} parent=0 // loop_footer
    %s18 = sadd.s32 1, %s14
  $region7: #{bottleneck_forward.1} parent=0 // loop_footer_branch
    %13 = sbr.rel target = $region3
  $region8: #{bottleneck_forward.1} parent=0 // loop_exit
    _

</llo_original>
